<compile_context>
chip_gen: v6e
topology: v6e:2x2x1
jax: 0.10.0
libtpu: 0.0.40
codegen_flags: <defaults>
</compile_context>

<pallas_src>
import math
import sys

import jax
import jax.numpy as jnp
from jax.experimental import pallas as pl
from jax.experimental.pallas import tpu as pltpu


def _full_spec(shape):
    """Whole-array block for a grid=(1,) kernel."""
    return pl.BlockSpec(shape, lambda i: (0,) * len(shape))


# ----------------------------------------------------------------------------
# Fully fused forward kernel: TCN -> LSTM layers -> attention + LN -> FC.
# ----------------------------------------------------------------------------
def make_fused_kernel(B, S, E, H, heads, num_layers):
    dh = H // heads
    scale = 1.0 / math.sqrt(dh)

    def layernorm(h2, g, be):
        mu = jnp.mean(h2, axis=-1, keepdims=True)
        var = jnp.mean((h2 - mu) ** 2, axis=-1, keepdims=True)
        return (h2 - mu) * jax.lax.rsqrt(var + 1e-5) * g + be

    def kernel(*refs):
        (emb_ref,
         w1_ref, b1_ref, g1_ref, be1_ref,
         w2_ref, b2_ref, g2_ref, be2_ref) = refs[:9]
        lstm_refs = refs[9:9 + 3 * num_layers]
        (win_ref, bin_ref, wo_ref, bo_ref, lng_ref, lnb_ref,
         wfc_ref, bfc_ref, o_ref) = refs[9 + 3 * num_layers:]

        # ---------------- TCN block (conv k=3, p=1 -> LN -> ReLU) x2 + res ----
        x3 = emb_ref[...]                                      # (B, S, E)

        def conv3(h3, w_ref, b_ref):
            # shift along S inside each batch element (no cross-batch leakage)
            zero = jnp.zeros((B, 1, E), jnp.float32)
            h_prev = jnp.concatenate([zero, h3[:, :-1, :]], axis=1)   # x[t-1]
            h_next = jnp.concatenate([h3[:, 1:, :], zero], axis=1)    # x[t+1]

            def mm(a, k):
                return jnp.dot(a.reshape(B * S, E), w_ref[k],
                               preferred_element_type=jnp.float32)

            return mm(h_prev, 0) + mm(h3, 1) + mm(h_next, 2) + b_ref[...]  # (B*S,E)

        h1 = jnp.maximum(layernorm(conv3(x3, w1_ref, b1_ref),
                                   g1_ref[...], be1_ref[...]), 0.0)
        h1 = h1.reshape(B, S, E)
        h2 = jnp.maximum(layernorm(conv3(h1, w2_ref, b2_ref),
                                   g2_ref[...], be2_ref[...]), 0.0)
        x_cur = jnp.maximum(h2.reshape(B, S, E) + x3, 0.0)      # (B, S, E)

        # ---------------- LSTM stack (fused gates i,f,g,o along 4H) ----------
        h_last = None
        for layer in range(num_layers):
            wih_ref, whh_ref, bl_ref = lstm_refs[3 * layer: 3 * layer + 3]
            D = x_cur.shape[-1]
            # hoisted input projection for all timesteps: (B*S, D) x (D, 4H)
            xp = (jnp.dot(x_cur.reshape(B * S, D), wih_ref[...],
                          preferred_element_type=jnp.float32)
                  + bl_ref[...]).reshape(B, S, 4 * H)
            whh = whh_ref[...]                                  # (H, 4H)
            h = jnp.zeros((B, H), jnp.float32)
            c = jnp.zeros((B, H), jnp.float32)
            outs = []
            for t in range(S):          # S is small & static -> full unroll
                gates = xp[:, t, :] + jnp.dot(
                    h, whh, preferred_element_type=jnp.float32)       # (B, 4H)
                i = jax.nn.sigmoid(gates[:, 0 * H:1 * H])
                f = jax.nn.sigmoid(gates[:, 1 * H:2 * H])
                g = jnp.tanh(gates[:, 2 * H:3 * H])
                o = jax.nn.sigmoid(gates[:, 3 * H:4 * H])
                c = f * c + i * g
                h = o * jnp.tanh(c)
                outs.append(h)
            h_last = h
            if layer + 1 < num_layers:
                x_cur = jnp.stack(outs, axis=1)                 # (B, S, H)

        # ----- multi-head attention over the batch axis at the last position -
        xs = h_last                                             # (B, H)
        qkv = (jnp.dot(xs, win_ref[...], preferred_element_type=jnp.float32)
               + bin_ref[...])                                  # (B, 3H)
        q = qkv[:, 0:H]
        k = qkv[:, H:2 * H]
        v = qkv[:, 2 * H:3 * H]
        head_outs = []
        for hh in range(heads):
            lo, hi = hh * dh, (hh + 1) * dh
            qh, kh, vh = q[:, lo:hi], k[:, lo:hi], v[:, lo:hi]
            s = jnp.dot(qh, kh.T, preferred_element_type=jnp.float32) * scale
            s = s - jnp.max(s, axis=-1, keepdims=True)
            p = jnp.exp(s)
            p = p / jnp.sum(p, axis=-1, keepdims=True)
            head_outs.append(jnp.dot(p, vh, preferred_element_type=jnp.float32))
        attn = jnp.concatenate(head_outs, axis=-1)              # (B, H)
        attn = (jnp.dot(attn, wo_ref[...], preferred_element_type=jnp.float32)
                + bo_ref[...])

        ln = layernorm(attn, lng_ref[...], lnb_ref[...])
        o_ref[...] = (jnp.dot(ln, wfc_ref[...], preferred_element_type=jnp.float32)
                      + bfc_ref[...])

    return kernel


# ----------------------------------------------------------------------------
# Wrapper: embedding gather outside (single tiny XLA gather), one pallas_call.
# ----------------------------------------------------------------------------
def make_forward(heads):
    @jax.jit
    def forward(ids, params):
        emb = jnp.take(params["emb"], ids, axis=0).astype(jnp.float32)  # (B,S,E)
        B, S, E = emb.shape
        num_layers = len(params["lstm"])
        H = params["lstm"][0][1].shape[0]
        V = params["wfc"].shape[1]

        kernel = make_fused_kernel(B, S, E, H, heads, num_layers)

        inputs = [emb,
                  params["w1"], params["b1"], params["g1"], params["be1"],
                  params["w2"], params["b2"], params["g2"], params["be2"]]
        for wih, whh, b in params["lstm"]:
            inputs += [wih, whh, b]
        inputs += [params["w_in"], params["b_in"], params["wo"], params["bo"],
                   params["ln_g"], params["ln_b"], params["wfc"], params["bfc"]]

        return pl.pallas_call(
            kernel,
            out_shape=jax.ShapeDtypeStruct((B, V), jnp.float32),
            grid_spec=pltpu.PrefetchScalarGridSpec(
                num_scalar_prefetch=0,
                grid=(1,),
                in_specs=[_full_spec(x.shape) for x in inputs],
                out_specs=_full_spec((B, V))),
            compiler_params=pltpu.CompilerParams(
                dimension_semantics=("arbitrary",)),
        )(*inputs)

    return forward


# ----------------------------------------------------------------------------
# Pure-JAX reference (same math, no Pallas) for the correctness check.
# ----------------------------------------------------------------------------
def reference_forward(ids, p, heads):
    emb = p["emb"][ids]                                         # (B, S, E)
    B, S, _ = emb.shape
    H = p["lstm"][0][1].shape[0]
    dh = H // heads

    def conv_ln_relu(h, w, b, g, be):
        zero = jnp.zeros_like(h[:, :1, :])
        h_prev = jnp.concatenate([zero, h[:, :-1, :]], axis=1)
        h_next = jnp.concatenate([h[:, 1:, :], zero], axis=1)
        y = (jnp.einsum("bsi,io->bso", h_prev, w[0])
             + jnp.einsum("bsi,io->bso", h, w[1])
             + jnp.einsum("bsi,io->bso", h_next, w[2]) + b)
        mu = y.mean(-1, keepdims=True)
        var = ((y - mu) ** 2).mean(-1, keepdims=True)
        return jax.nn.relu((y - mu) / jnp.sqrt(var + 1e-5) * g + be)

    h1 = conv_ln_relu(emb, p["w1"], p["b1"], p["g1"], p["be1"])
    h2 = conv_ln_relu(h1, p["w2"], p["b2"], p["g2"], p["be2"])
    x = jax.nn.relu(h2 + emb)                                   # (B, S, E)

    for wih, whh, b in p["lstm"]:
        h = jnp.zeros((B, H)); c = jnp.zeros((B, H))
        outs = []
        for t in range(S):
            gates = x[:, t, :] @ wih + h @ whh + b
            i = jax.nn.sigmoid(gates[:, 0:H])
            f = jax.nn.sigmoid(gates[:, H:2 * H])
            g = jnp.tanh(gates[:, 2 * H:3 * H])
            o = jax.nn.sigmoid(gates[:, 3 * H:4 * H])
            c = f * c + i * g
            h = o * jnp.tanh(c)
            outs.append(h)
        x = jnp.stack(outs, axis=1)                             # (B, S, H)

    # attention over the batch axis at the last sequence position (module quirk)
    xs = x[:, -1, :]                                            # (B, H)
    qkv = xs @ p["w_in"] + p["b_in"]
    q, k, v = qkv[:, :H], qkv[:, H:2 * H], qkv[:, 2 * H:3 * H]
    head_outs = []
    for hh in range(heads):
        lo, hi = hh * dh, (hh + 1) * dh
        s = (q[:, lo:hi] @ k[:, lo:hi].T) / math.sqrt(dh)
        pw = jax.nn.softmax(s, axis=-1)
        head_outs.append(pw @ v[:, lo:hi])
    attn = jnp.concatenate(head_outs, axis=-1) @ p["wo"] + p["bo"]
    mu = attn.mean(-1, keepdims=True)
    var = ((attn - mu) ** 2).mean(-1, keepdims=True)
    final = (attn - mu) / jnp.sqrt(var + 1e-5) * p["ln_g"] + p["ln_b"]
    return final @ p["wfc"] + p["bfc"]


# ----------------------------------------------------------------------------
# Deterministic synthetic parameters (fused layouts; shapes follow __init__).
# ----------------------------------------------------------------------------
def init_params(key, vocab, emb_dim, hidden, num_layers, heads):
    keys = iter(jax.random.split(key, 64))

    def nrm(shape, scale=0.1):
        return jax.random.normal(next(keys), shape, jnp.float32) * scale

    params = dict(
        emb=nrm((vocab, emb_dim)).at[0].set(0.0),               # padding_idx=0
        w1=nrm((3, emb_dim, emb_dim)), b1=nrm((1, emb_dim)),
        g1=jnp.ones((1, emb_dim)), be1=jnp.zeros((1, emb_dim)),
        w2=nrm((3, emb_dim, emb_dim)), b2=nrm((1, emb_dim)),
        g2=jnp.ones((1, emb_dim)), be2=jnp.zeros((1, emb_dim)),
        # fused in-projection (Wq|Wk|Wv columns), fused out-projection
        w_in=nrm((hidden, 3 * hidden)), b_in=nrm((1, 3 * hidden)),
        wo=nrm((hidden, hidden)), bo=nrm((1, hidden)),
        ln_g=jnp.ones((1, hidden)), ln_b=jnp.zeros((1, hidden)),
        wfc=nrm((hidden, vocab)), bfc=nrm((1, vocab)),
    )
    lstm = []
    for layer in range(num_layers):
        d_in = emb_dim if layer == 0 else hidden
        lstm.append((nrm((d_in, 4 * hidden)),                   # Wih  (D, 4H)
                     nrm((hidden, 4 * hidden)),                 # Whh  (H, 4H)
                     nrm((1, 4 * hidden))))                     # bias (1, 4H)
    params["lstm"] = lstm
    return params


if __name__ == "__main__":
    B, S = 2, 8
    VOCAB, EMB, HIDDEN, NUM_LAYERS, HEADS = 32, 16, 32, 2, 4

    key = jax.random.PRNGKey(0)
    k_param, k_ids = jax.random.split(key)
    params = init_params(k_param, VOCAB, EMB, HIDDEN, NUM_LAYERS, HEADS)
    ids = jax.random.randint(k_ids, (B, S), 0, VOCAB, dtype=jnp.int32)

    forward = make_forward(HEADS)
    logits = jax.block_until_ready(forward(ids, params))

    ref = reference_forward(ids, params, HEADS)
    assert logits.shape == (B, VOCAB), logits.shape
    if not bool(jnp.all(jnp.isfinite(logits))):
        print("non-finite output"); sys.exit(1)
    if not bool(jnp.allclose(logits, ref, atol=1e-2, rtol=1e-2)):
        print("mismatch vs reference, max abs diff:",
              float(jnp.max(jnp.abs(logits - ref))))
        sys.exit(1)

    print("KERNEL_OK")
</pallas_src>

<mosaic_0001>
module attributes {stable_mosaic.version = 11 : i64} {
  func.func @kernel(%arg0: i32, %arg1: memref<2x8x16xf32, #tpu.memory_space<vmem>>, %arg2: memref<3x16x16xf32, #tpu.memory_space<vmem>>, %arg3: memref<1x16xf32, #tpu.memory_space<vmem>>, %arg4: memref<1x16xf32, #tpu.memory_space<vmem>>, %arg5: memref<1x16xf32, #tpu.memory_space<vmem>>, %arg6: memref<3x16x16xf32, #tpu.memory_space<vmem>>, %arg7: memref<1x16xf32, #tpu.memory_space<vmem>>, %arg8: memref<1x16xf32, #tpu.memory_space<vmem>>, %arg9: memref<1x16xf32, #tpu.memory_space<vmem>>, %arg10: memref<16x128xf32, #tpu.memory_space<vmem>>, %arg11: memref<32x128xf32, #tpu.memory_space<vmem>>, %arg12: memref<1x128xf32, #tpu.memory_space<vmem>>, %arg13: memref<32x128xf32, #tpu.memory_space<vmem>>, %arg14: memref<32x128xf32, #tpu.memory_space<vmem>>, %arg15: memref<1x128xf32, #tpu.memory_space<vmem>>, %arg16: memref<32x96xf32, #tpu.memory_space<vmem>>, %arg17: memref<1x96xf32, #tpu.memory_space<vmem>>, %arg18: memref<32x32xf32, #tpu.memory_space<vmem>>, %arg19: memref<1x32xf32, #tpu.memory_space<vmem>>, %arg20: memref<1x32xf32, #tpu.memory_space<vmem>>, %arg21: memref<1x32xf32, #tpu.memory_space<vmem>>, %arg22: memref<32x32xf32, #tpu.memory_space<vmem>>, %arg23: memref<1x32xf32, #tpu.memory_space<vmem>>, %arg24: memref<2x32xf32, #tpu.memory_space<vmem>>) attributes {dimension_semantics = [#tpu.dimension_semantics<arbitrary>], iteration_bounds = array<i64: 1>, scalar_prefetch = 0 : i64, scratch_operands = 0 : i64, tpu.core_type = #tpu.core_type<tc>, window_params = [{pipeline_mode = #tpu.pipeline_mode<synchronous>, transform_indices = @transform_0, window_bounds = array<i64: 2, 8, 16>}, {pipeline_mode = #tpu.pipeline_mode<synchronous>, transform_indices = @transform_1, window_bounds = array<i64: 3, 16, 16>}, {pipeline_mode = #tpu.pipeline_mode<synchronous>, transform_indices = @transform_2, window_bounds = array<i64: 1, 16>}, {pipeline_mode = #tpu.pipeline_mode<synchronous>, transform_indices = @transform_3, window_bounds = array<i64: 1, 16>}, {pipeline_mode = #tpu.pipeline_mode<synchronous>, transform_indices = @transform_4, window_bounds = array<i64: 1, 16>}, {pipeline_mode = #tpu.pipeline_mode<synchronous>, transform_indices = @transform_5, window_bounds = array<i64: 3, 16, 16>}, {pipeline_mode = #tpu.pipeline_mode<synchronous>, transform_indices = @transform_6, window_bounds = array<i64: 1, 16>}, {pipeline_mode = #tpu.pipeline_mode<synchronous>, transform_indices = @transform_7, window_bounds = array<i64: 1, 16>}, {pipeline_mode = #tpu.pipeline_mode<synchronous>, transform_indices = @transform_8, window_bounds = array<i64: 1, 16>}, {pipeline_mode = #tpu.pipeline_mode<synchronous>, transform_indices = @transform_9, window_bounds = array<i64: 16, 128>}, {pipeline_mode = #tpu.pipeline_mode<synchronous>, transform_indices = @transform_10, window_bounds = array<i64: 32, 128>}, {pipeline_mode = #tpu.pipeline_mode<synchronous>, transform_indices = @transform_11, window_bounds = array<i64: 1, 128>}, {pipeline_mode = #tpu.pipeline_mode<synchronous>, transform_indices = @transform_12, window_bounds = array<i64: 32, 128>}, {pipeline_mode = #tpu.pipeline_mode<synchronous>, transform_indices = @transform_13, window_bounds = array<i64: 32, 128>}, {pipeline_mode = #tpu.pipeline_mode<synchronous>, transform_indices = @transform_14, window_bounds = array<i64: 1, 128>}, {pipeline_mode = #tpu.pipeline_mode<synchronous>, transform_indices = @transform_15, window_bounds = array<i64: 32, 96>}, {pipeline_mode = #tpu.pipeline_mode<synchronous>, transform_indices = @transform_16, window_bounds = array<i64: 1, 96>}, {pipeline_mode = #tpu.pipeline_mode<synchronous>, transform_indices = @transform_17, window_bounds = array<i64: 32, 32>}, {pipeline_mode = #tpu.pipeline_mode<synchronous>, transform_indices = @transform_18, window_bounds = array<i64: 1, 32>}, {pipeline_mode = #tpu.pipeline_mode<synchronous>, transform_indices = @transform_19, window_bounds = array<i64: 1, 32>}, {pipeline_mode = #tpu.pipeline_mode<synchronous>, transform_indices = @transform_20, window_bounds = array<i64: 1, 32>}, {pipeline_mode = #tpu.pipeline_mode<synchronous>, transform_indices = @transform_21, window_bounds = array<i64: 32, 32>}, {pipeline_mode = #tpu.pipeline_mode<synchronous>, transform_indices = @transform_22, window_bounds = array<i64: 1, 32>}, {pipeline_mode = #tpu.pipeline_mode<synchronous>, transform_indices = @transform_23, window_bounds = array<i64: 2, 32>}]} {
    %c0 = arith.constant 0 : index
    %c0_0 = arith.constant 0 : index
    %c0_1 = arith.constant 0 : index
    %0 = vector.load %arg1[%c0, %c0_0, %c0_1] : memref<2x8x16xf32, #tpu.memory_space<vmem>>, vector<2x8x16xf32>
    %cst = arith.constant 0.000000e+00 : f32
    %1 = vector.broadcast %cst : f32 to vector<2x1x16xf32>
    %2 = vector.extract_strided_slice %0 {offsets = [0, 0, 0], sizes = [2, 7, 16], strides = [1, 1, 1]} : vector<2x8x16xf32> to vector<2x7x16xf32>
    %3 = tpu.concatenate %1, %2 in 1 : vector<2x1x16xf32>, vector<2x7x16xf32> -> vector<2x8x16xf32>
    %4 = vector.extract_strided_slice %0 {offsets = [0, 1, 0], sizes = [2, 7, 16], strides = [1, 1, 1]} : vector<2x8x16xf32> to vector<2x7x16xf32>
    %5 = tpu.concatenate %4, %1 in 1 : vector<2x7x16xf32>, vector<2x1x16xf32> -> vector<2x8x16xf32>
    %6 = vector.shape_cast %3 : vector<2x8x16xf32> to vector<16x16xf32>
    %c0_2 = arith.constant 0 : index
    %c0_3 = arith.constant 0 : index
    %c0_4 = arith.constant 0 : index
    %7 = vector.load %arg2[%c0_2, %c0_3, %c0_4] : memref<3x16x16xf32, #tpu.memory_space<vmem>>, vector<1x16x16xf32>
    %8 = vector.shape_cast %7 : vector<1x16x16xf32> to vector<16x16xf32>
    %cst_5 = arith.constant dense<0.000000e+00> : vector<16x16xf32>
    %9 = tpu.matmul %6, %8, %cst_5 {dimension_numbers = #tpu.dot_dimension_numbers<[1], [0], [0], [1], [0, 0, 1, 1], [], []>} : vector<16x16xf32>, vector<16x16xf32>, vector<16x16xf32> -> vector<16x16xf32>
    %10 = vector.shape_cast %0 : vector<2x8x16xf32> to vector<16x16xf32>
    %c1 = arith.constant 1 : index
    %c0_6 = arith.constant 0 : index
    %c0_7 = arith.constant 0 : index
    %11 = vector.load %arg2[%c1, %c0_6, %c0_7] : memref<3x16x16xf32, #tpu.memory_space<vmem>>, vector<1x16x16xf32>
    %12 = vector.shape_cast %11 : vector<1x16x16xf32> to vector<16x16xf32>
    %cst_8 = arith.constant dense<0.000000e+00> : vector<16x16xf32>
    %13 = tpu.matmul %10, %12, %cst_8 {dimension_numbers = #tpu.dot_dimension_numbers<[1], [0], [0], [1], [0, 0, 1, 1], [], []>} : vector<16x16xf32>, vector<16x16xf32>, vector<16x16xf32> -> vector<16x16xf32>
    %14 = arith.addf %9, %13 : vector<16x16xf32>
    %15 = vector.shape_cast %5 : vector<2x8x16xf32> to vector<16x16xf32>
    %c2 = arith.constant 2 : index
    %c0_9 = arith.constant 0 : index
    %c0_10 = arith.constant 0 : index
    %16 = vector.load %arg2[%c2, %c0_9, %c0_10] : memref<3x16x16xf32, #tpu.memory_space<vmem>>, vector<1x16x16xf32>
    %17 = vector.shape_cast %16 : vector<1x16x16xf32> to vector<16x16xf32>
    %cst_11 = arith.constant dense<0.000000e+00> : vector<16x16xf32>
    %18 = tpu.matmul %15, %17, %cst_11 {dimension_numbers = #tpu.dot_dimension_numbers<[1], [0], [0], [1], [0, 0, 1, 1], [], []>} : vector<16x16xf32>, vector<16x16xf32>, vector<16x16xf32> -> vector<16x16xf32>
    %19 = arith.addf %14, %18 : vector<16x16xf32>
    %c0_12 = arith.constant 0 : index
    %c0_13 = arith.constant 0 : index
    %20 = vector.load %arg3[%c0_12, %c0_13] : memref<1x16xf32, #tpu.memory_space<vmem>>, vector<1x16xf32>
    %21 = vector.broadcast %20 : vector<1x16xf32> to vector<16x16xf32>
    %22 = arith.addf %19, %21 : vector<16x16xf32>
    %c0_14 = arith.constant 0 : index
    %c0_15 = arith.constant 0 : index
    %23 = vector.load %arg4[%c0_14, %c0_15] : memref<1x16xf32, #tpu.memory_space<vmem>>, vector<1x16xf32>
    %c0_16 = arith.constant 0 : index
    %c0_17 = arith.constant 0 : index
    %24 = vector.load %arg5[%c0_16, %c0_17] : memref<1x16xf32, #tpu.memory_space<vmem>>, vector<1x16xf32>
    %cst_18 = arith.constant dense<0.000000e+00> : vector<16xf32>
    %25 = vector.multi_reduction <add>, %22, %cst_18 [1] : vector<16x16xf32> to vector<16xf32>
    %26 = vector.shape_cast %25 : vector<16xf32> to vector<16x1xf32>
    %cst_19 = arith.constant 1.600000e+01 : f32
    %27 = vector.broadcast %cst_19 : f32 to vector<16x1xf32>
    %28 = arith.divf %26, %27 : vector<16x1xf32>
    %29 = vector.broadcast %28 : vector<16x1xf32> to vector<16x16xf32>
    %30 = arith.subf %22, %29 : vector<16x16xf32>
    %31 = arith.mulf %30, %30 : vector<16x16xf32>
    %cst_20 = arith.constant dense<0.000000e+00> : vector<16xf32>
    %32 = vector.multi_reduction <add>, %31, %cst_20 [1] : vector<16x16xf32> to vector<16xf32>
    %33 = vector.shape_cast %32 : vector<16xf32> to vector<16x1xf32>
    %cst_21 = arith.constant 1.600000e+01 : f32
    %34 = vector.broadcast %cst_21 : f32 to vector<16x1xf32>
    %35 = arith.divf %33, %34 : vector<16x1xf32>
    %36 = vector.broadcast %28 : vector<16x1xf32> to vector<16x16xf32>
    %37 = arith.subf %22, %36 : vector<16x16xf32>
    %cst_22 = arith.constant 9.99999974E-6 : f32
    %38 = vector.broadcast %cst_22 : f32 to vector<16x1xf32>
    %39 = arith.addf %35, %38 : vector<16x1xf32>
    %40 = math.rsqrt %39 : vector<16x1xf32>
    %41 = vector.broadcast %40 : vector<16x1xf32> to vector<16x16xf32>
    %42 = arith.mulf %37, %41 : vector<16x16xf32>
    %43 = vector.broadcast %23 : vector<1x16xf32> to vector<16x16xf32>
    %44 = arith.mulf %42, %43 : vector<16x16xf32>
    %45 = vector.broadcast %24 : vector<1x16xf32> to vector<16x16xf32>
    %46 = arith.addf %44, %45 : vector<16x16xf32>
    %cst_23 = arith.constant 0.000000e+00 : f32
    %47 = vector.broadcast %cst_23 : f32 to vector<16x16xf32>
    %48 = arith.maximumf %46, %47 : vector<16x16xf32>
    %49 = vector.shape_cast %48 : vector<16x16xf32> to vector<2x8x16xf32>
    %cst_24 = arith.constant 0.000000e+00 : f32
    %50 = vector.broadcast %cst_24 : f32 to vector<2x1x16xf32>
    %51 = vector.extract_strided_slice %49 {offsets = [0, 0, 0], sizes = [2, 7, 16], strides = [1, 1, 1]} : vector<2x8x16xf32> to vector<2x7x16xf32>
    %52 = tpu.concatenate %50, %51 in 1 : vector<2x1x16xf32>, vector<2x7x16xf32> -> vector<2x8x16xf32>
    %53 = vector.extract_strided_slice %49 {offsets = [0, 1, 0], sizes = [2, 7, 16], strides = [1, 1, 1]} : vector<2x8x16xf32> to vector<2x7x16xf32>
    %54 = tpu.concatenate %53, %50 in 1 : vector<2x7x16xf32>, vector<2x1x16xf32> -> vector<2x8x16xf32>
    %55 = vector.shape_cast %52 : vector<2x8x16xf32> to vector<16x16xf32>
    %c0_25 = arith.constant 0 : index
    %c0_26 = arith.constant 0 : index
    %c0_27 = arith.constant 0 : index
    %56 = vector.load %arg6[%c0_25, %c0_26, %c0_27] : memref<3x16x16xf32, #tpu.memory_space<vmem>>, vector<1x16x16xf32>
    %57 = vector.shape_cast %56 : vector<1x16x16xf32> to vector<16x16xf32>
    %cst_28 = arith.constant dense<0.000000e+00> : vector<16x16xf32>
    %58 = tpu.matmul %55, %57, %cst_28 {dimension_numbers = #tpu.dot_dimension_numbers<[1], [0], [0], [1], [0, 0, 1, 1], [], []>} : vector<16x16xf32>, vector<16x16xf32>, vector<16x16xf32> -> vector<16x16xf32>
    %59 = vector.shape_cast %49 : vector<2x8x16xf32> to vector<16x16xf32>
    %c1_29 = arith.constant 1 : index
    %c0_30 = arith.constant 0 : index
    %c0_31 = arith.constant 0 : index
    %60 = vector.load %arg6[%c1_29, %c0_30, %c0_31] : memref<3x16x16xf32, #tpu.memory_space<vmem>>, vector<1x16x16xf32>
    %61 = vector.shape_cast %60 : vector<1x16x16xf32> to vector<16x16xf32>
    %cst_32 = arith.constant dense<0.000000e+00> : vector<16x16xf32>
    %62 = tpu.matmul %59, %61, %cst_32 {dimension_numbers = #tpu.dot_dimension_numbers<[1], [0], [0], [1], [0, 0, 1, 1], [], []>} : vector<16x16xf32>, vector<16x16xf32>, vector<16x16xf32> -> vector<16x16xf32>
    %63 = arith.addf %58, %62 : vector<16x16xf32>
    %64 = vector.shape_cast %54 : vector<2x8x16xf32> to vector<16x16xf32>
    %c2_33 = arith.constant 2 : index
    %c0_34 = arith.constant 0 : index
    %c0_35 = arith.constant 0 : index
    %65 = vector.load %arg6[%c2_33, %c0_34, %c0_35] : memref<3x16x16xf32, #tpu.memory_space<vmem>>, vector<1x16x16xf32>
    %66 = vector.shape_cast %65 : vector<1x16x16xf32> to vector<16x16xf32>
    %cst_36 = arith.constant dense<0.000000e+00> : vector<16x16xf32>
    %67 = tpu.matmul %64, %66, %cst_36 {dimension_numbers = #tpu.dot_dimension_numbers<[1], [0], [0], [1], [0, 0, 1, 1], [], []>} : vector<16x16xf32>, vector<16x16xf32>, vector<16x16xf32> -> vector<16x16xf32>
    %68 = arith.addf %63, %67 : vector<16x16xf32>
    %c0_37 = arith.constant 0 : index
    %c0_38 = arith.constant 0 : index
    %69 = vector.load %arg7[%c0_37, %c0_38] : memref<1x16xf32, #tpu.memory_space<vmem>>, vector<1x16xf32>
    %70 = vector.broadcast %69 : vector<1x16xf32> to vector<16x16xf32>
    %71 = arith.addf %68, %70 : vector<16x16xf32>
    %c0_39 = arith.constant 0 : index
    %c0_40 = arith.constant 0 : index
    %72 = vector.load %arg8[%c0_39, %c0_40] : memref<1x16xf32, #tpu.memory_space<vmem>>, vector<1x16xf32>
    %c0_41 = arith.constant 0 : index
    %c0_42 = arith.constant 0 : index
    %73 = vector.load %arg9[%c0_41, %c0_42] : memref<1x16xf32, #tpu.memory_space<vmem>>, vector<1x16xf32>
    %cst_43 = arith.constant dense<0.000000e+00> : vector<16xf32>
    %74 = vector.multi_reduction <add>, %71, %cst_43 [1] : vector<16x16xf32> to vector<16xf32>
    %75 = vector.shape_cast %74 : vector<16xf32> to vector<16x1xf32>
    %cst_44 = arith.constant 1.600000e+01 : f32
    %76 = vector.broadcast %cst_44 : f32 to vector<16x1xf32>
    %77 = arith.divf %75, %76 : vector<16x1xf32>
    %78 = vector.broadcast %77 : vector<16x1xf32> to vector<16x16xf32>
    %79 = arith.subf %71, %78 : vector<16x16xf32>
    %80 = arith.mulf %79, %79 : vector<16x16xf32>
    %cst_45 = arith.constant dense<0.000000e+00> : vector<16xf32>
    %81 = vector.multi_reduction <add>, %80, %cst_45 [1] : vector<16x16xf32> to vector<16xf32>
    %82 = vector.shape_cast %81 : vector<16xf32> to vector<16x1xf32>
    %cst_46 = arith.constant 1.600000e+01 : f32
    %83 = vector.broadcast %cst_46 : f32 to vector<16x1xf32>
    %84 = arith.divf %82, %83 : vector<16x1xf32>
    %85 = vector.broadcast %77 : vector<16x1xf32> to vector<16x16xf32>
    %86 = arith.subf %71, %85 : vector<16x16xf32>
    %cst_47 = arith.constant 9.99999974E-6 : f32
    %87 = vector.broadcast %cst_47 : f32 to vector<16x1xf32>
    %88 = arith.addf %84, %87 : vector<16x1xf32>
    %89 = math.rsqrt %88 : vector<16x1xf32>
    %90 = vector.broadcast %89 : vector<16x1xf32> to vector<16x16xf32>
    %91 = arith.mulf %86, %90 : vector<16x16xf32>
    %92 = vector.broadcast %72 : vector<1x16xf32> to vector<16x16xf32>
    %93 = arith.mulf %91, %92 : vector<16x16xf32>
    %94 = vector.broadcast %73 : vector<1x16xf32> to vector<16x16xf32>
    %95 = arith.addf %93, %94 : vector<16x16xf32>
    %cst_48 = arith.constant 0.000000e+00 : f32
    %96 = vector.broadcast %cst_48 : f32 to vector<16x16xf32>
    %97 = arith.maximumf %95, %96 : vector<16x16xf32>
    %98 = vector.shape_cast %97 : vector<16x16xf32> to vector<2x8x16xf32>
    %99 = arith.addf %98, %0 : vector<2x8x16xf32>
    %cst_49 = arith.constant 0.000000e+00 : f32
    %100 = vector.broadcast %cst_49 : f32 to vector<2x8x16xf32>
    %101 = arith.maximumf %99, %100 : vector<2x8x16xf32>
    %102 = vector.shape_cast %101 : vector<2x8x16xf32> to vector<16x16xf32>
    %c0_50 = arith.constant 0 : index
    %c0_51 = arith.constant 0 : index
    %103 = vector.load %arg10[%c0_50, %c0_51] : memref<16x128xf32, #tpu.memory_space<vmem>>, vector<16x128xf32>
    %cst_52 = arith.constant dense<0.000000e+00> : vector<16x128xf32>
    %104 = tpu.matmul %102, %103, %cst_52 {dimension_numbers = #tpu.dot_dimension_numbers<[1], [0], [0], [1], [0, 0, 1, 1], [], []>} : vector<16x16xf32>, vector<16x128xf32>, vector<16x128xf32> -> vector<16x128xf32>
    %c0_53 = arith.constant 0 : index
    %c0_54 = arith.constant 0 : index
    %105 = vector.load %arg12[%c0_53, %c0_54] : memref<1x128xf32, #tpu.memory_space<vmem>>, vector<1x128xf32>
    %106 = vector.broadcast %105 : vector<1x128xf32> to vector<16x128xf32>
    %107 = arith.addf %104, %106 : vector<16x128xf32>
    %108 = vector.shape_cast %107 : vector<16x128xf32> to vector<2x8x128xf32>
    %c0_55 = arith.constant 0 : index
    %c0_56 = arith.constant 0 : index
    %109 = vector.load %arg11[%c0_55, %c0_56] : memref<32x128xf32, #tpu.memory_space<vmem>>, vector<32x128xf32>
    %cst_57 = arith.constant 0.000000e+00 : f32
    %110 = vector.broadcast %cst_57 : f32 to vector<2x32xf32>
    %cst_58 = arith.constant 0.000000e+00 : f32
    %111 = vector.broadcast %cst_58 : f32 to vector<2x32xf32>
    %112 = vector.extract_strided_slice %108 {offsets = [0, 0, 0], sizes = [2, 1, 128], strides = [1, 1, 1]} : vector<2x8x128xf32> to vector<2x1x128xf32>
    %113 = vector.shape_cast %112 : vector<2x1x128xf32> to vector<2x128xf32>
    %cst_59 = arith.constant dense<0.000000e+00> : vector<2x128xf32>
    %114 = tpu.matmul %110, %109, %cst_59 {dimension_numbers = #tpu.dot_dimension_numbers<[1], [0], [0], [1], [0, 0, 1, 1], [], []>} : vector<2x32xf32>, vector<32x128xf32>, vector<2x128xf32> -> vector<2x128xf32>
    %115 = arith.addf %113, %114 : vector<2x128xf32>
    %116 = vector.extract_strided_slice %115 {offsets = [0, 0], sizes = [2, 32], strides = [1, 1]} : vector<2x128xf32> to vector<2x32xf32>
    %117 = arith.negf %116 : vector<2x32xf32>
    %118 = math.exp %117 : vector<2x32xf32>
    %cst_60 = arith.constant 1.000000e+00 : f32
    %119 = vector.broadcast %cst_60 : f32 to vector<2x32xf32>
    %120 = arith.addf %119, %118 : vector<2x32xf32>
    %121 = arith.divf %119, %120 : vector<2x32xf32>
    %122 = vector.extract_strided_slice %115 {offsets = [0, 32], sizes = [2, 32], strides = [1, 1]} : vector<2x128xf32> to vector<2x32xf32>
    %123 = arith.negf %122 : vector<2x32xf32>
    %124 = math.exp %123 : vector<2x32xf32>
    %cst_61 = arith.constant 1.000000e+00 : f32
    %125 = vector.broadcast %cst_61 : f32 to vector<2x32xf32>
    %126 = arith.addf %125, %124 : vector<2x32xf32>
    %127 = arith.divf %125, %126 : vector<2x32xf32>
    %128 = vector.extract_strided_slice %115 {offsets = [0, 64], sizes = [2, 32], strides = [1, 1]} : vector<2x128xf32> to vector<2x32xf32>
    %129 = math.tanh %128 : vector<2x32xf32>
    %130 = vector.extract_strided_slice %115 {offsets = [0, 96], sizes = [2, 32], strides = [1, 1]} : vector<2x128xf32> to vector<2x32xf32>
    %131 = arith.negf %130 : vector<2x32xf32>
    %132 = math.exp %131 : vector<2x32xf32>
    %cst_62 = arith.constant 1.000000e+00 : f32
    %133 = vector.broadcast %cst_62 : f32 to vector<2x32xf32>
    %134 = arith.addf %133, %132 : vector<2x32xf32>
    %135 = arith.divf %133, %134 : vector<2x32xf32>
    %136 = arith.mulf %127, %111 : vector<2x32xf32>
    %137 = arith.mulf %121, %129 : vector<2x32xf32>
    %138 = arith.addf %136, %137 : vector<2x32xf32>
    %139 = math.tanh %138 : vector<2x32xf32>
    %140 = arith.mulf %135, %139 : vector<2x32xf32>
    %141 = vector.extract_strided_slice %108 {offsets = [0, 1, 0], sizes = [2, 1, 128], strides = [1, 1, 1]} : vector<2x8x128xf32> to vector<2x1x128xf32>
    %142 = vector.shape_cast %141 : vector<2x1x128xf32> to vector<2x128xf32>
    %cst_63 = arith.constant dense<0.000000e+00> : vector<2x128xf32>
    %143 = tpu.matmul %140, %109, %cst_63 {dimension_numbers = #tpu.dot_dimension_numbers<[1], [0], [0], [1], [0, 0, 1, 1], [], []>} : vector<2x32xf32>, vector<32x128xf32>, vector<2x128xf32> -> vector<2x128xf32>
    %144 = arith.addf %142, %143 : vector<2x128xf32>
    %145 = vector.extract_strided_slice %144 {offsets = [0, 0], sizes = [2, 32], strides = [1, 1]} : vector<2x128xf32> to vector<2x32xf32>
    %146 = arith.negf %145 : vector<2x32xf32>
    %147 = math.exp %146 : vector<2x32xf32>
    %cst_64 = arith.constant 1.000000e+00 : f32
    %148 = vector.broadcast %cst_64 : f32 to vector<2x32xf32>
    %149 = arith.addf %148, %147 : vector<2x32xf32>
    %150 = arith.divf %148, %149 : vector<2x32xf32>
    %151 = vector.extract_strided_slice %144 {offsets = [0, 32], sizes = [2, 32], strides = [1, 1]} : vector<2x128xf32> to vector<2x32xf32>
    %152 = arith.negf %151 : vector<2x32xf32>
    %153 = math.exp %152 : vector<2x32xf32>
    %cst_65 = arith.constant 1.000000e+00 : f32
    %154 = vector.broadcast %cst_65 : f32 to vector<2x32xf32>
    %155 = arith.addf %154, %153 : vector<2x32xf32>
    %156 = arith.divf %154, %155 : vector<2x32xf32>
    %157 = vector.extract_strided_slice %144 {offsets = [0, 64], sizes = [2, 32], strides = [1, 1]} : vector<2x128xf32> to vector<2x32xf32>
    %158 = math.tanh %157 : vector<2x32xf32>
    %159 = vector.extract_strided_slice %144 {offsets = [0, 96], sizes = [2, 32], strides = [1, 1]} : vector<2x128xf32> to vector<2x32xf32>
    %160 = arith.negf %159 : vector<2x32xf32>
    %161 = math.exp %160 : vector<2x32xf32>
    %cst_66 = arith.constant 1.000000e+00 : f32
    %162 = vector.broadcast %cst_66 : f32 to vector<2x32xf32>
    %163 = arith.addf %162, %161 : vector<2x32xf32>
    %164 = arith.divf %162, %163 : vector<2x32xf32>
    %165 = arith.mulf %156, %138 : vector<2x32xf32>
    %166 = arith.mulf %150, %158 : vector<2x32xf32>
    %167 = arith.addf %165, %166 : vector<2x32xf32>
    %168 = math.tanh %167 : vector<2x32xf32>
    %169 = arith.mulf %164, %168 : vector<2x32xf32>
    %170 = vector.extract_strided_slice %108 {offsets = [0, 2, 0], sizes = [2, 1, 128], strides = [1, 1, 1]} : vector<2x8x128xf32> to vector<2x1x128xf32>
    %171 = vector.shape_cast %170 : vector<2x1x128xf32> to vector<2x128xf32>
    %cst_67 = arith.constant dense<0.000000e+00> : vector<2x128xf32>
    %172 = tpu.matmul %169, %109, %cst_67 {dimension_numbers = #tpu.dot_dimension_numbers<[1], [0], [0], [1], [0, 0, 1, 1], [], []>} : vector<2x32xf32>, vector<32x128xf32>, vector<2x128xf32> -> vector<2x128xf32>
    %173 = arith.addf %171, %172 : vector<2x128xf32>
    %174 = vector.extract_strided_slice %173 {offsets = [0, 0], sizes = [2, 32], strides = [1, 1]} : vector<2x128xf32> to vector<2x32xf32>
    %175 = arith.negf %174 : vector<2x32xf32>
    %176 = math.exp %175 : vector<2x32xf32>
    %cst_68 = arith.constant 1.000000e+00 : f32
    %177 = vector.broadcast %cst_68 : f32 to vector<2x32xf32>
    %178 = arith.addf %177, %176 : vector<2x32xf32>
    %179 = arith.divf %177, %178 : vector<2x32xf32>
    %180 = vector.extract_strided_slice %173 {offsets = [0, 32], sizes = [2, 32], strides = [1, 1]} : vector<2x128xf32> to vector<2x32xf32>
    %181 = arith.negf %180 : vector<2x32xf32>
    %182 = math.exp %181 : vector<2x32xf32>
    %cst_69 = arith.constant 1.000000e+00 : f32
    %183 = vector.broadcast %cst_69 : f32 to vector<2x32xf32>
    %184 = arith.addf %183, %182 : vector<2x32xf32>
    %185 = arith.divf %183, %184 : vector<2x32xf32>
    %186 = vector.extract_strided_slice %173 {offsets = [0, 64], sizes = [2, 32], strides = [1, 1]} : vector<2x128xf32> to vector<2x32xf32>
    %187 = math.tanh %186 : vector<2x32xf32>
    %188 = vector.extract_strided_slice %173 {offsets = [0, 96], sizes = [2, 32], strides = [1, 1]} : vector<2x128xf32> to vector<2x32xf32>
    %189 = arith.negf %188 : vector<2x32xf32>
    %190 = math.exp %189 : vector<2x32xf32>
    %cst_70 = arith.constant 1.000000e+00 : f32
    %191 = vector.broadcast %cst_70 : f32 to vector<2x32xf32>
    %192 = arith.addf %191, %190 : vector<2x32xf32>
    %193 = arith.divf %191, %192 : vector<2x32xf32>
    %194 = arith.mulf %185, %167 : vector<2x32xf32>
    %195 = arith.mulf %179, %187 : vector<2x32xf32>
    %196 = arith.addf %194, %195 : vector<2x32xf32>
    %197 = math.tanh %196 : vector<2x32xf32>
    %198 = arith.mulf %193, %197 : vector<2x32xf32>
    %199 = vector.extract_strided_slice %108 {offsets = [0, 3, 0], sizes = [2, 1, 128], strides = [1, 1, 1]} : vector<2x8x128xf32> to vector<2x1x128xf32>
    %200 = vector.shape_cast %199 : vector<2x1x128xf32> to vector<2x128xf32>
    %cst_71 = arith.constant dense<0.000000e+00> : vector<2x128xf32>
    %201 = tpu.matmul %198, %109, %cst_71 {dimension_numbers = #tpu.dot_dimension_numbers<[1], [0], [0], [1], [0, 0, 1, 1], [], []>} : vector<2x32xf32>, vector<32x128xf32>, vector<2x128xf32> -> vector<2x128xf32>
    %202 = arith.addf %200, %201 : vector<2x128xf32>
    %203 = vector.extract_strided_slice %202 {offsets = [0, 0], sizes = [2, 32], strides = [1, 1]} : vector<2x128xf32> to vector<2x32xf32>
    %204 = arith.negf %203 : vector<2x32xf32>
    %205 = math.exp %204 : vector<2x32xf32>
    %cst_72 = arith.constant 1.000000e+00 : f32
    %206 = vector.broadcast %cst_72 : f32 to vector<2x32xf32>
    %207 = arith.addf %206, %205 : vector<2x32xf32>
    %208 = arith.divf %206, %207 : vector<2x32xf32>
    %209 = vector.extract_strided_slice %202 {offsets = [0, 32], sizes = [2, 32], strides = [1, 1]} : vector<2x128xf32> to vector<2x32xf32>
    %210 = arith.negf %209 : vector<2x32xf32>
    %211 = math.exp %210 : vector<2x32xf32>
    %cst_73 = arith.constant 1.000000e+00 : f32
    %212 = vector.broadcast %cst_73 : f32 to vector<2x32xf32>
    %213 = arith.addf %212, %211 : vector<2x32xf32>
    %214 = arith.divf %212, %213 : vector<2x32xf32>
    %215 = vector.extract_strided_slice %202 {offsets = [0, 64], sizes = [2, 32], strides = [1, 1]} : vector<2x128xf32> to vector<2x32xf32>
    %216 = math.tanh %215 : vector<2x32xf32>
    %217 = vector.extract_strided_slice %202 {offsets = [0, 96], sizes = [2, 32], strides = [1, 1]} : vector<2x128xf32> to vector<2x32xf32>
    %218 = arith.negf %217 : vector<2x32xf32>
    %219 = math.exp %218 : vector<2x32xf32>
    %cst_74 = arith.constant 1.000000e+00 : f32
    %220 = vector.broadcast %cst_74 : f32 to vector<2x32xf32>
    %221 = arith.addf %220, %219 : vector<2x32xf32>
    %222 = arith.divf %220, %221 : vector<2x32xf32>
    %223 = arith.mulf %214, %196 : vector<2x32xf32>
    %224 = arith.mulf %208, %216 : vector<2x32xf32>
    %225 = arith.addf %223, %224 : vector<2x32xf32>
    %226 = math.tanh %225 : vector<2x32xf32>
    %227 = arith.mulf %222, %226 : vector<2x32xf32>
    %228 = vector.extract_strided_slice %108 {offsets = [0, 4, 0], sizes = [2, 1, 128], strides = [1, 1, 1]} : vector<2x8x128xf32> to vector<2x1x128xf32>
    %229 = vector.shape_cast %228 : vector<2x1x128xf32> to vector<2x128xf32>
    %cst_75 = arith.constant dense<0.000000e+00> : vector<2x128xf32>
    %230 = tpu.matmul %227, %109, %cst_75 {dimension_numbers = #tpu.dot_dimension_numbers<[1], [0], [0], [1], [0, 0, 1, 1], [], []>} : vector<2x32xf32>, vector<32x128xf32>, vector<2x128xf32> -> vector<2x128xf32>
    %231 = arith.addf %229, %230 : vector<2x128xf32>
    %232 = vector.extract_strided_slice %231 {offsets = [0, 0], sizes = [2, 32], strides = [1, 1]} : vector<2x128xf32> to vector<2x32xf32>
    %233 = arith.negf %232 : vector<2x32xf32>
    %234 = math.exp %233 : vector<2x32xf32>
    %cst_76 = arith.constant 1.000000e+00 : f32
    %235 = vector.broadcast %cst_76 : f32 to vector<2x32xf32>
    %236 = arith.addf %235, %234 : vector<2x32xf32>
    %237 = arith.divf %235, %236 : vector<2x32xf32>
    %238 = vector.extract_strided_slice %231 {offsets = [0, 32], sizes = [2, 32], strides = [1, 1]} : vector<2x128xf32> to vector<2x32xf32>
    %239 = arith.negf %238 : vector<2x32xf32>
    %240 = math.exp %239 : vector<2x32xf32>
    %cst_77 = arith.constant 1.000000e+00 : f32
    %241 = vector.broadcast %cst_77 : f32 to vector<2x32xf32>
    %242 = arith.addf %241, %240 : vector<2x32xf32>
    %243 = arith.divf %241, %242 : vector<2x32xf32>
    %244 = vector.extract_strided_slice %231 {offsets = [0, 64], sizes = [2, 32], strides = [1, 1]} : vector<2x128xf32> to vector<2x32xf32>
    %245 = math.tanh %244 : vector<2x32xf32>
    %246 = vector.extract_strided_slice %231 {offsets = [0, 96], sizes = [2, 32], strides = [1, 1]} : vector<2x128xf32> to vector<2x32xf32>
    %247 = arith.negf %246 : vector<2x32xf32>
    %248 = math.exp %247 : vector<2x32xf32>
    %cst_78 = arith.constant 1.000000e+00 : f32
    %249 = vector.broadcast %cst_78 : f32 to vector<2x32xf32>
    %250 = arith.addf %249, %248 : vector<2x32xf32>
    %251 = arith.divf %249, %250 : vector<2x32xf32>
    %252 = arith.mulf %243, %225 : vector<2x32xf32>
    %253 = arith.mulf %237, %245 : vector<2x32xf32>
    %254 = arith.addf %252, %253 : vector<2x32xf32>
    %255 = math.tanh %254 : vector<2x32xf32>
    %256 = arith.mulf %251, %255 : vector<2x32xf32>
    %257 = vector.extract_strided_slice %108 {offsets = [0, 5, 0], sizes = [2, 1, 128], strides = [1, 1, 1]} : vector<2x8x128xf32> to vector<2x1x128xf32>
    %258 = vector.shape_cast %257 : vector<2x1x128xf32> to vector<2x128xf32>
    %cst_79 = arith.constant dense<0.000000e+00> : vector<2x128xf32>
    %259 = tpu.matmul %256, %109, %cst_79 {dimension_numbers = #tpu.dot_dimension_numbers<[1], [0], [0], [1], [0, 0, 1, 1], [], []>} : vector<2x32xf32>, vector<32x128xf32>, vector<2x128xf32> -> vector<2x128xf32>
    %260 = arith.addf %258, %259 : vector<2x128xf32>
    %261 = vector.extract_strided_slice %260 {offsets = [0, 0], sizes = [2, 32], strides = [1, 1]} : vector<2x128xf32> to vector<2x32xf32>
    %262 = arith.negf %261 : vector<2x32xf32>
    %263 = math.exp %262 : vector<2x32xf32>
    %cst_80 = arith.constant 1.000000e+00 : f32
    %264 = vector.broadcast %cst_80 : f32 to vector<2x32xf32>
    %265 = arith.addf %264, %263 : vector<2x32xf32>
    %266 = arith.divf %264, %265 : vector<2x32xf32>
    %267 = vector.extract_strided_slice %260 {offsets = [0, 32], sizes = [2, 32], strides = [1, 1]} : vector<2x128xf32> to vector<2x32xf32>
    %268 = arith.negf %267 : vector<2x32xf32>
    %269 = math.exp %268 : vector<2x32xf32>
    %cst_81 = arith.constant 1.000000e+00 : f32
    %270 = vector.broadcast %cst_81 : f32 to vector<2x32xf32>
    %271 = arith.addf %270, %269 : vector<2x32xf32>
    %272 = arith.divf %270, %271 : vector<2x32xf32>
    %273 = vector.extract_strided_slice %260 {offsets = [0, 64], sizes = [2, 32], strides = [1, 1]} : vector<2x128xf32> to vector<2x32xf32>
    %274 = math.tanh %273 : vector<2x32xf32>
    %275 = vector.extract_strided_slice %260 {offsets = [0, 96], sizes = [2, 32], strides = [1, 1]} : vector<2x128xf32> to vector<2x32xf32>
    %276 = arith.negf %275 : vector<2x32xf32>
    %277 = math.exp %276 : vector<2x32xf32>
    %cst_82 = arith.constant 1.000000e+00 : f32
    %278 = vector.broadcast %cst_82 : f32 to vector<2x32xf32>
    %279 = arith.addf %278, %277 : vector<2x32xf32>
    %280 = arith.divf %278, %279 : vector<2x32xf32>
    %281 = arith.mulf %272, %254 : vector<2x32xf32>
    %282 = arith.mulf %266, %274 : vector<2x32xf32>
    %283 = arith.addf %281, %282 : vector<2x32xf32>
    %284 = math.tanh %283 : vector<2x32xf32>
    %285 = arith.mulf %280, %284 : vector<2x32xf32>
    %286 = vector.extract_strided_slice %108 {offsets = [0, 6, 0], sizes = [2, 1, 128], strides = [1, 1, 1]} : vector<2x8x128xf32> to vector<2x1x128xf32>
    %287 = vector.shape_cast %286 : vector<2x1x128xf32> to vector<2x128xf32>
    %cst_83 = arith.constant dense<0.000000e+00> : vector<2x128xf32>
    %288 = tpu.matmul %285, %109, %cst_83 {dimension_numbers = #tpu.dot_dimension_numbers<[1], [0], [0], [1], [0, 0, 1, 1], [], []>} : vector<2x32xf32>, vector<32x128xf32>, vector<2x128xf32> -> vector<2x128xf32>
    %289 = arith.addf %287, %288 : vector<2x128xf32>
    %290 = vector.extract_strided_slice %289 {offsets = [0, 0], sizes = [2, 32], strides = [1, 1]} : vector<2x128xf32> to vector<2x32xf32>
    %291 = arith.negf %290 : vector<2x32xf32>
    %292 = math.exp %291 : vector<2x32xf32>
    %cst_84 = arith.constant 1.000000e+00 : f32
    %293 = vector.broadcast %cst_84 : f32 to vector<2x32xf32>
    %294 = arith.addf %293, %292 : vector<2x32xf32>
    %295 = arith.divf %293, %294 : vector<2x32xf32>
    %296 = vector.extract_strided_slice %289 {offsets = [0, 32], sizes = [2, 32], strides = [1, 1]} : vector<2x128xf32> to vector<2x32xf32>
    %297 = arith.negf %296 : vector<2x32xf32>
    %298 = math.exp %297 : vector<2x32xf32>
    %cst_85 = arith.constant 1.000000e+00 : f32
    %299 = vector.broadcast %cst_85 : f32 to vector<2x32xf32>
    %300 = arith.addf %299, %298 : vector<2x32xf32>
    %301 = arith.divf %299, %300 : vector<2x32xf32>
    %302 = vector.extract_strided_slice %289 {offsets = [0, 64], sizes = [2, 32], strides = [1, 1]} : vector<2x128xf32> to vector<2x32xf32>
    %303 = math.tanh %302 : vector<2x32xf32>
    %304 = vector.extract_strided_slice %289 {offsets = [0, 96], sizes = [2, 32], strides = [1, 1]} : vector<2x128xf32> to vector<2x32xf32>
    %305 = arith.negf %304 : vector<2x32xf32>
    %306 = math.exp %305 : vector<2x32xf32>
    %cst_86 = arith.constant 1.000000e+00 : f32
    %307 = vector.broadcast %cst_86 : f32 to vector<2x32xf32>
    %308 = arith.addf %307, %306 : vector<2x32xf32>
    %309 = arith.divf %307, %308 : vector<2x32xf32>
    %310 = arith.mulf %301, %283 : vector<2x32xf32>
    %311 = arith.mulf %295, %303 : vector<2x32xf32>
    %312 = arith.addf %310, %311 : vector<2x32xf32>
    %313 = math.tanh %312 : vector<2x32xf32>
    %314 = arith.mulf %309, %313 : vector<2x32xf32>
    %315 = vector.extract_strided_slice %108 {offsets = [0, 7, 0], sizes = [2, 1, 128], strides = [1, 1, 1]} : vector<2x8x128xf32> to vector<2x1x128xf32>
    %316 = vector.shape_cast %315 : vector<2x1x128xf32> to vector<2x128xf32>
    %cst_87 = arith.constant dense<0.000000e+00> : vector<2x128xf32>
    %317 = tpu.matmul %314, %109, %cst_87 {dimension_numbers = #tpu.dot_dimension_numbers<[1], [0], [0], [1], [0, 0, 1, 1], [], []>} : vector<2x32xf32>, vector<32x128xf32>, vector<2x128xf32> -> vector<2x128xf32>
    %318 = arith.addf %316, %317 : vector<2x128xf32>
    %319 = vector.extract_strided_slice %318 {offsets = [0, 0], sizes = [2, 32], strides = [1, 1]} : vector<2x128xf32> to vector<2x32xf32>
    %320 = arith.negf %319 : vector<2x32xf32>
    %321 = math.exp %320 : vector<2x32xf32>
    %cst_88 = arith.constant 1.000000e+00 : f32
    %322 = vector.broadcast %cst_88 : f32 to vector<2x32xf32>
    %323 = arith.addf %322, %321 : vector<2x32xf32>
    %324 = arith.divf %322, %323 : vector<2x32xf32>
    %325 = vector.extract_strided_slice %318 {offsets = [0, 32], sizes = [2, 32], strides = [1, 1]} : vector<2x128xf32> to vector<2x32xf32>
    %326 = arith.negf %325 : vector<2x32xf32>
    %327 = math.exp %326 : vector<2x32xf32>
    %cst_89 = arith.constant 1.000000e+00 : f32
    %328 = vector.broadcast %cst_89 : f32 to vector<2x32xf32>
    %329 = arith.addf %328, %327 : vector<2x32xf32>
    %330 = arith.divf %328, %329 : vector<2x32xf32>
    %331 = vector.extract_strided_slice %318 {offsets = [0, 64], sizes = [2, 32], strides = [1, 1]} : vector<2x128xf32> to vector<2x32xf32>
    %332 = math.tanh %331 : vector<2x32xf32>
    %333 = vector.extract_strided_slice %318 {offsets = [0, 96], sizes = [2, 32], strides = [1, 1]} : vector<2x128xf32> to vector<2x32xf32>
    %334 = arith.negf %333 : vector<2x32xf32>
    %335 = math.exp %334 : vector<2x32xf32>
    %cst_90 = arith.constant 1.000000e+00 : f32
    %336 = vector.broadcast %cst_90 : f32 to vector<2x32xf32>
    %337 = arith.addf %336, %335 : vector<2x32xf32>
    %338 = arith.divf %336, %337 : vector<2x32xf32>
    %339 = arith.mulf %330, %312 : vector<2x32xf32>
    %340 = arith.mulf %324, %332 : vector<2x32xf32>
    %341 = arith.addf %339, %340 : vector<2x32xf32>
    %342 = math.tanh %341 : vector<2x32xf32>
    %343 = arith.mulf %338, %342 : vector<2x32xf32>
    %344 = vector.shape_cast %140 : vector<2x32xf32> to vector<2x1x32xf32>
    %345 = vector.shape_cast %169 : vector<2x32xf32> to vector<2x1x32xf32>
    %346 = vector.shape_cast %198 : vector<2x32xf32> to vector<2x1x32xf32>
    %347 = vector.shape_cast %227 : vector<2x32xf32> to vector<2x1x32xf32>
    %348 = vector.shape_cast %256 : vector<2x32xf32> to vector<2x1x32xf32>
    %349 = vector.shape_cast %285 : vector<2x32xf32> to vector<2x1x32xf32>
    %350 = vector.shape_cast %314 : vector<2x32xf32> to vector<2x1x32xf32>
    %351 = vector.shape_cast %343 : vector<2x32xf32> to vector<2x1x32xf32>
    %352 = tpu.concatenate %344, %345, %346, %347, %348, %349, %350, %351 in 1 : vector<2x1x32xf32>, vector<2x1x32xf32>, vector<2x1x32xf32>, vector<2x1x32xf32>, vector<2x1x32xf32>, vector<2x1x32xf32>, vector<2x1x32xf32>, vector<2x1x32xf32> -> vector<2x8x32xf32>
    %353 = vector.shape_cast %352 : vector<2x8x32xf32> to vector<16x32xf32>
    %c0_91 = arith.constant 0 : index
    %c0_92 = arith.constant 0 : index
    %354 = vector.load %arg13[%c0_91, %c0_92] : memref<32x128xf32, #tpu.memory_space<vmem>>, vector<32x128xf32>
    %cst_93 = arith.constant dense<0.000000e+00> : vector<16x128xf32>
    %355 = tpu.matmul %353, %354, %cst_93 {dimension_numbers = #tpu.dot_dimension_numbers<[1], [0], [0], [1], [0, 0, 1, 1], [], []>} : vector<16x32xf32>, vector<32x128xf32>, vector<16x128xf32> -> vector<16x128xf32>
    %c0_94 = arith.constant 0 : index
    %c0_95 = arith.constant 0 : index
    %356 = vector.load %arg15[%c0_94, %c0_95] : memref<1x128xf32, #tpu.memory_space<vmem>>, vector<1x128xf32>
    %357 = vector.broadcast %356 : vector<1x128xf32> to vector<16x128xf32>
    %358 = arith.addf %355, %357 : vector<16x128xf32>
    %359 = vector.shape_cast %358 : vector<16x128xf32> to vector<2x8x128xf32>
    %c0_96 = arith.constant 0 : index
    %c0_97 = arith.constant 0 : index
    %360 = vector.load %arg14[%c0_96, %c0_97] : memref<32x128xf32, #tpu.memory_space<vmem>>, vector<32x128xf32>
    %cst_98 = arith.constant 0.000000e+00 : f32
    %361 = vector.broadcast %cst_98 : f32 to vector<2x32xf32>
    %cst_99 = arith.constant 0.000000e+00 : f32
    %362 = vector.broadcast %cst_99 : f32 to vector<2x32xf32>
    %363 = vector.extract_strided_slice %359 {offsets = [0, 0, 0], sizes = [2, 1, 128], strides = [1, 1, 1]} : vector<2x8x128xf32> to vector<2x1x128xf32>
    %364 = vector.shape_cast %363 : vector<2x1x128xf32> to vector<2x128xf32>
    %cst_100 = arith.constant dense<0.000000e+00> : vector<2x128xf32>
    %365 = tpu.matmul %361, %360, %cst_100 {dimension_numbers = #tpu.dot_dimension_numbers<[1], [0], [0], [1], [0, 0, 1, 1], [], []>} : vector<2x32xf32>, vector<32x128xf32>, vector<2x128xf32> -> vector<2x128xf32>
    %366 = arith.addf %364, %365 : vector<2x128xf32>
    %367 = vector.extract_strided_slice %366 {offsets = [0, 0], sizes = [2, 32], strides = [1, 1]} : vector<2x128xf32> to vector<2x32xf32>
    %368 = arith.negf %367 : vector<2x32xf32>
    %369 = math.exp %368 : vector<2x32xf32>
    %cst_101 = arith.constant 1.000000e+00 : f32
    %370 = vector.broadcast %cst_101 : f32 to vector<2x32xf32>
    %371 = arith.addf %370, %369 : vector<2x32xf32>
    %372 = arith.divf %370, %371 : vector<2x32xf32>
    %373 = vector.extract_strided_slice %366 {offsets = [0, 32], sizes = [2, 32], strides = [1, 1]} : vector<2x128xf32> to vector<2x32xf32>
    %374 = arith.negf %373 : vector<2x32xf32>
    %375 = math.exp %374 : vector<2x32xf32>
    %cst_102 = arith.constant 1.000000e+00 : f32
    %376 = vector.broadcast %cst_102 : f32 to vector<2x32xf32>
    %377 = arith.addf %376, %375 : vector<2x32xf32>
    %378 = arith.divf %376, %377 : vector<2x32xf32>
    %379 = vector.extract_strided_slice %366 {offsets = [0, 64], sizes = [2, 32], strides = [1, 1]} : vector<2x128xf32> to vector<2x32xf32>
    %380 = math.tanh %379 : vector<2x32xf32>
    %381 = vector.extract_strided_slice %366 {offsets = [0, 96], sizes = [2, 32], strides = [1, 1]} : vector<2x128xf32> to vector<2x32xf32>
    %382 = arith.negf %381 : vector<2x32xf32>
    %383 = math.exp %382 : vector<2x32xf32>
    %cst_103 = arith.constant 1.000000e+00 : f32
    %384 = vector.broadcast %cst_103 : f32 to vector<2x32xf32>
    %385 = arith.addf %384, %383 : vector<2x32xf32>
    %386 = arith.divf %384, %385 : vector<2x32xf32>
    %387 = arith.mulf %378, %362 : vector<2x32xf32>
    %388 = arith.mulf %372, %380 : vector<2x32xf32>
    %389 = arith.addf %387, %388 : vector<2x32xf32>
    %390 = math.tanh %389 : vector<2x32xf32>
    %391 = arith.mulf %386, %390 : vector<2x32xf32>
    %392 = vector.extract_strided_slice %359 {offsets = [0, 1, 0], sizes = [2, 1, 128], strides = [1, 1, 1]} : vector<2x8x128xf32> to vector<2x1x128xf32>
    %393 = vector.shape_cast %392 : vector<2x1x128xf32> to vector<2x128xf32>
    %cst_104 = arith.constant dense<0.000000e+00> : vector<2x128xf32>
    %394 = tpu.matmul %391, %360, %cst_104 {dimension_numbers = #tpu.dot_dimension_numbers<[1], [0], [0], [1], [0, 0, 1, 1], [], []>} : vector<2x32xf32>, vector<32x128xf32>, vector<2x128xf32> -> vector<2x128xf32>
    %395 = arith.addf %393, %394 : vector<2x128xf32>
    %396 = vector.extract_strided_slice %395 {offsets = [0, 0], sizes = [2, 32], strides = [1, 1]} : vector<2x128xf32> to vector<2x32xf32>
    %397 = arith.negf %396 : vector<2x32xf32>
    %398 = math.exp %397 : vector<2x32xf32>
    %cst_105 = arith.constant 1.000000e+00 : f32
    %399 = vector.broadcast %cst_105 : f32 to vector<2x32xf32>
    %400 = arith.addf %399, %398 : vector<2x32xf32>
    %401 = arith.divf %399, %400 : vector<2x32xf32>
    %402 = vector.extract_strided_slice %395 {offsets = [0, 32], sizes = [2, 32], strides = [1, 1]} : vector<2x128xf32> to vector<2x32xf32>
    %403 = arith.negf %402 : vector<2x32xf32>
    %404 = math.exp %403 : vector<2x32xf32>
    %cst_106 = arith.constant 1.000000e+00 : f32
    %405 = vector.broadcast %cst_106 : f32 to vector<2x32xf32>
    %406 = arith.addf %405, %404 : vector<2x32xf32>
    %407 = arith.divf %405, %406 : vector<2x32xf32>
    %408 = vector.extract_strided_slice %395 {offsets = [0, 64], sizes = [2, 32], strides = [1, 1]} : vector<2x128xf32> to vector<2x32xf32>
    %409 = math.tanh %408 : vector<2x32xf32>
    %410 = vector.extract_strided_slice %395 {offsets = [0, 96], sizes = [2, 32], strides = [1, 1]} : vector<2x128xf32> to vector<2x32xf32>
    %411 = arith.negf %410 : vector<2x32xf32>
    %412 = math.exp %411 : vector<2x32xf32>
    %cst_107 = arith.constant 1.000000e+00 : f32
    %413 = vector.broadcast %cst_107 : f32 to vector<2x32xf32>
    %414 = arith.addf %413, %412 : vector<2x32xf32>
    %415 = arith.divf %413, %414 : vector<2x32xf32>
    %416 = arith.mulf %407, %389 : vector<2x32xf32>
    %417 = arith.mulf %401, %409 : vector<2x32xf32>
    %418 = arith.addf %416, %417 : vector<2x32xf32>
    %419 = math.tanh %418 : vector<2x32xf32>
    %420 = arith.mulf %415, %419 : vector<2x32xf32>
    %421 = vector.extract_strided_slice %359 {offsets = [0, 2, 0], sizes = [2, 1, 128], strides = [1, 1, 1]} : vector<2x8x128xf32> to vector<2x1x128xf32>
    %422 = vector.shape_cast %421 : vector<2x1x128xf32> to vector<2x128xf32>
    %cst_108 = arith.constant dense<0.000000e+00> : vector<2x128xf32>
    %423 = tpu.matmul %420, %360, %cst_108 {dimension_numbers = #tpu.dot_dimension_numbers<[1], [0], [0], [1], [0, 0, 1, 1], [], []>} : vector<2x32xf32>, vector<32x128xf32>, vector<2x128xf32> -> vector<2x128xf32>
    %424 = arith.addf %422, %423 : vector<2x128xf32>
    %425 = vector.extract_strided_slice %424 {offsets = [0, 0], sizes = [2, 32], strides = [1, 1]} : vector<2x128xf32> to vector<2x32xf32>
    %426 = arith.negf %425 : vector<2x32xf32>
    %427 = math.exp %426 : vector<2x32xf32>
    %cst_109 = arith.constant 1.000000e+00 : f32
    %428 = vector.broadcast %cst_109 : f32 to vector<2x32xf32>
    %429 = arith.addf %428, %427 : vector<2x32xf32>
    %430 = arith.divf %428, %429 : vector<2x32xf32>
    %431 = vector.extract_strided_slice %424 {offsets = [0, 32], sizes = [2, 32], strides = [1, 1]} : vector<2x128xf32> to vector<2x32xf32>
    %432 = arith.negf %431 : vector<2x32xf32>
    %433 = math.exp %432 : vector<2x32xf32>
    %cst_110 = arith.constant 1.000000e+00 : f32
    %434 = vector.broadcast %cst_110 : f32 to vector<2x32xf32>
    %435 = arith.addf %434, %433 : vector<2x32xf32>
    %436 = arith.divf %434, %435 : vector<2x32xf32>
    %437 = vector.extract_strided_slice %424 {offsets = [0, 64], sizes = [2, 32], strides = [1, 1]} : vector<2x128xf32> to vector<2x32xf32>
    %438 = math.tanh %437 : vector<2x32xf32>
    %439 = vector.extract_strided_slice %424 {offsets = [0, 96], sizes = [2, 32], strides = [1, 1]} : vector<2x128xf32> to vector<2x32xf32>
    %440 = arith.negf %439 : vector<2x32xf32>
    %441 = math.exp %440 : vector<2x32xf32>
    %cst_111 = arith.constant 1.000000e+00 : f32
    %442 = vector.broadcast %cst_111 : f32 to vector<2x32xf32>
    %443 = arith.addf %442, %441 : vector<2x32xf32>
    %444 = arith.divf %442, %443 : vector<2x32xf32>
    %445 = arith.mulf %436, %418 : vector<2x32xf32>
    %446 = arith.mulf %430, %438 : vector<2x32xf32>
    %447 = arith.addf %445, %446 : vector<2x32xf32>
    %448 = math.tanh %447 : vector<2x32xf32>
    %449 = arith.mulf %444, %448 : vector<2x32xf32>
    %450 = vector.extract_strided_slice %359 {offsets = [0, 3, 0], sizes = [2, 1, 128], strides = [1, 1, 1]} : vector<2x8x128xf32> to vector<2x1x128xf32>
    %451 = vector.shape_cast %450 : vector<2x1x128xf32> to vector<2x128xf32>
    %cst_112 = arith.constant dense<0.000000e+00> : vector<2x128xf32>
    %452 = tpu.matmul %449, %360, %cst_112 {dimension_numbers = #tpu.dot_dimension_numbers<[1], [0], [0], [1], [0, 0, 1, 1], [], []>} : vector<2x32xf32>, vector<32x128xf32>, vector<2x128xf32> -> vector<2x128xf32>
    %453 = arith.addf %451, %452 : vector<2x128xf32>
    %454 = vector.extract_strided_slice %453 {offsets = [0, 0], sizes = [2, 32], strides = [1, 1]} : vector<2x128xf32> to vector<2x32xf32>
    %455 = arith.negf %454 : vector<2x32xf32>
    %456 = math.exp %455 : vector<2x32xf32>
    %cst_113 = arith.constant 1.000000e+00 : f32
    %457 = vector.broadcast %cst_113 : f32 to vector<2x32xf32>
    %458 = arith.addf %457, %456 : vector<2x32xf32>
    %459 = arith.divf %457, %458 : vector<2x32xf32>
    %460 = vector.extract_strided_slice %453 {offsets = [0, 32], sizes = [2, 32], strides = [1, 1]} : vector<2x128xf32> to vector<2x32xf32>
    %461 = arith.negf %460 : vector<2x32xf32>
    %462 = math.exp %461 : vector<2x32xf32>
    %cst_114 = arith.constant 1.000000e+00 : f32
    %463 = vector.broadcast %cst_114 : f32 to vector<2x32xf32>
    %464 = arith.addf %463, %462 : vector<2x32xf32>
    %465 = arith.divf %463, %464 : vector<2x32xf32>
    %466 = vector.extract_strided_slice %453 {offsets = [0, 64], sizes = [2, 32], strides = [1, 1]} : vector<2x128xf32> to vector<2x32xf32>
    %467 = math.tanh %466 : vector<2x32xf32>
    %468 = vector.extract_strided_slice %453 {offsets = [0, 96], sizes = [2, 32], strides = [1, 1]} : vector<2x128xf32> to vector<2x32xf32>
    %469 = arith.negf %468 : vector<2x32xf32>
    %470 = math.exp %469 : vector<2x32xf32>
    %cst_115 = arith.constant 1.000000e+00 : f32
    %471 = vector.broadcast %cst_115 : f32 to vector<2x32xf32>
    %472 = arith.addf %471, %470 : vector<2x32xf32>
    %473 = arith.divf %471, %472 : vector<2x32xf32>
    %474 = arith.mulf %465, %447 : vector<2x32xf32>
    %475 = arith.mulf %459, %467 : vector<2x32xf32>
    %476 = arith.addf %474, %475 : vector<2x32xf32>
    %477 = math.tanh %476 : vector<2x32xf32>
    %478 = arith.mulf %473, %477 : vector<2x32xf32>
    %479 = vector.extract_strided_slice %359 {offsets = [0, 4, 0], sizes = [2, 1, 128], strides = [1, 1, 1]} : vector<2x8x128xf32> to vector<2x1x128xf32>
    %480 = vector.shape_cast %479 : vector<2x1x128xf32> to vector<2x128xf32>
    %cst_116 = arith.constant dense<0.000000e+00> : vector<2x128xf32>
    %481 = tpu.matmul %478, %360, %cst_116 {dimension_numbers = #tpu.dot_dimension_numbers<[1], [0], [0], [1], [0, 0, 1, 1], [], []>} : vector<2x32xf32>, vector<32x128xf32>, vector<2x128xf32> -> vector<2x128xf32>
    %482 = arith.addf %480, %481 : vector<2x128xf32>
    %483 = vector.extract_strided_slice %482 {offsets = [0, 0], sizes = [2, 32], strides = [1, 1]} : vector<2x128xf32> to vector<2x32xf32>
    %484 = arith.negf %483 : vector<2x32xf32>
    %485 = math.exp %484 : vector<2x32xf32>
    %cst_117 = arith.constant 1.000000e+00 : f32
    %486 = vector.broadcast %cst_117 : f32 to vector<2x32xf32>
    %487 = arith.addf %486, %485 : vector<2x32xf32>
    %488 = arith.divf %486, %487 : vector<2x32xf32>
    %489 = vector.extract_strided_slice %482 {offsets = [0, 32], sizes = [2, 32], strides = [1, 1]} : vector<2x128xf32> to vector<2x32xf32>
    %490 = arith.negf %489 : vector<2x32xf32>
    %491 = math.exp %490 : vector<2x32xf32>
    %cst_118 = arith.constant 1.000000e+00 : f32
    %492 = vector.broadcast %cst_118 : f32 to vector<2x32xf32>
    %493 = arith.addf %492, %491 : vector<2x32xf32>
    %494 = arith.divf %492, %493 : vector<2x32xf32>
    %495 = vector.extract_strided_slice %482 {offsets = [0, 64], sizes = [2, 32], strides = [1, 1]} : vector<2x128xf32> to vector<2x32xf32>
    %496 = math.tanh %495 : vector<2x32xf32>
    %497 = vector.extract_strided_slice %482 {offsets = [0, 96], sizes = [2, 32], strides = [1, 1]} : vector<2x128xf32> to vector<2x32xf32>
    %498 = arith.negf %497 : vector<2x32xf32>
    %499 = math.exp %498 : vector<2x32xf32>
    %cst_119 = arith.constant 1.000000e+00 : f32
    %500 = vector.broadcast %cst_119 : f32 to vector<2x32xf32>
    %501 = arith.addf %500, %499 : vector<2x32xf32>
    %502 = arith.divf %500, %501 : vector<2x32xf32>
    %503 = arith.mulf %494, %476 : vector<2x32xf32>
    %504 = arith.mulf %488, %496 : vector<2x32xf32>
    %505 = arith.addf %503, %504 : vector<2x32xf32>
    %506 = math.tanh %505 : vector<2x32xf32>
    %507 = arith.mulf %502, %506 : vector<2x32xf32>
    %508 = vector.extract_strided_slice %359 {offsets = [0, 5, 0], sizes = [2, 1, 128], strides = [1, 1, 1]} : vector<2x8x128xf32> to vector<2x1x128xf32>
    %509 = vector.shape_cast %508 : vector<2x1x128xf32> to vector<2x128xf32>
    %cst_120 = arith.constant dense<0.000000e+00> : vector<2x128xf32>
    %510 = tpu.matmul %507, %360, %cst_120 {dimension_numbers = #tpu.dot_dimension_numbers<[1], [0], [0], [1], [0, 0, 1, 1], [], []>} : vector<2x32xf32>, vector<32x128xf32>, vector<2x128xf32> -> vector<2x128xf32>
    %511 = arith.addf %509, %510 : vector<2x128xf32>
    %512 = vector.extract_strided_slice %511 {offsets = [0, 0], sizes = [2, 32], strides = [1, 1]} : vector<2x128xf32> to vector<2x32xf32>
    %513 = arith.negf %512 : vector<2x32xf32>
    %514 = math.exp %513 : vector<2x32xf32>
    %cst_121 = arith.constant 1.000000e+00 : f32
    %515 = vector.broadcast %cst_121 : f32 to vector<2x32xf32>
    %516 = arith.addf %515, %514 : vector<2x32xf32>
    %517 = arith.divf %515, %516 : vector<2x32xf32>
    %518 = vector.extract_strided_slice %511 {offsets = [0, 32], sizes = [2, 32], strides = [1, 1]} : vector<2x128xf32> to vector<2x32xf32>
    %519 = arith.negf %518 : vector<2x32xf32>
    %520 = math.exp %519 : vector<2x32xf32>
    %cst_122 = arith.constant 1.000000e+00 : f32
    %521 = vector.broadcast %cst_122 : f32 to vector<2x32xf32>
    %522 = arith.addf %521, %520 : vector<2x32xf32>
    %523 = arith.divf %521, %522 : vector<2x32xf32>
    %524 = vector.extract_strided_slice %511 {offsets = [0, 64], sizes = [2, 32], strides = [1, 1]} : vector<2x128xf32> to vector<2x32xf32>
    %525 = math.tanh %524 : vector<2x32xf32>
    %526 = vector.extract_strided_slice %511 {offsets = [0, 96], sizes = [2, 32], strides = [1, 1]} : vector<2x128xf32> to vector<2x32xf32>
    %527 = arith.negf %526 : vector<2x32xf32>
    %528 = math.exp %527 : vector<2x32xf32>
    %cst_123 = arith.constant 1.000000e+00 : f32
    %529 = vector.broadcast %cst_123 : f32 to vector<2x32xf32>
    %530 = arith.addf %529, %528 : vector<2x32xf32>
    %531 = arith.divf %529, %530 : vector<2x32xf32>
    %532 = arith.mulf %523, %505 : vector<2x32xf32>
    %533 = arith.mulf %517, %525 : vector<2x32xf32>
    %534 = arith.addf %532, %533 : vector<2x32xf32>
    %535 = math.tanh %534 : vector<2x32xf32>
    %536 = arith.mulf %531, %535 : vector<2x32xf32>
    %537 = vector.extract_strided_slice %359 {offsets = [0, 6, 0], sizes = [2, 1, 128], strides = [1, 1, 1]} : vector<2x8x128xf32> to vector<2x1x128xf32>
    %538 = vector.shape_cast %537 : vector<2x1x128xf32> to vector<2x128xf32>
    %cst_124 = arith.constant dense<0.000000e+00> : vector<2x128xf32>
    %539 = tpu.matmul %536, %360, %cst_124 {dimension_numbers = #tpu.dot_dimension_numbers<[1], [0], [0], [1], [0, 0, 1, 1], [], []>} : vector<2x32xf32>, vector<32x128xf32>, vector<2x128xf32> -> vector<2x128xf32>
    %540 = arith.addf %538, %539 : vector<2x128xf32>
    %541 = vector.extract_strided_slice %540 {offsets = [0, 0], sizes = [2, 32], strides = [1, 1]} : vector<2x128xf32> to vector<2x32xf32>
    %542 = arith.negf %541 : vector<2x32xf32>
    %543 = math.exp %542 : vector<2x32xf32>
    %cst_125 = arith.constant 1.000000e+00 : f32
    %544 = vector.broadcast %cst_125 : f32 to vector<2x32xf32>
    %545 = arith.addf %544, %543 : vector<2x32xf32>
    %546 = arith.divf %544, %545 : vector<2x32xf32>
    %547 = vector.extract_strided_slice %540 {offsets = [0, 32], sizes = [2, 32], strides = [1, 1]} : vector<2x128xf32> to vector<2x32xf32>
    %548 = arith.negf %547 : vector<2x32xf32>
    %549 = math.exp %548 : vector<2x32xf32>
    %cst_126 = arith.constant 1.000000e+00 : f32
    %550 = vector.broadcast %cst_126 : f32 to vector<2x32xf32>
    %551 = arith.addf %550, %549 : vector<2x32xf32>
    %552 = arith.divf %550, %551 : vector<2x32xf32>
    %553 = vector.extract_strided_slice %540 {offsets = [0, 64], sizes = [2, 32], strides = [1, 1]} : vector<2x128xf32> to vector<2x32xf32>
    %554 = math.tanh %553 : vector<2x32xf32>
    %555 = vector.extract_strided_slice %540 {offsets = [0, 96], sizes = [2, 32], strides = [1, 1]} : vector<2x128xf32> to vector<2x32xf32>
    %556 = arith.negf %555 : vector<2x32xf32>
    %557 = math.exp %556 : vector<2x32xf32>
    %cst_127 = arith.constant 1.000000e+00 : f32
    %558 = vector.broadcast %cst_127 : f32 to vector<2x32xf32>
    %559 = arith.addf %558, %557 : vector<2x32xf32>
    %560 = arith.divf %558, %559 : vector<2x32xf32>
    %561 = arith.mulf %552, %534 : vector<2x32xf32>
    %562 = arith.mulf %546, %554 : vector<2x32xf32>
    %563 = arith.addf %561, %562 : vector<2x32xf32>
    %564 = math.tanh %563 : vector<2x32xf32>
    %565 = arith.mulf %560, %564 : vector<2x32xf32>
    %566 = vector.extract_strided_slice %359 {offsets = [0, 7, 0], sizes = [2, 1, 128], strides = [1, 1, 1]} : vector<2x8x128xf32> to vector<2x1x128xf32>
    %567 = vector.shape_cast %566 : vector<2x1x128xf32> to vector<2x128xf32>
    %cst_128 = arith.constant dense<0.000000e+00> : vector<2x128xf32>
    %568 = tpu.matmul %565, %360, %cst_128 {dimension_numbers = #tpu.dot_dimension_numbers<[1], [0], [0], [1], [0, 0, 1, 1], [], []>} : vector<2x32xf32>, vector<32x128xf32>, vector<2x128xf32> -> vector<2x128xf32>
    %569 = arith.addf %567, %568 : vector<2x128xf32>
    %570 = vector.extract_strided_slice %569 {offsets = [0, 0], sizes = [2, 32], strides = [1, 1]} : vector<2x128xf32> to vector<2x32xf32>
    %571 = arith.negf %570 : vector<2x32xf32>
    %572 = math.exp %571 : vector<2x32xf32>
    %cst_129 = arith.constant 1.000000e+00 : f32
    %573 = vector.broadcast %cst_129 : f32 to vector<2x32xf32>
    %574 = arith.addf %573, %572 : vector<2x32xf32>
    %575 = arith.divf %573, %574 : vector<2x32xf32>
    %576 = vector.extract_strided_slice %569 {offsets = [0, 32], sizes = [2, 32], strides = [1, 1]} : vector<2x128xf32> to vector<2x32xf32>
    %577 = arith.negf %576 : vector<2x32xf32>
    %578 = math.exp %577 : vector<2x32xf32>
    %cst_130 = arith.constant 1.000000e+00 : f32
    %579 = vector.broadcast %cst_130 : f32 to vector<2x32xf32>
    %580 = arith.addf %579, %578 : vector<2x32xf32>
    %581 = arith.divf %579, %580 : vector<2x32xf32>
    %582 = vector.extract_strided_slice %569 {offsets = [0, 64], sizes = [2, 32], strides = [1, 1]} : vector<2x128xf32> to vector<2x32xf32>
    %583 = math.tanh %582 : vector<2x32xf32>
    %584 = vector.extract_strided_slice %569 {offsets = [0, 96], sizes = [2, 32], strides = [1, 1]} : vector<2x128xf32> to vector<2x32xf32>
    %585 = arith.negf %584 : vector<2x32xf32>
    %586 = math.exp %585 : vector<2x32xf32>
    %cst_131 = arith.constant 1.000000e+00 : f32
    %587 = vector.broadcast %cst_131 : f32 to vector<2x32xf32>
    %588 = arith.addf %587, %586 : vector<2x32xf32>
    %589 = arith.divf %587, %588 : vector<2x32xf32>
    %590 = arith.mulf %581, %563 : vector<2x32xf32>
    %591 = arith.mulf %575, %583 : vector<2x32xf32>
    %592 = arith.addf %590, %591 : vector<2x32xf32>
    %593 = math.tanh %592 : vector<2x32xf32>
    %594 = arith.mulf %589, %593 : vector<2x32xf32>
    %c0_132 = arith.constant 0 : index
    %c0_133 = arith.constant 0 : index
    %595 = vector.load %arg16[%c0_132, %c0_133] : memref<32x96xf32, #tpu.memory_space<vmem>>, vector<32x96xf32>
    %cst_134 = arith.constant dense<0.000000e+00> : vector<2x96xf32>
    %596 = tpu.matmul %594, %595, %cst_134 {dimension_numbers = #tpu.dot_dimension_numbers<[1], [0], [0], [1], [0, 0, 1, 1], [], []>} : vector<2x32xf32>, vector<32x96xf32>, vector<2x96xf32> -> vector<2x96xf32>
    %c0_135 = arith.constant 0 : index
    %c0_136 = arith.constant 0 : index
    %597 = vector.load %arg17[%c0_135, %c0_136] : memref<1x96xf32, #tpu.memory_space<vmem>>, vector<1x96xf32>
    %598 = vector.broadcast %597 : vector<1x96xf32> to vector<2x96xf32>
    %599 = arith.addf %596, %598 : vector<2x96xf32>
    %600 = vector.extract_strided_slice %599 {offsets = [0, 0], sizes = [2, 32], strides = [1, 1]} : vector<2x96xf32> to vector<2x32xf32>
    %601 = vector.extract_strided_slice %599 {offsets = [0, 32], sizes = [2, 32], strides = [1, 1]} : vector<2x96xf32> to vector<2x32xf32>
    %602 = vector.extract_strided_slice %599 {offsets = [0, 64], sizes = [2, 32], strides = [1, 1]} : vector<2x96xf32> to vector<2x32xf32>
    %603 = vector.extract_strided_slice %600 {offsets = [0, 0], sizes = [2, 8], strides = [1, 1]} : vector<2x32xf32> to vector<2x8xf32>
    %604 = vector.extract_strided_slice %601 {offsets = [0, 0], sizes = [2, 8], strides = [1, 1]} : vector<2x32xf32> to vector<2x8xf32>
    %605 = vector.extract_strided_slice %602 {offsets = [0, 0], sizes = [2, 8], strides = [1, 1]} : vector<2x32xf32> to vector<2x8xf32>
    %606 = tpu.transpose %604, [1, 0] : vector<2x8xf32> -> vector<8x2xf32>
    %cst_137 = arith.constant dense<0.000000e+00> : vector<2x2xf32>
    %607 = tpu.matmul %603, %606, %cst_137 {dimension_numbers = #tpu.dot_dimension_numbers<[1], [0], [0], [1], [0, 0, 1, 1], [], []>} : vector<2x8xf32>, vector<8x2xf32>, vector<2x2xf32> -> vector<2x2xf32>
    %cst_138 = arith.constant 0.353553385 : f32
    %608 = vector.broadcast %cst_138 : f32 to vector<2x2xf32>
    %609 = arith.mulf %607, %608 : vector<2x2xf32>
    %cst_139 = arith.constant dense<0xFF800000> : vector<2xf32>
    %610 = vector.multi_reduction <maximumf>, %609, %cst_139 [1] : vector<2x2xf32> to vector<2xf32>
    %611 = vector.shape_cast %610 : vector<2xf32> to vector<2x1xf32>
    %612 = vector.broadcast %611 : vector<2x1xf32> to vector<2x2xf32>
    %613 = arith.subf %609, %612 : vector<2x2xf32>
    %614 = math.exp %613 : vector<2x2xf32>
    %cst_140 = arith.constant dense<0.000000e+00> : vector<2xf32>
    %615 = vector.multi_reduction <add>, %614, %cst_140 [1] : vector<2x2xf32> to vector<2xf32>
    %616 = vector.shape_cast %615 : vector<2xf32> to vector<2x1xf32>
    %617 = vector.broadcast %616 : vector<2x1xf32> to vector<2x2xf32>
    %618 = arith.divf %614, %617 : vector<2x2xf32>
    %cst_141 = arith.constant dense<0.000000e+00> : vector<2x8xf32>
    %619 = tpu.matmul %618, %605, %cst_141 {dimension_numbers = #tpu.dot_dimension_numbers<[1], [0], [0], [1], [0, 0, 1, 1], [], []>} : vector<2x2xf32>, vector<2x8xf32>, vector<2x8xf32> -> vector<2x8xf32>
    %620 = vector.extract_strided_slice %600 {offsets = [0, 8], sizes = [2, 8], strides = [1, 1]} : vector<2x32xf32> to vector<2x8xf32>
    %621 = vector.extract_strided_slice %601 {offsets = [0, 8], sizes = [2, 8], strides = [1, 1]} : vector<2x32xf32> to vector<2x8xf32>
    %622 = vector.extract_strided_slice %602 {offsets = [0, 8], sizes = [2, 8], strides = [1, 1]} : vector<2x32xf32> to vector<2x8xf32>
    %623 = tpu.transpose %621, [1, 0] : vector<2x8xf32> -> vector<8x2xf32>
    %cst_142 = arith.constant dense<0.000000e+00> : vector<2x2xf32>
    %624 = tpu.matmul %620, %623, %cst_142 {dimension_numbers = #tpu.dot_dimension_numbers<[1], [0], [0], [1], [0, 0, 1, 1], [], []>} : vector<2x8xf32>, vector<8x2xf32>, vector<2x2xf32> -> vector<2x2xf32>
    %cst_143 = arith.constant 0.353553385 : f32
    %625 = vector.broadcast %cst_143 : f32 to vector<2x2xf32>
    %626 = arith.mulf %624, %625 : vector<2x2xf32>
    %cst_144 = arith.constant dense<0xFF800000> : vector<2xf32>
    %627 = vector.multi_reduction <maximumf>, %626, %cst_144 [1] : vector<2x2xf32> to vector<2xf32>
    %628 = vector.shape_cast %627 : vector<2xf32> to vector<2x1xf32>
    %629 = vector.broadcast %628 : vector<2x1xf32> to vector<2x2xf32>
    %630 = arith.subf %626, %629 : vector<2x2xf32>
    %631 = math.exp %630 : vector<2x2xf32>
    %cst_145 = arith.constant dense<0.000000e+00> : vector<2xf32>
    %632 = vector.multi_reduction <add>, %631, %cst_145 [1] : vector<2x2xf32> to vector<2xf32>
    %633 = vector.shape_cast %632 : vector<2xf32> to vector<2x1xf32>
    %634 = vector.broadcast %633 : vector<2x1xf32> to vector<2x2xf32>
    %635 = arith.divf %631, %634 : vector<2x2xf32>
    %cst_146 = arith.constant dense<0.000000e+00> : vector<2x8xf32>
    %636 = tpu.matmul %635, %622, %cst_146 {dimension_numbers = #tpu.dot_dimension_numbers<[1], [0], [0], [1], [0, 0, 1, 1], [], []>} : vector<2x2xf32>, vector<2x8xf32>, vector<2x8xf32> -> vector<2x8xf32>
    %637 = vector.extract_strided_slice %600 {offsets = [0, 16], sizes = [2, 8], strides = [1, 1]} : vector<2x32xf32> to vector<2x8xf32>
    %638 = vector.extract_strided_slice %601 {offsets = [0, 16], sizes = [2, 8], strides = [1, 1]} : vector<2x32xf32> to vector<2x8xf32>
    %639 = vector.extract_strided_slice %602 {offsets = [0, 16], sizes = [2, 8], strides = [1, 1]} : vector<2x32xf32> to vector<2x8xf32>
    %640 = tpu.transpose %638, [1, 0] : vector<2x8xf32> -> vector<8x2xf32>
    %cst_147 = arith.constant dense<0.000000e+00> : vector<2x2xf32>
    %641 = tpu.matmul %637, %640, %cst_147 {dimension_numbers = #tpu.dot_dimension_numbers<[1], [0], [0], [1], [0, 0, 1, 1], [], []>} : vector<2x8xf32>, vector<8x2xf32>, vector<2x2xf32> -> vector<2x2xf32>
    %cst_148 = arith.constant 0.353553385 : f32
    %642 = vector.broadcast %cst_148 : f32 to vector<2x2xf32>
    %643 = arith.mulf %641, %642 : vector<2x2xf32>
    %cst_149 = arith.constant dense<0xFF800000> : vector<2xf32>
    %644 = vector.multi_reduction <maximumf>, %643, %cst_149 [1] : vector<2x2xf32> to vector<2xf32>
    %645 = vector.shape_cast %644 : vector<2xf32> to vector<2x1xf32>
    %646 = vector.broadcast %645 : vector<2x1xf32> to vector<2x2xf32>
    %647 = arith.subf %643, %646 : vector<2x2xf32>
    %648 = math.exp %647 : vector<2x2xf32>
    %cst_150 = arith.constant dense<0.000000e+00> : vector<2xf32>
    %649 = vector.multi_reduction <add>, %648, %cst_150 [1] : vector<2x2xf32> to vector<2xf32>
    %650 = vector.shape_cast %649 : vector<2xf32> to vector<2x1xf32>
    %651 = vector.broadcast %650 : vector<2x1xf32> to vector<2x2xf32>
    %652 = arith.divf %648, %651 : vector<2x2xf32>
    %cst_151 = arith.constant dense<0.000000e+00> : vector<2x8xf32>
    %653 = tpu.matmul %652, %639, %cst_151 {dimension_numbers = #tpu.dot_dimension_numbers<[1], [0], [0], [1], [0, 0, 1, 1], [], []>} : vector<2x2xf32>, vector<2x8xf32>, vector<2x8xf32> -> vector<2x8xf32>
    %654 = vector.extract_strided_slice %600 {offsets = [0, 24], sizes = [2, 8], strides = [1, 1]} : vector<2x32xf32> to vector<2x8xf32>
    %655 = vector.extract_strided_slice %601 {offsets = [0, 24], sizes = [2, 8], strides = [1, 1]} : vector<2x32xf32> to vector<2x8xf32>
    %656 = vector.extract_strided_slice %602 {offsets = [0, 24], sizes = [2, 8], strides = [1, 1]} : vector<2x32xf32> to vector<2x8xf32>
    %657 = tpu.transpose %655, [1, 0] : vector<2x8xf32> -> vector<8x2xf32>
    %cst_152 = arith.constant dense<0.000000e+00> : vector<2x2xf32>
    %658 = tpu.matmul %654, %657, %cst_152 {dimension_numbers = #tpu.dot_dimension_numbers<[1], [0], [0], [1], [0, 0, 1, 1], [], []>} : vector<2x8xf32>, vector<8x2xf32>, vector<2x2xf32> -> vector<2x2xf32>
    %cst_153 = arith.constant 0.353553385 : f32
    %659 = vector.broadcast %cst_153 : f32 to vector<2x2xf32>
    %660 = arith.mulf %658, %659 : vector<2x2xf32>
    %cst_154 = arith.constant dense<0xFF800000> : vector<2xf32>
    %661 = vector.multi_reduction <maximumf>, %660, %cst_154 [1] : vector<2x2xf32> to vector<2xf32>
    %662 = vector.shape_cast %661 : vector<2xf32> to vector<2x1xf32>
    %663 = vector.broadcast %662 : vector<2x1xf32> to vector<2x2xf32>
    %664 = arith.subf %660, %663 : vector<2x2xf32>
    %665 = math.exp %664 : vector<2x2xf32>
    %cst_155 = arith.constant dense<0.000000e+00> : vector<2xf32>
    %666 = vector.multi_reduction <add>, %665, %cst_155 [1] : vector<2x2xf32> to vector<2xf32>
    %667 = vector.shape_cast %666 : vector<2xf32> to vector<2x1xf32>
    %668 = vector.broadcast %667 : vector<2x1xf32> to vector<2x2xf32>
    %669 = arith.divf %665, %668 : vector<2x2xf32>
    %cst_156 = arith.constant dense<0.000000e+00> : vector<2x8xf32>
    %670 = tpu.matmul %669, %656, %cst_156 {dimension_numbers = #tpu.dot_dimension_numbers<[1], [0], [0], [1], [0, 0, 1, 1], [], []>} : vector<2x2xf32>, vector<2x8xf32>, vector<2x8xf32> -> vector<2x8xf32>
    %671 = tpu.concatenate %619, %636, %653, %670 in 1 : vector<2x8xf32>, vector<2x8xf32>, vector<2x8xf32>, vector<2x8xf32> -> vector<2x32xf32>
    %c0_157 = arith.constant 0 : index
    %c0_158 = arith.constant 0 : index
    %672 = vector.load %arg18[%c0_157, %c0_158] : memref<32x32xf32, #tpu.memory_space<vmem>>, vector<32x32xf32>
    %cst_159 = arith.constant dense<0.000000e+00> : vector<2x32xf32>
    %673 = tpu.matmul %671, %672, %cst_159 {dimension_numbers = #tpu.dot_dimension_numbers<[1], [0], [0], [1], [0, 0, 1, 1], [], []>} : vector<2x32xf32>, vector<32x32xf32>, vector<2x32xf32> -> vector<2x32xf32>
    %c0_160 = arith.constant 0 : index
    %c0_161 = arith.constant 0 : index
    %674 = vector.load %arg19[%c0_160, %c0_161] : memref<1x32xf32, #tpu.memory_space<vmem>>, vector<1x32xf32>
    %675 = vector.broadcast %674 : vector<1x32xf32> to vector<2x32xf32>
    %676 = arith.addf %673, %675 : vector<2x32xf32>
    %c0_162 = arith.constant 0 : index
    %c0_163 = arith.constant 0 : index
    %677 = vector.load %arg20[%c0_162, %c0_163] : memref<1x32xf32, #tpu.memory_space<vmem>>, vector<1x32xf32>
    %c0_164 = arith.constant 0 : index
    %c0_165 = arith.constant 0 : index
    %678 = vector.load %arg21[%c0_164, %c0_165] : memref<1x32xf32, #tpu.memory_space<vmem>>, vector<1x32xf32>
    %cst_166 = arith.constant dense<0.000000e+00> : vector<2xf32>
    %679 = vector.multi_reduction <add>, %676, %cst_166 [1] : vector<2x32xf32> to vector<2xf32>
    %680 = vector.shape_cast %679 : vector<2xf32> to vector<2x1xf32>
    %cst_167 = arith.constant 3.200000e+01 : f32
    %681 = vector.broadcast %cst_167 : f32 to vector<2x1xf32>
    %682 = arith.divf %680, %681 : vector<2x1xf32>
    %683 = vector.broadcast %682 : vector<2x1xf32> to vector<2x32xf32>
    %684 = arith.subf %676, %683 : vector<2x32xf32>
    %685 = arith.mulf %684, %684 : vector<2x32xf32>
    %cst_168 = arith.constant dense<0.000000e+00> : vector<2xf32>
    %686 = vector.multi_reduction <add>, %685, %cst_168 [1] : vector<2x32xf32> to vector<2xf32>
    %687 = vector.shape_cast %686 : vector<2xf32> to vector<2x1xf32>
    %cst_169 = arith.constant 3.200000e+01 : f32
    %688 = vector.broadcast %cst_169 : f32 to vector<2x1xf32>
    %689 = arith.divf %687, %688 : vector<2x1xf32>
    %690 = vector.broadcast %682 : vector<2x1xf32> to vector<2x32xf32>
    %691 = arith.subf %676, %690 : vector<2x32xf32>
    %cst_170 = arith.constant 9.99999974E-6 : f32
    %692 = vector.broadcast %cst_170 : f32 to vector<2x1xf32>
    %693 = arith.addf %689, %692 : vector<2x1xf32>
    %694 = math.rsqrt %693 : vector<2x1xf32>
    %695 = vector.broadcast %694 : vector<2x1xf32> to vector<2x32xf32>
    %696 = arith.mulf %691, %695 : vector<2x32xf32>
    %697 = vector.broadcast %677 : vector<1x32xf32> to vector<2x32xf32>
    %698 = arith.mulf %696, %697 : vector<2x32xf32>
    %699 = vector.broadcast %678 : vector<1x32xf32> to vector<2x32xf32>
    %700 = arith.addf %698, %699 : vector<2x32xf32>
    %c0_171 = arith.constant 0 : index
    %c0_172 = arith.constant 0 : index
    %701 = vector.load %arg22[%c0_171, %c0_172] : memref<32x32xf32, #tpu.memory_space<vmem>>, vector<32x32xf32>
    %cst_173 = arith.constant dense<0.000000e+00> : vector<2x32xf32>
    %702 = tpu.matmul %700, %701, %cst_173 {dimension_numbers = #tpu.dot_dimension_numbers<[1], [0], [0], [1], [0, 0, 1, 1], [], []>} : vector<2x32xf32>, vector<32x32xf32>, vector<2x32xf32> -> vector<2x32xf32>
    %c0_174 = arith.constant 0 : index
    %c0_175 = arith.constant 0 : index
    %703 = vector.load %arg23[%c0_174, %c0_175] : memref<1x32xf32, #tpu.memory_space<vmem>>, vector<1x32xf32>
    %704 = vector.broadcast %703 : vector<1x32xf32> to vector<2x32xf32>
    %705 = arith.addf %702, %704 : vector<2x32xf32>
    %c0_176 = arith.constant 0 : index
    %c0_177 = arith.constant 0 : index
    %706 = vector.load %arg24[%c0_176, %c0_177] : memref<2x32xf32, #tpu.memory_space<vmem>>, vector<2x32xf32>
    tpu.vector_store %arg24[%c0_176, %c0_177], %705 {strides = array<i32>} : memref<2x32xf32, #tpu.memory_space<vmem>>, vector<2x32xf32>,
    return
  }
  func.func @transform_0(%arg0: i32) -> (i32, i32, i32) {
    %c0_i32 = arith.constant 0 : i32
    %c0_i32_0 = arith.constant 0 : i32
    %c0_i32_1 = arith.constant 0 : i32
    %c0_i32_2 = arith.constant 0 : i32
    return %c0_i32, %c0_i32_0, %c0_i32_1 : i32, i32, i32
  }
  func.func @transform_1(%arg0: i32) -> (i32, i32, i32) {
    %c0_i32 = arith.constant 0 : i32
    %c0_i32_0 = arith.constant 0 : i32
    %c0_i32_1 = arith.constant 0 : i32
    %c0_i32_2 = arith.constant 0 : i32
    return %c0_i32, %c0_i32_0, %c0_i32_1 : i32, i32, i32
  }
  func.func @transform_2(%arg0: i32) -> (i32, i32) {
    %c0_i32 = arith.constant 0 : i32
    %c0_i32_0 = arith.constant 0 : i32
    %c0_i32_1 = arith.constant 0 : i32
    return %c0_i32, %c0_i32_0 : i32, i32
  }
  func.func @transform_3(%arg0: i32) -> (i32, i32) {
    %c0_i32 = arith.constant 0 : i32
    %c0_i32_0 = arith.constant 0 : i32
    %c0_i32_1 = arith.constant 0 : i32
    return %c0_i32, %c0_i32_0 : i32, i32
  }
  func.func @transform_4(%arg0: i32) -> (i32, i32) {
    %c0_i32 = arith.constant 0 : i32
    %c0_i32_0 = arith.constant 0 : i32
    %c0_i32_1 = arith.constant 0 : i32
    return %c0_i32, %c0_i32_0 : i32, i32
  }
  func.func @transform_5(%arg0: i32) -> (i32, i32, i32) {
    %c0_i32 = arith.constant 0 : i32
    %c0_i32_0 = arith.constant 0 : i32
    %c0_i32_1 = arith.constant 0 : i32
    %c0_i32_2 = arith.constant 0 : i32
    return %c0_i32, %c0_i32_0, %c0_i32_1 : i32, i32, i32
  }
  func.func @transform_6(%arg0: i32) -> (i32, i32) {
    %c0_i32 = arith.constant 0 : i32
    %c0_i32_0 = arith.constant 0 : i32
    %c0_i32_1 = arith.constant 0 : i32
    return %c0_i32, %c0_i32_0 : i32, i32
  }
  func.func @transform_7(%arg0: i32) -> (i32, i32) {
    %c0_i32 = arith.constant 0 : i32
    %c0_i32_0 = arith.constant 0 : i32
    %c0_i32_1 = arith.constant 0 : i32
    return %c0_i32, %c0_i32_0 : i32, i32
  }
  func.func @transform_8(%arg0: i32) -> (i32, i32) {
    %c0_i32 = arith.constant 0 : i32
    %c0_i32_0 = arith.constant 0 : i32
    %c0_i32_1 = arith.constant 0 : i32
    return %c0_i32, %c0_i32_0 : i32, i32
  }
  func.func @transform_9(%arg0: i32) -> (i32, i32) {
    %c0_i32 = arith.constant 0 : i32
    %c0_i32_0 = arith.constant 0 : i32
    %c0_i32_1 = arith.constant 0 : i32
    return %c0_i32, %c0_i32_0 : i32, i32
  }
  func.func @transform_10(%arg0: i32) -> (i32, i32) {
    %c0_i32 = arith.constant 0 : i32
    %c0_i32_0 = arith.constant 0 : i32
    %c0_i32_1 = arith.constant 0 : i32
    return %c0_i32, %c0_i32_0 : i32, i32
  }
  func.func @transform_11(%arg0: i32) -> (i32, i32) {
    %c0_i32 = arith.constant 0 : i32
    %c0_i32_0 = arith.constant 0 : i32
    %c0_i32_1 = arith.constant 0 : i32
    return %c0_i32, %c0_i32_0 : i32, i32
  }
  func.func @transform_12(%arg0: i32) -> (i32, i32) {
    %c0_i32 = arith.constant 0 : i32
    %c0_i32_0 = arith.constant 0 : i32
    %c0_i32_1 = arith.constant 0 : i32
    return %c0_i32, %c0_i32_0 : i32, i32
  }
  func.func @transform_13(%arg0: i32) -> (i32, i32) {
    %c0_i32 = arith.constant 0 : i32
    %c0_i32_0 = arith.constant 0 : i32
    %c0_i32_1 = arith.constant 0 : i32
    return %c0_i32, %c0_i32_0 : i32, i32
  }
  func.func @transform_14(%arg0: i32) -> (i32, i32) {
    %c0_i32 = arith.constant 0 : i32
    %c0_i32_0 = arith.constant 0 : i32
    %c0_i32_1 = arith.constant 0 : i32
    return %c0_i32, %c0_i32_0 : i32, i32
  }
  func.func @transform_15(%arg0: i32) -> (i32, i32) {
    %c0_i32 = arith.constant 0 : i32
    %c0_i32_0 = arith.constant 0 : i32
    %c0_i32_1 = arith.constant 0 : i32
    return %c0_i32, %c0_i32_0 : i32, i32
  }
  func.func @transform_16(%arg0: i32) -> (i32, i32) {
    %c0_i32 = arith.constant 0 : i32
    %c0_i32_0 = arith.constant 0 : i32
    %c0_i32_1 = arith.constant 0 : i32
    return %c0_i32, %c0_i32_0 : i32, i32
  }
  func.func @transform_17(%arg0: i32) -> (i32, i32) {
    %c0_i32 = arith.constant 0 : i32
    %c0_i32_0 = arith.constant 0 : i32
    %c0_i32_1 = arith.constant 0 : i32
    return %c0_i32, %c0_i32_0 : i32, i32
  }
  func.func @transform_18(%arg0: i32) -> (i32, i32) {
    %c0_i32 = arith.constant 0 : i32
    %c0_i32_0 = arith.constant 0 : i32
    %c0_i32_1 = arith.constant 0 : i32
    return %c0_i32, %c0_i32_0 : i32, i32
  }
  func.func @transform_19(%arg0: i32) -> (i32, i32) {
    %c0_i32 = arith.constant 0 : i32
    %c0_i32_0 = arith.constant 0 : i32
    %c0_i32_1 = arith.constant 0 : i32
    return %c0_i32, %c0_i32_0 : i32, i32
  }
  func.func @transform_20(%arg0: i32) -> (i32, i32) {
    %c0_i32 = arith.constant 0 : i32
    %c0_i32_0 = arith.constant 0 : i32
    %c0_i32_1 = arith.constant 0 : i32
    return %c0_i32, %c0_i32_0 : i32, i32
  }
  func.func @transform_21(%arg0: i32) -> (i32, i32) {
    %c0_i32 = arith.constant 0 : i32
    %c0_i32_0 = arith.constant 0 : i32
    %c0_i32_1 = arith.constant 0 : i32
    return %c0_i32, %c0_i32_0 : i32, i32
  }
  func.func @transform_22(%arg0: i32) -> (i32, i32) {
    %c0_i32 = arith.constant 0 : i32
    %c0_i32_0 = arith.constant 0 : i32
    %c0_i32_1 = arith.constant 0 : i32
    return %c0_i32, %c0_i32_0 : i32, i32
  }
  func.func @transform_23(%arg0: i32) -> (i32, i32) {
    %c0_i32 = arith.constant 0 : i32
    %c0_i32_0 = arith.constant 0 : i32
    %c0_i32_1 = arith.constant 0 : i32
    return %c0_i32, %c0_i32_0 : i32, i32
  }
}

</mosaic_0001>

<llo_original>
// kernel: forward.1
$region0: #{forward.1}
  #allocation0 [shape = 'u32[]', space=smem, size = 0x4, offset = 0x4, fixed_abs, tag = 'smem constant byte address 0x4 - core index']
  #allocation1 [shape = 'u32[144,128]{1,0:T(1,128)}', space=vmem, size = 0x12000, scoped, tag = 'internal scratch']
  %s0 = inlined_call_operand.vmem [shape: f32[2,8,16], index: 0, kind: input, shape index: {}]
  %s1 = inlined_call_operand.vmem [shape: f32[3,16,16], index: 1, kind: input, shape index: {}]
  %s2 = inlined_call_operand.vmem [shape: f32[1,16], index: 2, kind: input, shape index: {}]
  %s3 = inlined_call_operand.vmem [shape: f32[1,16], index: 3, kind: input, shape index: {}]
  %s4 = inlined_call_operand.vmem [shape: f32[1,16], index: 4, kind: input, shape index: {}]
  %s5 = inlined_call_operand.vmem [shape: f32[3,16,16], index: 5, kind: input, shape index: {}]
  %s6 = inlined_call_operand.vmem [shape: f32[1,16], index: 6, kind: input, shape index: {}]
  %s7 = inlined_call_operand.vmem [shape: f32[1,16], index: 7, kind: input, shape index: {}]
  %s8 = inlined_call_operand.vmem [shape: f32[1,16], index: 8, kind: input, shape index: {}]
  %s9 = inlined_call_operand.vmem [shape: f32[16,128], index: 9, kind: input, shape index: {}]
  %s10 = inlined_call_operand.vmem [shape: f32[32,128], index: 10, kind: input, shape index: {}]
  %s11 = inlined_call_operand.vmem [shape: f32[1,128], index: 11, kind: input, shape index: {}]
  %s12 = inlined_call_operand.vmem [shape: f32[32,128], index: 12, kind: input, shape index: {}]
  %s13 = inlined_call_operand.vmem [shape: f32[32,128], index: 13, kind: input, shape index: {}]
  %s14 = inlined_call_operand.vmem [shape: f32[1,128], index: 14, kind: input, shape index: {}]
  %s15 = inlined_call_operand.vmem [shape: f32[32,96], index: 15, kind: input, shape index: {}]
  %s16 = inlined_call_operand.vmem [shape: f32[1,96], index: 16, kind: input, shape index: {}]
  %s17 = inlined_call_operand.hbm [shape: f32[32,32], index: 17, kind: input, shape index: {}]
  %s18 = inlined_call_operand.vmem [shape: f32[1,32], index: 18, kind: input, shape index: {}]
  %s19 = inlined_call_operand.vmem [shape: f32[1,32], index: 19, kind: input, shape index: {}]
  %s20 = inlined_call_operand.vmem [shape: f32[1,32], index: 20, kind: input, shape index: {}]
  %s21 = inlined_call_operand.hbm [shape: f32[32,32], index: 21, kind: input, shape index: {}]
  %s22 = inlined_call_operand.vmem [shape: f32[1,32], index: 22, kind: input, shape index: {}]
  %s23 = inlined_call_operand.hbm [shape: f32[2,32], index: 23, kind: output, shape index: {}]
  %s24 = sld [smem:[#allocation0]]
  $region110: #{forward.1} parent=0
    _
  %s26 = ssub.s32 1, %s24
  %s27 = scalar_select 0, %s26, %s24
  $region1: #{forward.1} parent=0
    #allocation2 [shape = 'u8[16384]{0}', space=vmem, size = 0x4000, scoped, tag = 'input window, operand 17, single buffered']
    #allocation3 [shape = 's32[1]{0}', space=sflag, size = 0x4, scoped, tag = 'scoped memory for forward.1']
    #allocation4 [shape = 's32[1]{0}', space=sflag, size = 0x4, scoped, tag = 'scoped memory for forward.1']
    #allocation5 [shape = 'u8[16384]{0}', space=vmem, size = 0x4000, scoped, tag = 'input window, operand 21, single buffered']
    #allocation6 [shape = 's32[1]{0}', space=sflag, size = 0x4, scoped, tag = 'scoped memory for forward.1']
    #allocation7 [shape = 'u8[1024]{0}', space=vmem, size = 0x400, scoped, tag = 'output window, operand 0, single buffered']
    %28 = vsyncpa [#allocation3], 0
    %29 = vsyncpa [#allocation6], 0
    %30 = vsyncpa [#allocation4], 0
    // Predicated region
    $region2: #{forward.1} parent=1 // pred_check
      _
    $region3: #{forward.1} parent=1 // pred_check_branch
      %32 = sbr.rel (0) target = $region5
    $region4: #{forward.1} parent=1 // pred_region
      _
    $region5: #{forward.1} parent=1 // pred_fallthru
      _
    // Predicated region
    $region6: #{forward.1} parent=1 // pred_check
      _
    $region7: #{forward.1} parent=1 // pred_check_branch
      %34 = sbr.rel (0) target = $region9
    $region8: #{forward.1} parent=1 // pred_region
      _
    $region9: #{forward.1} parent=1 // pred_fallthru
      _
    // Predicated region
    $region10: #{forward.1} parent=1 // pred_check
      _
    $region11: #{forward.1} parent=1 // pred_check_branch
      %36 = sbr.rel (0) target = $region13
    $region12: #{forward.1} parent=1 // pred_region
      _
    $region13: #{forward.1} parent=1 // pred_fallthru
      _
    // Predicated region
    $region14: #{forward.1} parent=1 // pred_check
      _
    $region15: #{forward.1} parent=1 // pred_check_branch
      %38 = sbr.rel (0) target = $region17
    $region16: #{forward.1} parent=1 // pred_region
      _
    $region17: #{forward.1} parent=1 // pred_fallthru
      _
    // Predicated region
    $region18: #{forward.1} parent=1 // pred_check
      _
    $region19: #{forward.1} parent=1 // pred_check_branch
      %40 = sbr.rel (0) target = $region21
    $region20: #{forward.1} parent=1 // pred_region
      _
    $region21: #{forward.1} parent=1 // pred_fallthru
      _
    // Predicated region
    $region22: #{forward.1} parent=1 // pred_check
      _
    $region23: #{forward.1} parent=1 // pred_check_branch
      %42 = sbr.rel (0) target = $region25
    $region24: #{forward.1} parent=1 // pred_region
      _
    $region25: #{forward.1} parent=1 // pred_fallthru
      _
    // Predicated region
    $region26: #{forward.1} parent=1 // pred_check
      _
    $region27: #{forward.1} parent=1 // pred_check_branch
      %44 = sbr.rel (0) target = $region29
    $region28: #{forward.1} parent=1 // pred_region
      _
    $region29: #{forward.1} parent=1 // pred_fallthru
      _
    // Predicated region
    $region30: #{forward.1} parent=1 // pred_check
      _
    $region31: #{forward.1} parent=1 // pred_check_branch
      %46 = sbr.rel (0) target = $region33
    $region32: #{forward.1} parent=1 // pred_region
      _
    $region33: #{forward.1} parent=1 // pred_fallthru
      _
    // Predicated region
    $region34: #{forward.1} parent=1 // pred_check
      _
    $region35: #{forward.1} parent=1 // pred_check_branch
      %48 = sbr.rel (0) target = $region37
    $region36: #{forward.1} parent=1 // pred_region
      _
    $region37: #{forward.1} parent=1 // pred_fallthru
      _
    // Predicated region
    $region38: #{forward.1} parent=1 // pred_check
      _
    $region39: #{forward.1} parent=1 // pred_check_branch
      %50 = sbr.rel (0) target = $region41
    $region40: #{forward.1} parent=1 // pred_region
      _
    $region41: #{forward.1} parent=1 // pred_fallthru
      _
    // Predicated region
    $region42: #{forward.1} parent=1 // pred_check
      _
    $region43: #{forward.1} parent=1 // pred_check_branch
      %52 = sbr.rel (0) target = $region45
    $region44: #{forward.1} parent=1 // pred_region
      _
    $region45: #{forward.1} parent=1 // pred_fallthru
      _
    // Predicated region
    $region46: #{forward.1} parent=1 // pred_check
      _
    $region47: #{forward.1} parent=1 // pred_check_branch
      %54 = sbr.rel (0) target = $region49
    $region48: #{forward.1} parent=1 // pred_region
      _
    $region49: #{forward.1} parent=1 // pred_fallthru
      _
    // Predicated region
    $region50: #{forward.1} parent=1 // pred_check
      _
    $region51: #{forward.1} parent=1 // pred_check_branch
      %56 = sbr.rel (0) target = $region53
    $region52: #{forward.1} parent=1 // pred_region
      _
    $region53: #{forward.1} parent=1 // pred_fallthru
      _
    // Predicated region
    $region54: #{forward.1} parent=1 // pred_check
      _
    $region55: #{forward.1} parent=1 // pred_check_branch
      %58 = sbr.rel (0) target = $region57
    $region56: #{forward.1} parent=1 // pred_region
      _
    $region57: #{forward.1} parent=1 // pred_fallthru
      _
    // Predicated region
    $region58: #{forward.1} parent=1 // pred_check
      _
    $region59: #{forward.1} parent=1 // pred_check_branch
      %60 = sbr.rel (0) target = $region61
    $region60: #{forward.1} parent=1 // pred_region
      _
    $region61: #{forward.1} parent=1 // pred_fallthru
      _
    // Predicated region
    $region62: #{forward.1} parent=1 // pred_check
      _
    $region63: #{forward.1} parent=1 // pred_check_branch
      %62 = sbr.rel (0) target = $region65
    $region64: #{forward.1} parent=1 // pred_region
      _
    $region65: #{forward.1} parent=1 // pred_fallthru
      _
    // Predicated region
    $region66: #{forward.1} parent=1 // pred_check
      _
    $region67: #{forward.1} parent=1 // pred_check_branch
      %64 = sbr.rel (0) target = $region69
    $region68: #{forward.1} parent=1 // pred_region
      _
    $region69: #{forward.1} parent=1 // pred_fallthru
      _
    // Predicated region
    $region70: #{forward.1} parent=1 // pred_check
      _
    $region71: #{forward.1} parent=1 // pred_check_branch
      %66 = sbr.rel (0) target = $region73
    $region72: #{forward.1} parent=1 // pred_region
      %s68 = ssub.s32 512, 512
      %69 = vsyncadd [#allocation3], %s68
      %s70 = sshll.u32 [#allocation2], 4
      %s71 = int_to_ptr.vmem [resolvable:$true] %s70
      %76 = dma.hbm_to_vmem [thread:$0]  %s17, 512, %s71, [#allocation3], 128, 128, 8
    $region73: #{forward.1} parent=1 // pred_fallthru
      _
    // Predicated region
    $region74: #{forward.1} parent=1 // pred_check
      _
    $region75: #{forward.1} parent=1 // pred_check_branch
      %78 = sbr.rel (0) target = $region77
    $region76: #{forward.1} parent=1 // pred_region
      _
    $region77: #{forward.1} parent=1 // pred_fallthru
      _
    // Predicated region
    $region78: #{forward.1} parent=1 // pred_check
      _
    $region79: #{forward.1} parent=1 // pred_check_branch
      %80 = sbr.rel (0) target = $region81
    $region80: #{forward.1} parent=1 // pred_region
      _
    $region81: #{forward.1} parent=1 // pred_fallthru
      _
    // Predicated region
    $region82: #{forward.1} parent=1 // pred_check
      _
    $region83: #{forward.1} parent=1 // pred_check_branch
      %82 = sbr.rel (0) target = $region85
    $region84: #{forward.1} parent=1 // pred_region
      _
    $region85: #{forward.1} parent=1 // pred_fallthru
      _
    // Predicated region
    $region86: #{forward.1} parent=1 // pred_check
      _
    $region87: #{forward.1} parent=1 // pred_check_branch
      %84 = sbr.rel (0) target = $region89
    $region88: #{forward.1} parent=1 // pred_region
      %s86 = ssub.s32 512, 512
      %87 = vsyncadd [#allocation6], %s86
      %s88 = sshll.u32 [#allocation5], 4
      %s89 = int_to_ptr.vmem [resolvable:$true] %s88
      %94 = dma.hbm_to_vmem [thread:$0]  %s21, 512, %s89, [#allocation6], 128, 128, 8
    $region89: #{forward.1} parent=1 // pred_fallthru
      _
    // Predicated region
    $region90: #{forward.1} parent=1 // pred_check
      _
    $region91: #{forward.1} parent=1 // pred_check_branch
      %96 = sbr.rel (0) target = $region93
    $region92: #{forward.1} parent=1 // pred_region
      _
    $region93: #{forward.1} parent=1 // pred_fallthru
      _
    // Predicated region
    $region94: #{forward.1} parent=1 // pred_check
      _
    $region95: #{forward.1} parent=1 // pred_check_branch
      %98 = sbr.rel (0) target = $region97
    $region96: #{forward.1} parent=1 // pred_region
      %99 = dma.done [#allocation3], 512
    $region97: #{forward.1} parent=1 // pred_fallthru
      _
    // Predicated region
    $region98: #{forward.1} parent=1 // pred_check
      _
    $region99: #{forward.1} parent=1 // pred_check_branch
      %101 = sbr.rel (0) target = $region101
    $region100: #{forward.1} parent=1 // pred_region
      %102 = dma.done [#allocation6], 512
    $region101: #{forward.1} parent=1 // pred_fallthru
      _
    %v103 = vld [vmem:[%s0] sm:$0xff]
    %v104 = vld [vmem:[%s0 + $0x8] sm:$0xff]
    %v107 = vrot.slane %v103, 7
    %v108 = vrot.slane %v104, 7
    %vm111 = vcmask 1040384
    %v112 = vsel %vm111, 0.0, %v107
    %v113 = vsel %vm111, 0.0, %v108
    %v114 = vrot.slane %v103, 1
    %v115 = vrot.slane %v104, 1
    %vm118 = vcmask 1046528
    %v119 = vsel %vm118, %v114, 0.0
    %v120 = vsel %vm118, %v115, 0.0
    %v121 = vld [vmem:[%s1] sm:$0xff]
    %v122 = vld [vmem:[%s1 + $0x8] sm:$0xff]
    %s123 = scalar_lea.vmem %s1, 16
    %v124 = vld [vmem:[%s123] sm:$0xff]
    %v125 = vld [vmem:[%s123 + $0x8] sm:$0xff]
    %vm126 = vcmask 130048
    %v127 = vsel %vm126, %v103, 0
    %v129 = vsel %vm126, %v104, 0
    %131 = vmatprep.subr.mxu0 0.0
    %132 = vmatpush1.msra.mxu0 0.0
    %133 = vmatprep.subr.mxu0 0.0
    %134 = vmatpush1.msra.mxu0 0.0
    %135 = vmatprep.subr.mxu0 0.0
    %136 = vmatpush1.msra.mxu0 0.0
    %137 = vmatprep.subr.mxu0 0.0
    %138 = vmatpush1.msra.mxu0 0.0
    %139 = vmatprep.subr.mxu0 0.0
    %140 = vmatpush1.msra.mxu0 0.0
    %141 = vmatprep.subr.mxu0 0.0
    %142 = vmatpush1.msra.mxu0 0.0
    %143 = vmatprep.subr.mxu0 0.0
    %144 = vmatpush1.msra.mxu0 0.0
    %145 = vmatprep.subr.mxu0 0.0
    %146 = vmatpush1.msra.mxu0 0.0
    %147 = vmatprep.subr.mxu0 0.0
    %148 = vmatpush1.msra.mxu0 0.0
    %149 = vmatprep.subr.mxu0 0.0
    %150 = vmatpush1.msra.mxu0 0.0
    %151 = vmatprep.subr.mxu0 0.0
    %152 = vmatpush1.msra.mxu0 0.0
    %153 = vmatprep.subr.mxu0 0.0
    %154 = vmatpush1.msra.mxu0 0.0
    %155 = vmatprep.subr.mxu0 0.0
    %156 = vmatpush1.msra.mxu0 0.0
    %157 = vmatprep.subr.mxu0 0.0
    %158 = vmatpush1.msra.mxu0 0.0
    %159 = vmatprep.subr.mxu0 0.0
    %160 = vmatpush1.msra.mxu0 %v125
    %161 = vmatprep.subr.mxu0 0.0
    %162 = vmatpush1.msra.mxu0 %v124
    %163 = vmatprep.subr.mxu0 0.0
    %164 = vmatpush2.msra.mxu0 0.0
    %165 = vmatprep.subr.mxu0 0.0
    %166 = vmatpush2.msra.mxu0 0.0
    %167 = vmatprep.subr.mxu0 0.0
    %168 = vmatpush2.msra.mxu0 0.0
    %169 = vmatprep.subr.mxu0 0.0
    %170 = vmatpush2.msra.mxu0 0.0
    %171 = vmatprep.subr.mxu0 0.0
    %172 = vmatpush2.msra.mxu0 0.0
    %173 = vmatprep.subr.mxu0 0.0
    %174 = vmatpush2.msra.mxu0 0.0
    %175 = vmatprep.subr.mxu0 0.0
    %176 = vmatpush2.msra.mxu0 0.0
    %177 = vmatprep.subr.mxu0 0.0
    %178 = vmatpush2.msra.mxu0 0.0
    %179 = vmatprep.subr.mxu0 0.0
    %180 = vmatpush2.msra.mxu0 0.0
    %181 = vmatprep.subr.mxu0 0.0
    %182 = vmatpush2.msra.mxu0 0.0
    %183 = vmatprep.subr.mxu0 0.0
    %184 = vmatpush2.msra.mxu0 0.0
    %185 = vmatprep.subr.mxu0 0.0
    %186 = vmatpush2.msra.mxu0 0.0
    %187 = vmatprep.subr.mxu0 0.0
    %188 = vmatpush2.msra.mxu0 0.0
    %189 = vmatprep.subr.mxu0 0.0
    %190 = vmatpush2.msra.mxu0 0.0
    %191 = vmatprep.subr.mxu0 0.0
    %192 = vmatpush2.msra.mxu0 0.0
    %193 = vmatprep.subr.mxu0 0.0
    %194 = vmatpush2.msra.mxu0 0.0
    %195 = vmatprep.mubr.f32.mxu0 0.0
    %196 = vmatmul.mubr.f32.gmra.mxu0 %v127
    %v197 = vpop.f32.mrf.mxu0
    %v198 = vadd.f32 0.0, %v197
    %v199 = vpop.f32.mrf.mxu0
    %200 = vmatprep.mubr.f32.mxu0 0.0
    %201 = vmatmul.mubr.f32.gmra.mxu0 %v129
    %v202 = vpop.f32.mrf.mxu0
    %v203 = vadd.f32 0.0, %v202
    %v204 = vpop.f32.mrf.mxu0
    %205 = vdwg.mxu0
    %v207 = vsel %vm126, %v112, 0
    %v210 = vsel %vm126, %v113, 0
    %212 = vmatprep.subr.mxu0 0.0
    %213 = vmatpush1.msra.mxu0 0.0
    %214 = vmatprep.subr.mxu0 0.0
    %215 = vmatpush1.msra.mxu0 0.0
    %216 = vmatprep.subr.mxu0 0.0
    %217 = vmatpush1.msra.mxu0 0.0
    %218 = vmatprep.subr.mxu0 0.0
    %219 = vmatpush1.msra.mxu0 0.0
    %220 = vmatprep.subr.mxu0 0.0
    %221 = vmatpush1.msra.mxu0 0.0
    %222 = vmatprep.subr.mxu0 0.0
    %223 = vmatpush1.msra.mxu0 0.0
    %224 = vmatprep.subr.mxu0 0.0
    %225 = vmatpush1.msra.mxu0 0.0
    %226 = vmatprep.subr.mxu0 0.0
    %227 = vmatpush1.msra.mxu0 0.0
    %228 = vmatprep.subr.mxu0 0.0
    %229 = vmatpush1.msra.mxu0 0.0
    %230 = vmatprep.subr.mxu0 0.0
    %231 = vmatpush1.msra.mxu0 0.0
    %232 = vmatprep.subr.mxu0 0.0
    %233 = vmatpush1.msra.mxu0 0.0
    %234 = vmatprep.subr.mxu0 0.0
    %235 = vmatpush1.msra.mxu0 0.0
    %236 = vmatprep.subr.mxu0 0.0
    %237 = vmatpush1.msra.mxu0 0.0
    %238 = vmatprep.subr.mxu0 0.0
    %239 = vmatpush1.msra.mxu0 0.0
    %240 = vmatprep.subr.mxu0 0.0
    %241 = vmatpush1.msra.mxu0 %v122
    %242 = vmatprep.subr.mxu0 0.0
    %243 = vmatpush1.msra.mxu0 %v121
    %244 = vmatprep.subr.mxu0 0.0
    %245 = vmatpush2.msra.mxu0 0.0
    %246 = vmatprep.subr.mxu0 0.0
    %247 = vmatpush2.msra.mxu0 0.0
    %248 = vmatprep.subr.mxu0 0.0
    %249 = vmatpush2.msra.mxu0 0.0
    %250 = vmatprep.subr.mxu0 0.0
    %251 = vmatpush2.msra.mxu0 0.0
    %252 = vmatprep.subr.mxu0 0.0
    %253 = vmatpush2.msra.mxu0 0.0
    %254 = vmatprep.subr.mxu0 0.0
    %255 = vmatpush2.msra.mxu0 0.0
    %256 = vmatprep.subr.mxu0 0.0
    %257 = vmatpush2.msra.mxu0 0.0
    %258 = vmatprep.subr.mxu0 0.0
    %259 = vmatpush2.msra.mxu0 0.0
    %260 = vmatprep.subr.mxu0 0.0
    %261 = vmatpush2.msra.mxu0 0.0
    %262 = vmatprep.subr.mxu0 0.0
    %263 = vmatpush2.msra.mxu0 0.0
    %264 = vmatprep.subr.mxu0 0.0
    %265 = vmatpush2.msra.mxu0 0.0
    %266 = vmatprep.subr.mxu0 0.0
    %267 = vmatpush2.msra.mxu0 0.0
    %268 = vmatprep.subr.mxu0 0.0
    %269 = vmatpush2.msra.mxu0 0.0
    %270 = vmatprep.subr.mxu0 0.0
    %271 = vmatpush2.msra.mxu0 0.0
    %272 = vmatprep.subr.mxu0 0.0
    %273 = vmatpush2.msra.mxu0 0.0
    %274 = vmatprep.subr.mxu0 0.0
    %275 = vmatpush2.msra.mxu0 0.0
    %276 = vmatprep.mubr.f32.mxu0 0.0
    %277 = vmatmul.mubr.f32.gmra.mxu0 %v207
    %v278 = vpop.f32.mrf.mxu0
    %v279 = vadd.f32 %v198, %v278
    %v280 = vpop.f32.mrf.mxu0
    %281 = vmatprep.mubr.f32.mxu0 0.0
    %282 = vmatmul.mubr.f32.gmra.mxu0 %v210
    %v283 = vpop.f32.mrf.mxu0
    %v284 = vadd.f32 %v203, %v283
    %v285 = vpop.f32.mrf.mxu0
    %286 = vdwg.mxu0
    %s287 = scalar_lea.vmem %s1, 32
    %v288 = vld [vmem:[%s287] sm:$0xff]
    %v289 = vld [vmem:[%s287 + $0x8] sm:$0xff]
    %v291 = vsel %vm126, %v119, 0
    %v294 = vsel %vm126, %v120, 0
    %296 = vmatprep.subr.mxu0 0.0
    %297 = vmatpush1.msra.mxu0 0.0
    %298 = vmatprep.subr.mxu0 0.0
    %299 = vmatpush1.msra.mxu0 0.0
    %300 = vmatprep.subr.mxu0 0.0
    %301 = vmatpush1.msra.mxu0 0.0
    %302 = vmatprep.subr.mxu0 0.0
    %303 = vmatpush1.msra.mxu0 0.0
    %304 = vmatprep.subr.mxu0 0.0
    %305 = vmatpush1.msra.mxu0 0.0
    %306 = vmatprep.subr.mxu0 0.0
    %307 = vmatpush1.msra.mxu0 0.0
    %308 = vmatprep.subr.mxu0 0.0
    %309 = vmatpush1.msra.mxu0 0.0
    %310 = vmatprep.subr.mxu0 0.0
    %311 = vmatpush1.msra.mxu0 0.0
    %312 = vmatprep.subr.mxu0 0.0
    %313 = vmatpush1.msra.mxu0 0.0
    %314 = vmatprep.subr.mxu0 0.0
    %315 = vmatpush1.msra.mxu0 0.0
    %316 = vmatprep.subr.mxu0 0.0
    %317 = vmatpush1.msra.mxu0 0.0
    %318 = vmatprep.subr.mxu0 0.0
    %319 = vmatpush1.msra.mxu0 0.0
    %320 = vmatprep.subr.mxu0 0.0
    %321 = vmatpush1.msra.mxu0 0.0
    %322 = vmatprep.subr.mxu0 0.0
    %323 = vmatpush1.msra.mxu0 0.0
    %324 = vmatprep.subr.mxu0 0.0
    %325 = vmatpush1.msra.mxu0 %v289
    %326 = vmatprep.subr.mxu0 0.0
    %327 = vmatpush1.msra.mxu0 %v288
    %328 = vmatprep.subr.mxu0 0.0
    %329 = vmatpush2.msra.mxu0 0.0
    %330 = vmatprep.subr.mxu0 0.0
    %331 = vmatpush2.msra.mxu0 0.0
    %332 = vmatprep.subr.mxu0 0.0
    %333 = vmatpush2.msra.mxu0 0.0
    %334 = vmatprep.subr.mxu0 0.0
    %335 = vmatpush2.msra.mxu0 0.0
    %336 = vmatprep.subr.mxu0 0.0
    %337 = vmatpush2.msra.mxu0 0.0
    %338 = vmatprep.subr.mxu0 0.0
    %339 = vmatpush2.msra.mxu0 0.0
    %340 = vmatprep.subr.mxu0 0.0
    %341 = vmatpush2.msra.mxu0 0.0
    %342 = vmatprep.subr.mxu0 0.0
    %343 = vmatpush2.msra.mxu0 0.0
    %344 = vmatprep.subr.mxu0 0.0
    %345 = vmatpush2.msra.mxu0 0.0
    %346 = vmatprep.subr.mxu0 0.0
    %347 = vmatpush2.msra.mxu0 0.0
    %348 = vmatprep.subr.mxu0 0.0
    %349 = vmatpush2.msra.mxu0 0.0
    %350 = vmatprep.subr.mxu0 0.0
    %351 = vmatpush2.msra.mxu0 0.0
    %352 = vmatprep.subr.mxu0 0.0
    %353 = vmatpush2.msra.mxu0 0.0
    %354 = vmatprep.subr.mxu0 0.0
    %355 = vmatpush2.msra.mxu0 0.0
    %356 = vmatprep.subr.mxu0 0.0
    %357 = vmatpush2.msra.mxu0 0.0
    %358 = vmatprep.subr.mxu0 0.0
    %359 = vmatpush2.msra.mxu0 0.0
    %360 = vmatprep.mubr.f32.mxu0 0.0
    %361 = vmatmul.mubr.f32.gmra.mxu0 %v291
    %v362 = vpop.f32.mrf.mxu0
    %v363 = vadd.f32 0.0, %v362
    %v364 = vpop.f32.mrf.mxu0
    %365 = vmatprep.mubr.f32.mxu0 0.0
    %366 = vmatmul.mubr.f32.gmra.mxu0 %v294
    %v367 = vpop.f32.mrf.mxu0
    %v368 = vadd.f32 0.0, %v367
    %v369 = vpop.f32.mrf.mxu0
    %370 = vdwg.mxu0
    %v371 = vadd.f32 %v279, %v363
    %v372 = vadd.f32 %v284, %v368
    %v373 = vld [vmem:[%s2] sm:$0x1]
    %v375 = vlaneseq
    %v376 = vshrl.u32 %v375, 7
    %v377 = vsub.s32 0, %v376
    %v378 = vrot.slane %v373, %v377
    %v380 = vadd.f32 %v371, %v378
    %v381 = vadd.f32 %v372, %v378
    %v382 = vld [vmem:[%s3] sm:$0x1]
    %v383 = vld [vmem:[%s4] sm:$0x1]
    %v384 = vsel %vm126, %v380, 0.0
    %385 = vadd.xlane.f32.xlu0 %v384
    %v386 = vpop.xlane.xlu0 %385
    %v387 = vsel %vm126, %v381, 0.0
    %388 = vadd.xlane.f32.xlu0 %v387
    %v389 = vpop.xlane.xlu0 %388
    %v390 = vrcp.pop 16.0
    %v391 = vmul.f32 %v386, %v390
    %v392 = vmul.f32 %v389, %v390
    %v393 = vsub.f32 %v380, %v391
    %v394 = vsub.f32 %v381, %v392
    %v395 = vmul.f32 %v393, %v393
    %v396 = vmul.f32 %v394, %v394
    %v397 = vsel %vm126, %v395, 0.0
    %398 = vadd.xlane.f32.xlu0 %v397
    %v399 = vpop.xlane.xlu0 %398
    %v400 = vsel %vm126, %v396, 0.0
    %401 = vadd.xlane.f32.xlu0 %v400
    %v402 = vpop.xlane.xlu0 %401
    %v403 = vmul.f32 %v399, %v390
    %v404 = vmul.f32 %v402, %v390
    %v405 = vadd.f32 %v403, 1e-05
    %v406 = vadd.f32 %v404, 1e-05
    %v407 = vrsqrt.pop %v405
    %v408 = vrsqrt.pop %v406
    %v409 = vmul.f32 %v393, %v407
    %v410 = vmul.f32 %v394, %v408
    %v412 = vlaneseq
    %v413 = vshrl.u32 %v412, 7
    %v414 = vsub.s32 0, %v413
    %v415 = vrot.slane %v382, %v414
    %v417 = vmul.f32 %v409, %v415
    %v418 = vmul.f32 %v410, %v415
    %v420 = vlaneseq
    %v421 = vshrl.u32 %v420, 7
    %v422 = vsub.s32 0, %v421
    %v423 = vrot.slane %v383, %v422
    %v425 = vadd.f32 %v417, %v423
    %v426 = vadd.f32 %v418, %v423
    %v427 = vmax.f32 %v425, 0.0
    %v428 = vmax.f32 %v426, 0.0
    %v431 = vrot.slane %v427, 7
    %v432 = vrot.slane %v428, 7
    %v435 = vsel %vm111, 0.0, %v431
    %v436 = vsel %vm111, 0.0, %v432
    %v437 = vrot.slane %v427, 1
    %v438 = vrot.slane %v428, 1
    %v441 = vsel %vm118, %v437, 0.0
    %v442 = vsel %vm118, %v438, 0.0
    %v443 = vld [vmem:[%s5] sm:$0xff]
    %v444 = vld [vmem:[%s5 + $0x8] sm:$0xff]
    %s445 = scalar_lea.vmem %s5, 16
    %v446 = vld [vmem:[%s445] sm:$0xff]
    %v447 = vld [vmem:[%s445 + $0x8] sm:$0xff]
    %v448 = vsel %vm126, %v427, 0
    %v450 = vsel %vm126, %v428, 0
    %452 = vmatprep.subr.mxu0 0.0
    %453 = vmatpush1.msra.mxu0 0.0
    %454 = vmatprep.subr.mxu0 0.0
    %455 = vmatpush1.msra.mxu0 0.0
    %456 = vmatprep.subr.mxu0 0.0
    %457 = vmatpush1.msra.mxu0 0.0
    %458 = vmatprep.subr.mxu0 0.0
    %459 = vmatpush1.msra.mxu0 0.0
    %460 = vmatprep.subr.mxu0 0.0
    %461 = vmatpush1.msra.mxu0 0.0
    %462 = vmatprep.subr.mxu0 0.0
    %463 = vmatpush1.msra.mxu0 0.0
    %464 = vmatprep.subr.mxu0 0.0
    %465 = vmatpush1.msra.mxu0 0.0
    %466 = vmatprep.subr.mxu0 0.0
    %467 = vmatpush1.msra.mxu0 0.0
    %468 = vmatprep.subr.mxu0 0.0
    %469 = vmatpush1.msra.mxu0 0.0
    %470 = vmatprep.subr.mxu0 0.0
    %471 = vmatpush1.msra.mxu0 0.0
    %472 = vmatprep.subr.mxu0 0.0
    %473 = vmatpush1.msra.mxu0 0.0
    %474 = vmatprep.subr.mxu0 0.0
    %475 = vmatpush1.msra.mxu0 0.0
    %476 = vmatprep.subr.mxu0 0.0
    %477 = vmatpush1.msra.mxu0 0.0
    %478 = vmatprep.subr.mxu0 0.0
    %479 = vmatpush1.msra.mxu0 0.0
    %480 = vmatprep.subr.mxu0 0.0
    %481 = vmatpush1.msra.mxu0 %v447
    %482 = vmatprep.subr.mxu0 0.0
    %483 = vmatpush1.msra.mxu0 %v446
    %484 = vmatprep.subr.mxu0 0.0
    %485 = vmatpush2.msra.mxu0 0.0
    %486 = vmatprep.subr.mxu0 0.0
    %487 = vmatpush2.msra.mxu0 0.0
    %488 = vmatprep.subr.mxu0 0.0
    %489 = vmatpush2.msra.mxu0 0.0
    %490 = vmatprep.subr.mxu0 0.0
    %491 = vmatpush2.msra.mxu0 0.0
    %492 = vmatprep.subr.mxu0 0.0
    %493 = vmatpush2.msra.mxu0 0.0
    %494 = vmatprep.subr.mxu0 0.0
    %495 = vmatpush2.msra.mxu0 0.0
    %496 = vmatprep.subr.mxu0 0.0
    %497 = vmatpush2.msra.mxu0 0.0
    %498 = vmatprep.subr.mxu0 0.0
    %499 = vmatpush2.msra.mxu0 0.0
    %500 = vmatprep.subr.mxu0 0.0
    %501 = vmatpush2.msra.mxu0 0.0
    %502 = vmatprep.subr.mxu0 0.0
    %503 = vmatpush2.msra.mxu0 0.0
    %504 = vmatprep.subr.mxu0 0.0
    %505 = vmatpush2.msra.mxu0 0.0
    %506 = vmatprep.subr.mxu0 0.0
    %507 = vmatpush2.msra.mxu0 0.0
    %508 = vmatprep.subr.mxu0 0.0
    %509 = vmatpush2.msra.mxu0 0.0
    %510 = vmatprep.subr.mxu0 0.0
    %511 = vmatpush2.msra.mxu0 0.0
    %512 = vmatprep.subr.mxu0 0.0
    %513 = vmatpush2.msra.mxu0 0.0
    %514 = vmatprep.subr.mxu0 0.0
    %515 = vmatpush2.msra.mxu0 0.0
    %516 = vmatprep.mubr.f32.mxu0 0.0
    %517 = vmatmul.mubr.f32.gmra.mxu0 %v448
    %v518 = vpop.f32.mrf.mxu0
    %v519 = vadd.f32 0.0, %v518
    %v520 = vpop.f32.mrf.mxu0
    %521 = vmatprep.mubr.f32.mxu0 0.0
    %522 = vmatmul.mubr.f32.gmra.mxu0 %v450
    %v523 = vpop.f32.mrf.mxu0
    %v524 = vadd.f32 0.0, %v523
    %v525 = vpop.f32.mrf.mxu0
    %526 = vdwg.mxu0
    %v528 = vsel %vm126, %v435, 0
    %v531 = vsel %vm126, %v436, 0
    %533 = vmatprep.subr.mxu0 0.0
    %534 = vmatpush1.msra.mxu0 0.0
    %535 = vmatprep.subr.mxu0 0.0
    %536 = vmatpush1.msra.mxu0 0.0
    %537 = vmatprep.subr.mxu0 0.0
    %538 = vmatpush1.msra.mxu0 0.0
    %539 = vmatprep.subr.mxu0 0.0
    %540 = vmatpush1.msra.mxu0 0.0
    %541 = vmatprep.subr.mxu0 0.0
    %542 = vmatpush1.msra.mxu0 0.0
    %543 = vmatprep.subr.mxu0 0.0
    %544 = vmatpush1.msra.mxu0 0.0
    %545 = vmatprep.subr.mxu0 0.0
    %546 = vmatpush1.msra.mxu0 0.0
    %547 = vmatprep.subr.mxu0 0.0
    %548 = vmatpush1.msra.mxu0 0.0
    %549 = vmatprep.subr.mxu0 0.0
    %550 = vmatpush1.msra.mxu0 0.0
    %551 = vmatprep.subr.mxu0 0.0
    %552 = vmatpush1.msra.mxu0 0.0
    %553 = vmatprep.subr.mxu0 0.0
    %554 = vmatpush1.msra.mxu0 0.0
    %555 = vmatprep.subr.mxu0 0.0
    %556 = vmatpush1.msra.mxu0 0.0
    %557 = vmatprep.subr.mxu0 0.0
    %558 = vmatpush1.msra.mxu0 0.0
    %559 = vmatprep.subr.mxu0 0.0
    %560 = vmatpush1.msra.mxu0 0.0
    %561 = vmatprep.subr.mxu0 0.0
    %562 = vmatpush1.msra.mxu0 %v444
    %563 = vmatprep.subr.mxu0 0.0
    %564 = vmatpush1.msra.mxu0 %v443
    %565 = vmatprep.subr.mxu0 0.0
    %566 = vmatpush2.msra.mxu0 0.0
    %567 = vmatprep.subr.mxu0 0.0
    %568 = vmatpush2.msra.mxu0 0.0
    %569 = vmatprep.subr.mxu0 0.0
    %570 = vmatpush2.msra.mxu0 0.0
    %571 = vmatprep.subr.mxu0 0.0
    %572 = vmatpush2.msra.mxu0 0.0
    %573 = vmatprep.subr.mxu0 0.0
    %574 = vmatpush2.msra.mxu0 0.0
    %575 = vmatprep.subr.mxu0 0.0
    %576 = vmatpush2.msra.mxu0 0.0
    %577 = vmatprep.subr.mxu0 0.0
    %578 = vmatpush2.msra.mxu0 0.0
    %579 = vmatprep.subr.mxu0 0.0
    %580 = vmatpush2.msra.mxu0 0.0
    %581 = vmatprep.subr.mxu0 0.0
    %582 = vmatpush2.msra.mxu0 0.0
    %583 = vmatprep.subr.mxu0 0.0
    %584 = vmatpush2.msra.mxu0 0.0
    %585 = vmatprep.subr.mxu0 0.0
    %586 = vmatpush2.msra.mxu0 0.0
    %587 = vmatprep.subr.mxu0 0.0
    %588 = vmatpush2.msra.mxu0 0.0
    %589 = vmatprep.subr.mxu0 0.0
    %590 = vmatpush2.msra.mxu0 0.0
    %591 = vmatprep.subr.mxu0 0.0
    %592 = vmatpush2.msra.mxu0 0.0
    %593 = vmatprep.subr.mxu0 0.0
    %594 = vmatpush2.msra.mxu0 0.0
    %595 = vmatprep.subr.mxu0 0.0
    %596 = vmatpush2.msra.mxu0 0.0
    %597 = vmatprep.mubr.f32.mxu0 0.0
    %598 = vmatmul.mubr.f32.gmra.mxu0 %v528
    %v599 = vpop.f32.mrf.mxu0
    %v600 = vadd.f32 %v519, %v599
    %v601 = vpop.f32.mrf.mxu0
    %602 = vmatprep.mubr.f32.mxu0 0.0
    %603 = vmatmul.mubr.f32.gmra.mxu0 %v531
    %v604 = vpop.f32.mrf.mxu0
    %v605 = vadd.f32 %v524, %v604
    %v606 = vpop.f32.mrf.mxu0
    %607 = vdwg.mxu0
    %s608 = scalar_lea.vmem %s5, 32
    %v609 = vld [vmem:[%s608] sm:$0xff]
    %v610 = vld [vmem:[%s608 + $0x8] sm:$0xff]
    %v612 = vsel %vm126, %v441, 0
    %v615 = vsel %vm126, %v442, 0
    %617 = vmatprep.subr.mxu0 0.0
    %618 = vmatpush1.msra.mxu0 0.0
    %619 = vmatprep.subr.mxu0 0.0
    %620 = vmatpush1.msra.mxu0 0.0
    %621 = vmatprep.subr.mxu0 0.0
    %622 = vmatpush1.msra.mxu0 0.0
    %623 = vmatprep.subr.mxu0 0.0
    %624 = vmatpush1.msra.mxu0 0.0
    %625 = vmatprep.subr.mxu0 0.0
    %626 = vmatpush1.msra.mxu0 0.0
    %627 = vmatprep.subr.mxu0 0.0
    %628 = vmatpush1.msra.mxu0 0.0
    %629 = vmatprep.subr.mxu0 0.0
    %630 = vmatpush1.msra.mxu0 0.0
    %631 = vmatprep.subr.mxu0 0.0
    %632 = vmatpush1.msra.mxu0 0.0
    %633 = vmatprep.subr.mxu0 0.0
    %634 = vmatpush1.msra.mxu0 0.0
    %635 = vmatprep.subr.mxu0 0.0
    %636 = vmatpush1.msra.mxu0 0.0
    %637 = vmatprep.subr.mxu0 0.0
    %638 = vmatpush1.msra.mxu0 0.0
    %639 = vmatprep.subr.mxu0 0.0
    %640 = vmatpush1.msra.mxu0 0.0
    %641 = vmatprep.subr.mxu0 0.0
    %642 = vmatpush1.msra.mxu0 0.0
    %643 = vmatprep.subr.mxu0 0.0
    %644 = vmatpush1.msra.mxu0 0.0
    %645 = vmatprep.subr.mxu0 0.0
    %646 = vmatpush1.msra.mxu0 %v610
    %647 = vmatprep.subr.mxu0 0.0
    %648 = vmatpush1.msra.mxu0 %v609
    %649 = vmatprep.subr.mxu0 0.0
    %650 = vmatpush2.msra.mxu0 0.0
    %651 = vmatprep.subr.mxu0 0.0
    %652 = vmatpush2.msra.mxu0 0.0
    %653 = vmatprep.subr.mxu0 0.0
    %654 = vmatpush2.msra.mxu0 0.0
    %655 = vmatprep.subr.mxu0 0.0
    %656 = vmatpush2.msra.mxu0 0.0
    %657 = vmatprep.subr.mxu0 0.0
    %658 = vmatpush2.msra.mxu0 0.0
    %659 = vmatprep.subr.mxu0 0.0
    %660 = vmatpush2.msra.mxu0 0.0
    %661 = vmatprep.subr.mxu0 0.0
    %662 = vmatpush2.msra.mxu0 0.0
    %663 = vmatprep.subr.mxu0 0.0
    %664 = vmatpush2.msra.mxu0 0.0
    %665 = vmatprep.subr.mxu0 0.0
    %666 = vmatpush2.msra.mxu0 0.0
    %667 = vmatprep.subr.mxu0 0.0
    %668 = vmatpush2.msra.mxu0 0.0
    %669 = vmatprep.subr.mxu0 0.0
    %670 = vmatpush2.msra.mxu0 0.0
    %671 = vmatprep.subr.mxu0 0.0
    %672 = vmatpush2.msra.mxu0 0.0
    %673 = vmatprep.subr.mxu0 0.0
    %674 = vmatpush2.msra.mxu0 0.0
    %675 = vmatprep.subr.mxu0 0.0
    %676 = vmatpush2.msra.mxu0 0.0
    %677 = vmatprep.subr.mxu0 0.0
    %678 = vmatpush2.msra.mxu0 0.0
    %679 = vmatprep.subr.mxu0 0.0
    %680 = vmatpush2.msra.mxu0 0.0
    %681 = vmatprep.mubr.f32.mxu0 0.0
    %682 = vmatmul.mubr.f32.gmra.mxu0 %v612
    %v683 = vpop.f32.mrf.mxu0
    %v684 = vadd.f32 0.0, %v683
    %v685 = vpop.f32.mrf.mxu0
    %686 = vmatprep.mubr.f32.mxu0 0.0
    %687 = vmatmul.mubr.f32.gmra.mxu0 %v615
    %v688 = vpop.f32.mrf.mxu0
    %v689 = vadd.f32 0.0, %v688
    %v690 = vpop.f32.mrf.mxu0
    %691 = vdwg.mxu0
    %v692 = vadd.f32 %v600, %v684
    %v693 = vadd.f32 %v605, %v689
    %v694 = vld [vmem:[%s6] sm:$0x1]
    %v696 = vlaneseq
    %v697 = vshrl.u32 %v696, 7
    %v698 = vsub.s32 0, %v697
    %v699 = vrot.slane %v694, %v698
    %v701 = vadd.f32 %v692, %v699
    %v702 = vadd.f32 %v693, %v699
    %v703 = vld [vmem:[%s7] sm:$0x1]
    %v704 = vld [vmem:[%s8] sm:$0x1]
    %v705 = vsel %vm126, %v701, 0.0
    %706 = vadd.xlane.f32.xlu0 %v705
    %v707 = vpop.xlane.xlu0 %706
    %v708 = vsel %vm126, %v702, 0.0
    %709 = vadd.xlane.f32.xlu0 %v708
    %v710 = vpop.xlane.xlu0 %709
    %v711 = vmul.f32 %v707, %v390
    %v712 = vmul.f32 %v710, %v390
    %v713 = vsub.f32 %v701, %v711
    %v714 = vsub.f32 %v702, %v712
    %v715 = vmul.f32 %v713, %v713
    %v716 = vmul.f32 %v714, %v714
    %v717 = vsel %vm126, %v715, 0.0
    %718 = vadd.xlane.f32.xlu0 %v717
    %v719 = vpop.xlane.xlu0 %718
    %v720 = vsel %vm126, %v716, 0.0
    %721 = vadd.xlane.f32.xlu0 %v720
    %v722 = vpop.xlane.xlu0 %721
    %v723 = vmul.f32 %v719, %v390
    %v724 = vmul.f32 %v722, %v390
    %v725 = vadd.f32 %v723, 1e-05
    %v726 = vadd.f32 %v724, 1e-05
    %v727 = vrsqrt.pop %v725
    %v728 = vrsqrt.pop %v726
    %v729 = vmul.f32 %v713, %v727
    %v730 = vmul.f32 %v714, %v728
    %v732 = vlaneseq
    %v733 = vshrl.u32 %v732, 7
    %v734 = vsub.s32 0, %v733
    %v735 = vrot.slane %v703, %v734
    %v737 = vmul.f32 %v729, %v735
    %v738 = vmul.f32 %v730, %v735
    %v740 = vlaneseq
    %v741 = vshrl.u32 %v740, 7
    %v742 = vsub.s32 0, %v741
    %v743 = vrot.slane %v704, %v742
    %v745 = vadd.f32 %v737, %v743
    %v746 = vadd.f32 %v738, %v743
    %v747 = vmax.f32 %v745, 0.0
    %v748 = vmax.f32 %v746, 0.0
    %v749 = vadd.f32 %v747, %v103
    %v750 = vadd.f32 %v748, %v104
    %v751 = vmax.f32 %v749, 0.0
    %v752 = vmax.f32 %v750, 0.0
    %v753 = vld [vmem:[%s9] sm:$0xff]
    %v754 = vld [vmem:[%s9 + $0x8] sm:$0xff]
    %v755 = vld [vmem:[%s11] sm:$0x1]
    %v757 = vlaneseq
    %v758 = vshrl.u32 %v757, 7
    %v759 = vsub.s32 0, %v758
    %v760 = vrot.slane %v755, %v759
    %v763 = vsel %vm126, %v751, 0
    %v766 = vsel %vm126, %v752, 0
    %768 = vmatprep.subr.mxu0 0.0
    %769 = vmatpush1.msra.mxu0 0.0
    %770 = vmatprep.subr.mxu0 0.0
    %771 = vmatpush1.msra.mxu0 0.0
    %772 = vmatprep.subr.mxu0 0.0
    %773 = vmatpush1.msra.mxu0 0.0
    %774 = vmatprep.subr.mxu0 0.0
    %775 = vmatpush1.msra.mxu0 0.0
    %776 = vmatprep.subr.mxu0 0.0
    %777 = vmatpush1.msra.mxu0 0.0
    %778 = vmatprep.subr.mxu0 0.0
    %779 = vmatpush1.msra.mxu0 0.0
    %780 = vmatprep.subr.mxu0 0.0
    %781 = vmatpush1.msra.mxu0 0.0
    %782 = vmatprep.subr.mxu0 0.0
    %783 = vmatpush1.msra.mxu0 0.0
    %784 = vmatprep.subr.mxu0 0.0
    %785 = vmatpush1.msra.mxu0 0.0
    %786 = vmatprep.subr.mxu0 0.0
    %787 = vmatpush1.msra.mxu0 0.0
    %788 = vmatprep.subr.mxu0 0.0
    %789 = vmatpush1.msra.mxu0 0.0
    %790 = vmatprep.subr.mxu0 0.0
    %791 = vmatpush1.msra.mxu0 0.0
    %792 = vmatprep.subr.mxu0 0.0
    %793 = vmatpush1.msra.mxu0 0.0
    %794 = vmatprep.subr.mxu0 0.0
    %795 = vmatpush1.msra.mxu0 0.0
    %796 = vmatprep.subr.mxu0 0.0
    %797 = vmatpush1.msra.mxu0 %v754
    %798 = vmatprep.subr.mxu0 0.0
    %799 = vmatpush1.msra.mxu0 %v753
    %800 = vmatprep.subr.mxu0 0.0
    %801 = vmatpush2.msra.mxu0 0.0
    %802 = vmatprep.subr.mxu0 0.0
    %803 = vmatpush2.msra.mxu0 0.0
    %804 = vmatprep.subr.mxu0 0.0
    %805 = vmatpush2.msra.mxu0 0.0
    %806 = vmatprep.subr.mxu0 0.0
    %807 = vmatpush2.msra.mxu0 0.0
    %808 = vmatprep.subr.mxu0 0.0
    %809 = vmatpush2.msra.mxu0 0.0
    %810 = vmatprep.subr.mxu0 0.0
    %811 = vmatpush2.msra.mxu0 0.0
    %812 = vmatprep.subr.mxu0 0.0
    %813 = vmatpush2.msra.mxu0 0.0
    %814 = vmatprep.subr.mxu0 0.0
    %815 = vmatpush2.msra.mxu0 0.0
    %816 = vmatprep.subr.mxu0 0.0
    %817 = vmatpush2.msra.mxu0 0.0
    %818 = vmatprep.subr.mxu0 0.0
    %819 = vmatpush2.msra.mxu0 0.0
    %820 = vmatprep.subr.mxu0 0.0
    %821 = vmatpush2.msra.mxu0 0.0
    %822 = vmatprep.subr.mxu0 0.0
    %823 = vmatpush2.msra.mxu0 0.0
    %824 = vmatprep.subr.mxu0 0.0
    %825 = vmatpush2.msra.mxu0 0.0
    %826 = vmatprep.subr.mxu0 0.0
    %827 = vmatpush2.msra.mxu0 0.0
    %828 = vmatprep.subr.mxu0 0.0
    %829 = vmatpush2.msra.mxu0 0.0
    %830 = vmatprep.subr.mxu0 0.0
    %831 = vmatpush2.msra.mxu0 0.0
    %832 = vmatprep.mubr.f32.mxu0 0.0
    %833 = vmatmul.mubr.f32.gmra.mxu0 %v763
    %v834 = vpop.f32.mrf.mxu0
    %v835 = vadd.f32 %v760, %v834
    %v836 = vpop.f32.mrf.mxu0
    %837 = vmatprep.mubr.f32.mxu0 0.0
    %838 = vmatmul.mubr.f32.gmra.mxu0 %v766
    %v839 = vpop.f32.mrf.mxu0
    %v840 = vadd.f32 %v760, %v839
    %v841 = vpop.f32.mrf.mxu0
    %842 = vdwg.mxu0
    %v843 = vld [vmem:[%s10] sm:$0xff]
    %v844 = vld [vmem:[%s10 + $0x8] sm:$0xff]
    %v845 = vld [vmem:[%s10 + $0x10] sm:$0xff]
    %v846 = vld [vmem:[%s10 + $0x18] sm:$0xff]
    %vm847 = vcmask 261120
    %v849 = vsel %vm847, 0.0, 0
    %851 = vmatprep.subr.mxu0 0.0
    %852 = vmatpush1.msra.mxu0 0.0
    %853 = vmatprep.subr.mxu0 0.0
    %854 = vmatpush1.msra.mxu0 0.0
    %855 = vmatprep.subr.mxu0 0.0
    %856 = vmatpush1.msra.mxu0 0.0
    %857 = vmatprep.subr.mxu0 0.0
    %858 = vmatpush1.msra.mxu0 0.0
    %859 = vmatprep.subr.mxu0 0.0
    %860 = vmatpush1.msra.mxu0 0.0
    %861 = vmatprep.subr.mxu0 0.0
    %862 = vmatpush1.msra.mxu0 0.0
    %863 = vmatprep.subr.mxu0 0.0
    %864 = vmatpush1.msra.mxu0 0.0
    %865 = vmatprep.subr.mxu0 0.0
    %866 = vmatpush1.msra.mxu0 0.0
    %867 = vmatprep.subr.mxu0 0.0
    %868 = vmatpush1.msra.mxu0 0.0
    %869 = vmatprep.subr.mxu0 0.0
    %870 = vmatpush1.msra.mxu0 0.0
    %871 = vmatprep.subr.mxu0 0.0
    %872 = vmatpush1.msra.mxu0 0.0
    %873 = vmatprep.subr.mxu0 0.0
    %874 = vmatpush1.msra.mxu0 0.0
    %875 = vmatprep.subr.mxu0 0.0
    %876 = vmatpush1.msra.mxu0 %v846
    %877 = vmatprep.subr.mxu0 0.0
    %878 = vmatpush1.msra.mxu0 %v845
    %879 = vmatprep.subr.mxu0 0.0
    %880 = vmatpush1.msra.mxu0 %v844
    %881 = vmatprep.subr.mxu0 0.0
    %882 = vmatpush1.msra.mxu0 %v843
    %883 = vmatprep.subr.mxu0 0.0
    %884 = vmatpush2.msra.mxu0 0.0
    %885 = vmatprep.subr.mxu0 0.0
    %886 = vmatpush2.msra.mxu0 0.0
    %887 = vmatprep.subr.mxu0 0.0
    %888 = vmatpush2.msra.mxu0 0.0
    %889 = vmatprep.subr.mxu0 0.0
    %890 = vmatpush2.msra.mxu0 0.0
    %891 = vmatprep.subr.mxu0 0.0
    %892 = vmatpush2.msra.mxu0 0.0
    %893 = vmatprep.subr.mxu0 0.0
    %894 = vmatpush2.msra.mxu0 0.0
    %895 = vmatprep.subr.mxu0 0.0
    %896 = vmatpush2.msra.mxu0 0.0
    %897 = vmatprep.subr.mxu0 0.0
    %898 = vmatpush2.msra.mxu0 0.0
    %899 = vmatprep.subr.mxu0 0.0
    %900 = vmatpush2.msra.mxu0 0.0
    %901 = vmatprep.subr.mxu0 0.0
    %902 = vmatpush2.msra.mxu0 0.0
    %903 = vmatprep.subr.mxu0 0.0
    %904 = vmatpush2.msra.mxu0 0.0
    %905 = vmatprep.subr.mxu0 0.0
    %906 = vmatpush2.msra.mxu0 0.0
    %907 = vmatprep.subr.mxu0 0.0
    %908 = vmatpush2.msra.mxu0 0.0
    %909 = vmatprep.subr.mxu0 0.0
    %910 = vmatpush2.msra.mxu0 0.0
    %911 = vmatprep.subr.mxu0 0.0
    %912 = vmatpush2.msra.mxu0 0.0
    %913 = vmatprep.subr.mxu0 0.0
    %914 = vmatpush2.msra.mxu0 0.0
    %915 = vmatprep.mubr.f32.mxu0 0.0
    %916 = vmatmul.mubr.f32.gmra.mxu0 %v849
    %v917 = vpop.f32.mrf.mxu0
    %v918 = vadd.f32 0.0, %v917
    %v919 = vpop.f32.mrf.mxu0
    %920 = vdwg.mxu0
    %v922 = vrot.slane %v918, 1
    %v925 = vadd.f32 %v835, %v918
    %v926 = vadd.f32 %v840, %v922
    %v927 = vxor.u32 %v925, 2147483648
    %v928 = vxor.u32 %v926, 2147483648
    %v929 = vmul.f32 %v927, 1.442695
    %v930 = vpow.pop %v929
    %v931 = vmul.f32 %v928, 1.442695
    %v932 = vpow.pop %v931
    %v933 = vadd.f32 %v930, 1.0
    %v934 = vadd.f32 %v932, 1.0
    %v935 = vrcp.pop %v933
    %v936 = vmul.f32 1.0, %v935
    %v937 = vrcp.pop %v934
    %v938 = vmul.f32 1.0, %v937
    %v939 = vtanh.pop %v925
    %v940 = vtanh.pop %v926
    %v941 = vmul.f32 %v936, 0.0
    %v942 = vmul.f32 %v938, 0.0
    %945 = vrot.lane.b32.xlu0 %v939, 64
    %v946 = vpop.permute.xlu0 %945
    %947 = vrot.lane.b32.xlu0 %v940, 64
    %v948 = vpop.permute.xlu0 %947
    %v951 = vmul.f32 %v936, %v946
    %v952 = vmul.f32 %v938, %v948
    %955 = vrot.lane.b32.xlu0 %v951, 32
    %v956 = vpop.permute.xlu0 %955
    %957 = vrot.lane.b32.xlu0 %v952, 32
    %v958 = vpop.permute.xlu0 %957
    %v961 = vadd.f32 %v941, %v956
    %v962 = vadd.f32 %v942, %v958
    %v963 = vtanh.pop %v961
    %v964 = vtanh.pop %v962
    %967 = vrot.lane.b32.xlu0 %v963, 64
    %v968 = vpop.permute.xlu0 %967
    %969 = vrot.lane.b32.xlu0 %v964, 64
    %v970 = vpop.permute.xlu0 %969
    %v973 = vmul.f32 %v936, %v968
    %v974 = vmul.f32 %v938, %v970
    %v977 = vrot.slane %v974, 7
    %vm978 = vcmask 1041409
    %v979 = vsel %vm978, %v977, %v973
    %980 = vrot.lane.b32.xlu0 %v979, 32
    %v981 = vpop.permute.xlu0 %980
    %v982 = vsel %vm847, %v981, 0
    %984 = vmatprep.subr.mxu0 0.0
    %985 = vmatpush1.msra.mxu0 0.0
    %986 = vmatprep.subr.mxu0 0.0
    %987 = vmatpush1.msra.mxu0 0.0
    %988 = vmatprep.subr.mxu0 0.0
    %989 = vmatpush1.msra.mxu0 0.0
    %990 = vmatprep.subr.mxu0 0.0
    %991 = vmatpush1.msra.mxu0 0.0
    %992 = vmatprep.subr.mxu0 0.0
    %993 = vmatpush1.msra.mxu0 0.0
    %994 = vmatprep.subr.mxu0 0.0
    %995 = vmatpush1.msra.mxu0 0.0
    %996 = vmatprep.subr.mxu0 0.0
    %997 = vmatpush1.msra.mxu0 0.0
    %998 = vmatprep.subr.mxu0 0.0
    %999 = vmatpush1.msra.mxu0 0.0
    %1000 = vmatprep.subr.mxu0 0.0
    %1001 = vmatpush1.msra.mxu0 0.0
    %1002 = vmatprep.subr.mxu0 0.0
    %1003 = vmatpush1.msra.mxu0 0.0
    %1004 = vmatprep.subr.mxu0 0.0
    %1005 = vmatpush1.msra.mxu0 0.0
    %1006 = vmatprep.subr.mxu0 0.0
    %1007 = vmatpush1.msra.mxu0 0.0
    %1008 = vmatprep.subr.mxu0 0.0
    %1009 = vmatpush1.msra.mxu0 %v846
    %1010 = vmatprep.subr.mxu0 0.0
    %1011 = vmatpush1.msra.mxu0 %v845
    %1012 = vmatprep.subr.mxu0 0.0
    %1013 = vmatpush1.msra.mxu0 %v844
    %1014 = vmatprep.subr.mxu0 0.0
    %1015 = vmatpush1.msra.mxu0 %v843
    %1016 = vmatprep.subr.mxu0 0.0
    %1017 = vmatpush2.msra.mxu0 0.0
    %1018 = vmatprep.subr.mxu0 0.0
    %1019 = vmatpush2.msra.mxu0 0.0
    %1020 = vmatprep.subr.mxu0 0.0
    %1021 = vmatpush2.msra.mxu0 0.0
    %1022 = vmatprep.subr.mxu0 0.0
    %1023 = vmatpush2.msra.mxu0 0.0
    %1024 = vmatprep.subr.mxu0 0.0
    %1025 = vmatpush2.msra.mxu0 0.0
    %1026 = vmatprep.subr.mxu0 0.0
    %1027 = vmatpush2.msra.mxu0 0.0
    %1028 = vmatprep.subr.mxu0 0.0
    %1029 = vmatpush2.msra.mxu0 0.0
    %1030 = vmatprep.subr.mxu0 0.0
    %1031 = vmatpush2.msra.mxu0 0.0
    %1032 = vmatprep.subr.mxu0 0.0
    %1033 = vmatpush2.msra.mxu0 0.0
    %1034 = vmatprep.subr.mxu0 0.0
    %1035 = vmatpush2.msra.mxu0 0.0
    %1036 = vmatprep.subr.mxu0 0.0
    %1037 = vmatpush2.msra.mxu0 0.0
    %1038 = vmatprep.subr.mxu0 0.0
    %1039 = vmatpush2.msra.mxu0 0.0
    %1040 = vmatprep.subr.mxu0 0.0
    %1041 = vmatpush2.msra.mxu0 0.0
    %1042 = vmatprep.subr.mxu0 0.0
    %1043 = vmatpush2.msra.mxu0 0.0
    %1044 = vmatprep.subr.mxu0 0.0
    %1045 = vmatpush2.msra.mxu0 0.0
    %1046 = vmatprep.subr.mxu0 0.0
    %1047 = vmatpush2.msra.mxu0 0.0
    %1048 = vmatprep.mubr.f32.mxu0 0.0
    %1049 = vmatmul.mubr.f32.gmra.mxu0 %v982
    %v1050 = vpop.f32.mrf.mxu0
    %v1051 = vadd.f32 0.0, %v1050
    %v1052 = vpop.f32.mrf.mxu0
    %1053 = vdwg.mxu0
    %v1055 = vrot.slane %v1051, 7
    %v1058 = vadd.f32 %v835, %v1055
    %v1059 = vadd.f32 %v840, %v1051
    %v1060 = vxor.u32 %v1058, 2147483648
    %v1061 = vxor.u32 %v1059, 2147483648
    %v1062 = vmul.f32 %v1060, 1.442695
    %v1063 = vpow.pop %v1062
    %v1064 = vmul.f32 %v1061, 1.442695
    %v1065 = vpow.pop %v1064
    %v1066 = vadd.f32 %v1063, 1.0
    %v1067 = vadd.f32 %v1065, 1.0
    %v1068 = vrcp.pop %v1066
    %v1069 = vmul.f32 1.0, %v1068
    %v1070 = vrcp.pop %v1067
    %v1071 = vmul.f32 1.0, %v1070
    %v1072 = vtanh.pop %v1058
    %v1073 = vtanh.pop %v1059
    %v1076 = vrot.slane %v961, 7
    %v1077 = vrot.slane %v962, 7
    %v1080 = vmul.f32 %v1069, %v1076
    %v1081 = vmul.f32 %v1071, %v1077
    %1084 = vrot.lane.b32.xlu0 %v1072, 64
    %v1085 = vpop.permute.xlu0 %1084
    %1086 = vrot.lane.b32.xlu0 %v1073, 64
    %v1087 = vpop.permute.xlu0 %1086
    %v1090 = vmul.f32 %v1069, %v1085
    %v1091 = vmul.f32 %v1071, %v1087
    %1094 = vrot.lane.b32.xlu0 %v1090, 32
    %v1095 = vpop.permute.xlu0 %1094
    %1096 = vrot.lane.b32.xlu0 %v1091, 32
    %v1097 = vpop.permute.xlu0 %1096
    %v1100 = vadd.f32 %v1080, %v1095
    %v1101 = vadd.f32 %v1081, %v1097
    %v1102 = vtanh.pop %v1100
    %v1103 = vtanh.pop %v1101
    %1106 = vrot.lane.b32.xlu0 %v1102, 64
    %v1107 = vpop.permute.xlu0 %1106
    %1108 = vrot.lane.b32.xlu0 %v1103, 64
    %v1109 = vpop.permute.xlu0 %1108
    %v1112 = vmul.f32 %v1069, %v1107
    %v1113 = vmul.f32 %v1071, %v1109
    %v1116 = vrot.slane %v1112, 1
    %v1117 = vsel %vm978, %v1113, %v1116
    %1118 = vrot.lane.b32.xlu0 %v1117, 32
    %v1119 = vpop.permute.xlu0 %1118
    %v1120 = vsel %vm847, %v1119, 0
    %1122 = vmatprep.subr.mxu0 0.0
    %1123 = vmatpush1.msra.mxu0 0.0
    %1124 = vmatprep.subr.mxu0 0.0
    %1125 = vmatpush1.msra.mxu0 0.0
    %1126 = vmatprep.subr.mxu0 0.0
    %1127 = vmatpush1.msra.mxu0 0.0
    %1128 = vmatprep.subr.mxu0 0.0
    %1129 = vmatpush1.msra.mxu0 0.0
    %1130 = vmatprep.subr.mxu0 0.0
    %1131 = vmatpush1.msra.mxu0 0.0
    %1132 = vmatprep.subr.mxu0 0.0
    %1133 = vmatpush1.msra.mxu0 0.0
    %1134 = vmatprep.subr.mxu0 0.0
    %1135 = vmatpush1.msra.mxu0 0.0
    %1136 = vmatprep.subr.mxu0 0.0
    %1137 = vmatpush1.msra.mxu0 0.0
    %1138 = vmatprep.subr.mxu0 0.0
    %1139 = vmatpush1.msra.mxu0 0.0
    %1140 = vmatprep.subr.mxu0 0.0
    %1141 = vmatpush1.msra.mxu0 0.0
    %1142 = vmatprep.subr.mxu0 0.0
    %1143 = vmatpush1.msra.mxu0 0.0
    %1144 = vmatprep.subr.mxu0 0.0
    %1145 = vmatpush1.msra.mxu0 0.0
    %1146 = vmatprep.subr.mxu0 0.0
    %1147 = vmatpush1.msra.mxu0 %v846
    %1148 = vmatprep.subr.mxu0 0.0
    %1149 = vmatpush1.msra.mxu0 %v845
    %1150 = vmatprep.subr.mxu0 0.0
    %1151 = vmatpush1.msra.mxu0 %v844
    %1152 = vmatprep.subr.mxu0 0.0
    %1153 = vmatpush1.msra.mxu0 %v843
    %1154 = vmatprep.subr.mxu0 0.0
    %1155 = vmatpush2.msra.mxu0 0.0
    %1156 = vmatprep.subr.mxu0 0.0
    %1157 = vmatpush2.msra.mxu0 0.0
    %1158 = vmatprep.subr.mxu0 0.0
    %1159 = vmatpush2.msra.mxu0 0.0
    %1160 = vmatprep.subr.mxu0 0.0
    %1161 = vmatpush2.msra.mxu0 0.0
    %1162 = vmatprep.subr.mxu0 0.0
    %1163 = vmatpush2.msra.mxu0 0.0
    %1164 = vmatprep.subr.mxu0 0.0
    %1165 = vmatpush2.msra.mxu0 0.0
    %1166 = vmatprep.subr.mxu0 0.0
    %1167 = vmatpush2.msra.mxu0 0.0
    %1168 = vmatprep.subr.mxu0 0.0
    %1169 = vmatpush2.msra.mxu0 0.0
    %1170 = vmatprep.subr.mxu0 0.0
    %1171 = vmatpush2.msra.mxu0 0.0
    %1172 = vmatprep.subr.mxu0 0.0
    %1173 = vmatpush2.msra.mxu0 0.0
    %1174 = vmatprep.subr.mxu0 0.0
    %1175 = vmatpush2.msra.mxu0 0.0
    %1176 = vmatprep.subr.mxu0 0.0
    %1177 = vmatpush2.msra.mxu0 0.0
    %1178 = vmatprep.subr.mxu0 0.0
    %1179 = vmatpush2.msra.mxu0 0.0
    %1180 = vmatprep.subr.mxu0 0.0
    %1181 = vmatpush2.msra.mxu0 0.0
    %1182 = vmatprep.subr.mxu0 0.0
    %1183 = vmatpush2.msra.mxu0 0.0
    %1184 = vmatprep.subr.mxu0 0.0
    %1185 = vmatpush2.msra.mxu0 0.0
    %1186 = vmatprep.mubr.f32.mxu0 0.0
    %1187 = vmatmul.mubr.f32.gmra.mxu0 %v1120
    %v1188 = vpop.f32.mrf.mxu0
    %v1189 = vadd.f32 0.0, %v1188
    %v1190 = vpop.f32.mrf.mxu0
    %1191 = vdwg.mxu0
    %v1193 = vrot.slane %v1189, 6
    %v1194 = vrot.slane %v1189, 7
    %v1197 = vadd.f32 %v835, %v1193
    %v1198 = vadd.f32 %v840, %v1194
    %v1199 = vxor.u32 %v1197, 2147483648
    %v1200 = vxor.u32 %v1198, 2147483648
    %v1201 = vmul.f32 %v1199, 1.442695
    %v1202 = vpow.pop %v1201
    %v1203 = vmul.f32 %v1200, 1.442695
    %v1204 = vpow.pop %v1203
    %v1205 = vadd.f32 %v1202, 1.0
    %v1206 = vadd.f32 %v1204, 1.0
    %v1207 = vrcp.pop %v1205
    %v1208 = vmul.f32 1.0, %v1207
    %v1209 = vrcp.pop %v1206
    %v1210 = vmul.f32 1.0, %v1209
    %v1211 = vtanh.pop %v1197
    %v1212 = vtanh.pop %v1198
    %v1215 = vrot.slane %v1100, 7
    %v1216 = vrot.slane %v1101, 7
    %v1219 = vmul.f32 %v1208, %v1215
    %v1220 = vmul.f32 %v1210, %v1216
    %1223 = vrot.lane.b32.xlu0 %v1211, 64
    %v1224 = vpop.permute.xlu0 %1223
    %1225 = vrot.lane.b32.xlu0 %v1212, 64
    %v1226 = vpop.permute.xlu0 %1225
    %v1229 = vmul.f32 %v1208, %v1224
    %v1230 = vmul.f32 %v1210, %v1226
    %1233 = vrot.lane.b32.xlu0 %v1229, 32
    %v1234 = vpop.permute.xlu0 %1233
    %1235 = vrot.lane.b32.xlu0 %v1230, 32
    %v1236 = vpop.permute.xlu0 %1235
    %v1239 = vadd.f32 %v1219, %v1234
    %v1240 = vadd.f32 %v1220, %v1236
    %v1241 = vtanh.pop %v1239
    %v1242 = vtanh.pop %v1240
    %1245 = vrot.lane.b32.xlu0 %v1241, 64
    %v1246 = vpop.permute.xlu0 %1245
    %1247 = vrot.lane.b32.xlu0 %v1242, 64
    %v1248 = vpop.permute.xlu0 %1247
    %v1251 = vmul.f32 %v1208, %v1246
    %v1252 = vmul.f32 %v1210, %v1248
    %v1255 = vrot.slane %v1251, 2
    %v1256 = vrot.slane %v1252, 1
    %v1257 = vsel %vm978, %v1256, %v1255
    %1258 = vrot.lane.b32.xlu0 %v1257, 32
    %v1259 = vpop.permute.xlu0 %1258
    %v1260 = vsel %vm847, %v1259, 0
    %1262 = vmatprep.subr.mxu0 0.0
    %1263 = vmatpush1.msra.mxu0 0.0
    %1264 = vmatprep.subr.mxu0 0.0
    %1265 = vmatpush1.msra.mxu0 0.0
    %1266 = vmatprep.subr.mxu0 0.0
    %1267 = vmatpush1.msra.mxu0 0.0
    %1268 = vmatprep.subr.mxu0 0.0
    %1269 = vmatpush1.msra.mxu0 0.0
    %1270 = vmatprep.subr.mxu0 0.0
    %1271 = vmatpush1.msra.mxu0 0.0
    %1272 = vmatprep.subr.mxu0 0.0
    %1273 = vmatpush1.msra.mxu0 0.0
    %1274 = vmatprep.subr.mxu0 0.0
    %1275 = vmatpush1.msra.mxu0 0.0
    %1276 = vmatprep.subr.mxu0 0.0
    %1277 = vmatpush1.msra.mxu0 0.0
    %1278 = vmatprep.subr.mxu0 0.0
    %1279 = vmatpush1.msra.mxu0 0.0
    %1280 = vmatprep.subr.mxu0 0.0
    %1281 = vmatpush1.msra.mxu0 0.0
    %1282 = vmatprep.subr.mxu0 0.0
    %1283 = vmatpush1.msra.mxu0 0.0
    %1284 = vmatprep.subr.mxu0 0.0
    %1285 = vmatpush1.msra.mxu0 0.0
    %1286 = vmatprep.subr.mxu0 0.0
    %1287 = vmatpush1.msra.mxu0 %v846
    %1288 = vmatprep.subr.mxu0 0.0
    %1289 = vmatpush1.msra.mxu0 %v845
    %1290 = vmatprep.subr.mxu0 0.0
    %1291 = vmatpush1.msra.mxu0 %v844
    %1292 = vmatprep.subr.mxu0 0.0
    %1293 = vmatpush1.msra.mxu0 %v843
    %1294 = vmatprep.subr.mxu0 0.0
    %1295 = vmatpush2.msra.mxu0 0.0
    %1296 = vmatprep.subr.mxu0 0.0
    %1297 = vmatpush2.msra.mxu0 0.0
    %1298 = vmatprep.subr.mxu0 0.0
    %1299 = vmatpush2.msra.mxu0 0.0
    %1300 = vmatprep.subr.mxu0 0.0
    %1301 = vmatpush2.msra.mxu0 0.0
    %1302 = vmatprep.subr.mxu0 0.0
    %1303 = vmatpush2.msra.mxu0 0.0
    %1304 = vmatprep.subr.mxu0 0.0
    %1305 = vmatpush2.msra.mxu0 0.0
    %1306 = vmatprep.subr.mxu0 0.0
    %1307 = vmatpush2.msra.mxu0 0.0
    %1308 = vmatprep.subr.mxu0 0.0
    %1309 = vmatpush2.msra.mxu0 0.0
    %1310 = vmatprep.subr.mxu0 0.0
    %1311 = vmatpush2.msra.mxu0 0.0
    %1312 = vmatprep.subr.mxu0 0.0
    %1313 = vmatpush2.msra.mxu0 0.0
    %1314 = vmatprep.subr.mxu0 0.0
    %1315 = vmatpush2.msra.mxu0 0.0
    %1316 = vmatprep.subr.mxu0 0.0
    %1317 = vmatpush2.msra.mxu0 0.0
    %1318 = vmatprep.subr.mxu0 0.0
    %1319 = vmatpush2.msra.mxu0 0.0
    %1320 = vmatprep.subr.mxu0 0.0
    %1321 = vmatpush2.msra.mxu0 0.0
    %1322 = vmatprep.subr.mxu0 0.0
    %1323 = vmatpush2.msra.mxu0 0.0
    %1324 = vmatprep.subr.mxu0 0.0
    %1325 = vmatpush2.msra.mxu0 0.0
    %1326 = vmatprep.mubr.f32.mxu0 0.0
    %1327 = vmatmul.mubr.f32.gmra.mxu0 %v1260
    %v1328 = vpop.f32.mrf.mxu0
    %v1329 = vadd.f32 0.0, %v1328
    %v1330 = vpop.f32.mrf.mxu0
    %1331 = vdwg.mxu0
    %v1333 = vrot.slane %v1329, 5
    %v1334 = vrot.slane %v1329, 6
    %v1337 = vadd.f32 %v835, %v1333
    %v1338 = vadd.f32 %v840, %v1334
    %v1339 = vxor.u32 %v1337, 2147483648
    %v1340 = vxor.u32 %v1338, 2147483648
    %v1341 = vmul.f32 %v1339, 1.442695
    %v1342 = vpow.pop %v1341
    %v1343 = vmul.f32 %v1340, 1.442695
    %v1344 = vpow.pop %v1343
    %v1345 = vadd.f32 %v1342, 1.0
    %v1346 = vadd.f32 %v1344, 1.0
    %v1347 = vrcp.pop %v1345
    %v1348 = vmul.f32 1.0, %v1347
    %v1349 = vrcp.pop %v1346
    %v1350 = vmul.f32 1.0, %v1349
    %v1351 = vtanh.pop %v1337
    %v1352 = vtanh.pop %v1338
    %v1355 = vrot.slane %v1239, 7
    %v1356 = vrot.slane %v1240, 7
    %v1359 = vmul.f32 %v1348, %v1355
    %v1360 = vmul.f32 %v1350, %v1356
    %1363 = vrot.lane.b32.xlu0 %v1351, 64
    %v1364 = vpop.permute.xlu0 %1363
    %1365 = vrot.lane.b32.xlu0 %v1352, 64
    %v1366 = vpop.permute.xlu0 %1365
    %v1369 = vmul.f32 %v1348, %v1364
    %v1370 = vmul.f32 %v1350, %v1366
    %1373 = vrot.lane.b32.xlu0 %v1369, 32
    %v1374 = vpop.permute.xlu0 %1373
    %1375 = vrot.lane.b32.xlu0 %v1370, 32
    %v1376 = vpop.permute.xlu0 %1375
    %v1379 = vadd.f32 %v1359, %v1374
    %v1380 = vadd.f32 %v1360, %v1376
    %v1381 = vtanh.pop %v1379
    %v1382 = vtanh.pop %v1380
    %1385 = vrot.lane.b32.xlu0 %v1381, 64
    %v1386 = vpop.permute.xlu0 %1385
    %1387 = vrot.lane.b32.xlu0 %v1382, 64
    %v1388 = vpop.permute.xlu0 %1387
    %v1391 = vmul.f32 %v1348, %v1386
    %v1392 = vmul.f32 %v1350, %v1388
    %v1395 = vrot.slane %v1391, 3
    %v1396 = vrot.slane %v1392, 2
    %v1397 = vsel %vm978, %v1396, %v1395
    %1398 = vrot.lane.b32.xlu0 %v1397, 32
    %v1399 = vpop.permute.xlu0 %1398
    %v1400 = vsel %vm847, %v1399, 0
    %1402 = vmatprep.subr.mxu0 0.0
    %1403 = vmatpush1.msra.mxu0 0.0
    %1404 = vmatprep.subr.mxu0 0.0
    %1405 = vmatpush1.msra.mxu0 0.0
    %1406 = vmatprep.subr.mxu0 0.0
    %1407 = vmatpush1.msra.mxu0 0.0
    %1408 = vmatprep.subr.mxu0 0.0
    %1409 = vmatpush1.msra.mxu0 0.0
    %1410 = vmatprep.subr.mxu0 0.0
    %1411 = vmatpush1.msra.mxu0 0.0
    %1412 = vmatprep.subr.mxu0 0.0
    %1413 = vmatpush1.msra.mxu0 0.0
    %1414 = vmatprep.subr.mxu0 0.0
    %1415 = vmatpush1.msra.mxu0 0.0
    %1416 = vmatprep.subr.mxu0 0.0
    %1417 = vmatpush1.msra.mxu0 0.0
    %1418 = vmatprep.subr.mxu0 0.0
    %1419 = vmatpush1.msra.mxu0 0.0
    %1420 = vmatprep.subr.mxu0 0.0
    %1421 = vmatpush1.msra.mxu0 0.0
    %1422 = vmatprep.subr.mxu0 0.0
    %1423 = vmatpush1.msra.mxu0 0.0
    %1424 = vmatprep.subr.mxu0 0.0
    %1425 = vmatpush1.msra.mxu0 0.0
    %1426 = vmatprep.subr.mxu0 0.0
    %1427 = vmatpush1.msra.mxu0 %v846
    %1428 = vmatprep.subr.mxu0 0.0
    %1429 = vmatpush1.msra.mxu0 %v845
    %1430 = vmatprep.subr.mxu0 0.0
    %1431 = vmatpush1.msra.mxu0 %v844
    %1432 = vmatprep.subr.mxu0 0.0
    %1433 = vmatpush1.msra.mxu0 %v843
    %1434 = vmatprep.subr.mxu0 0.0
    %1435 = vmatpush2.msra.mxu0 0.0
    %1436 = vmatprep.subr.mxu0 0.0
    %1437 = vmatpush2.msra.mxu0 0.0
    %1438 = vmatprep.subr.mxu0 0.0
    %1439 = vmatpush2.msra.mxu0 0.0
    %1440 = vmatprep.subr.mxu0 0.0
    %1441 = vmatpush2.msra.mxu0 0.0
    %1442 = vmatprep.subr.mxu0 0.0
    %1443 = vmatpush2.msra.mxu0 0.0
    %1444 = vmatprep.subr.mxu0 0.0
    %1445 = vmatpush2.msra.mxu0 0.0
    %1446 = vmatprep.subr.mxu0 0.0
    %1447 = vmatpush2.msra.mxu0 0.0
    %1448 = vmatprep.subr.mxu0 0.0
    %1449 = vmatpush2.msra.mxu0 0.0
    %1450 = vmatprep.subr.mxu0 0.0
    %1451 = vmatpush2.msra.mxu0 0.0
    %1452 = vmatprep.subr.mxu0 0.0
    %1453 = vmatpush2.msra.mxu0 0.0
    %1454 = vmatprep.subr.mxu0 0.0
    %1455 = vmatpush2.msra.mxu0 0.0
    %1456 = vmatprep.subr.mxu0 0.0
    %1457 = vmatpush2.msra.mxu0 0.0
    %1458 = vmatprep.subr.mxu0 0.0
    %1459 = vmatpush2.msra.mxu0 0.0
    %1460 = vmatprep.subr.mxu0 0.0
    %1461 = vmatpush2.msra.mxu0 0.0
    %1462 = vmatprep.subr.mxu0 0.0
    %1463 = vmatpush2.msra.mxu0 0.0
    %1464 = vmatprep.subr.mxu0 0.0
    %1465 = vmatpush2.msra.mxu0 0.0
    %1466 = vmatprep.mubr.f32.mxu0 0.0
    %1467 = vmatmul.mubr.f32.gmra.mxu0 %v1400
    %v1468 = vpop.f32.mrf.mxu0
    %v1469 = vadd.f32 0.0, %v1468
    %v1470 = vpop.f32.mrf.mxu0
    %1471 = vdwg.mxu0
    %v1473 = vrot.slane %v1469, 4
    %v1474 = vrot.slane %v1469, 5
    %v1477 = vadd.f32 %v835, %v1473
    %v1478 = vadd.f32 %v840, %v1474
    %v1479 = vxor.u32 %v1477, 2147483648
    %v1480 = vxor.u32 %v1478, 2147483648
    %v1481 = vmul.f32 %v1479, 1.442695
    %v1482 = vpow.pop %v1481
    %v1483 = vmul.f32 %v1480, 1.442695
    %v1484 = vpow.pop %v1483
    %v1485 = vadd.f32 %v1482, 1.0
    %v1486 = vadd.f32 %v1484, 1.0
    %v1487 = vrcp.pop %v1485
    %v1488 = vmul.f32 1.0, %v1487
    %v1489 = vrcp.pop %v1486
    %v1490 = vmul.f32 1.0, %v1489
    %v1491 = vtanh.pop %v1477
    %v1492 = vtanh.pop %v1478
    %v1495 = vrot.slane %v1379, 7
    %v1496 = vrot.slane %v1380, 7
    %v1499 = vmul.f32 %v1488, %v1495
    %v1500 = vmul.f32 %v1490, %v1496
    %1503 = vrot.lane.b32.xlu0 %v1491, 64
    %v1504 = vpop.permute.xlu0 %1503
    %1505 = vrot.lane.b32.xlu0 %v1492, 64
    %v1506 = vpop.permute.xlu0 %1505
    %v1509 = vmul.f32 %v1488, %v1504
    %v1510 = vmul.f32 %v1490, %v1506
    %1513 = vrot.lane.b32.xlu0 %v1509, 32
    %v1514 = vpop.permute.xlu0 %1513
    %1515 = vrot.lane.b32.xlu0 %v1510, 32
    %v1516 = vpop.permute.xlu0 %1515
    %v1519 = vadd.f32 %v1499, %v1514
    %v1520 = vadd.f32 %v1500, %v1516
    %v1521 = vtanh.pop %v1519
    %v1522 = vtanh.pop %v1520
    %1525 = vrot.lane.b32.xlu0 %v1521, 64
    %v1526 = vpop.permute.xlu0 %1525
    %1527 = vrot.lane.b32.xlu0 %v1522, 64
    %v1528 = vpop.permute.xlu0 %1527
    %v1531 = vmul.f32 %v1488, %v1526
    %v1532 = vmul.f32 %v1490, %v1528
    %v1535 = vrot.slane %v1531, 4
    %v1536 = vrot.slane %v1532, 3
    %v1537 = vsel %vm978, %v1536, %v1535
    %1538 = vrot.lane.b32.xlu0 %v1537, 32
    %v1539 = vpop.permute.xlu0 %1538
    %v1540 = vsel %vm847, %v1539, 0
    %1542 = vmatprep.subr.mxu0 0.0
    %1543 = vmatpush1.msra.mxu0 0.0
    %1544 = vmatprep.subr.mxu0 0.0
    %1545 = vmatpush1.msra.mxu0 0.0
    %1546 = vmatprep.subr.mxu0 0.0
    %1547 = vmatpush1.msra.mxu0 0.0
    %1548 = vmatprep.subr.mxu0 0.0
    %1549 = vmatpush1.msra.mxu0 0.0
    %1550 = vmatprep.subr.mxu0 0.0
    %1551 = vmatpush1.msra.mxu0 0.0
    %1552 = vmatprep.subr.mxu0 0.0
    %1553 = vmatpush1.msra.mxu0 0.0
    %1554 = vmatprep.subr.mxu0 0.0
    %1555 = vmatpush1.msra.mxu0 0.0
    %1556 = vmatprep.subr.mxu0 0.0
    %1557 = vmatpush1.msra.mxu0 0.0
    %1558 = vmatprep.subr.mxu0 0.0
    %1559 = vmatpush1.msra.mxu0 0.0
    %1560 = vmatprep.subr.mxu0 0.0
    %1561 = vmatpush1.msra.mxu0 0.0
    %1562 = vmatprep.subr.mxu0 0.0
    %1563 = vmatpush1.msra.mxu0 0.0
    %1564 = vmatprep.subr.mxu0 0.0
    %1565 = vmatpush1.msra.mxu0 0.0
    %1566 = vmatprep.subr.mxu0 0.0
    %1567 = vmatpush1.msra.mxu0 %v846
    %1568 = vmatprep.subr.mxu0 0.0
    %1569 = vmatpush1.msra.mxu0 %v845
    %1570 = vmatprep.subr.mxu0 0.0
    %1571 = vmatpush1.msra.mxu0 %v844
    %1572 = vmatprep.subr.mxu0 0.0
    %1573 = vmatpush1.msra.mxu0 %v843
    %1574 = vmatprep.subr.mxu0 0.0
    %1575 = vmatpush2.msra.mxu0 0.0
    %1576 = vmatprep.subr.mxu0 0.0
    %1577 = vmatpush2.msra.mxu0 0.0
    %1578 = vmatprep.subr.mxu0 0.0
    %1579 = vmatpush2.msra.mxu0 0.0
    %1580 = vmatprep.subr.mxu0 0.0
    %1581 = vmatpush2.msra.mxu0 0.0
    %1582 = vmatprep.subr.mxu0 0.0
    %1583 = vmatpush2.msra.mxu0 0.0
    %1584 = vmatprep.subr.mxu0 0.0
    %1585 = vmatpush2.msra.mxu0 0.0
    %1586 = vmatprep.subr.mxu0 0.0
    %1587 = vmatpush2.msra.mxu0 0.0
    %1588 = vmatprep.subr.mxu0 0.0
    %1589 = vmatpush2.msra.mxu0 0.0
    %1590 = vmatprep.subr.mxu0 0.0
    %1591 = vmatpush2.msra.mxu0 0.0
    %1592 = vmatprep.subr.mxu0 0.0
    %1593 = vmatpush2.msra.mxu0 0.0
    %1594 = vmatprep.subr.mxu0 0.0
    %1595 = vmatpush2.msra.mxu0 0.0
    %1596 = vmatprep.subr.mxu0 0.0
    %1597 = vmatpush2.msra.mxu0 0.0
    %1598 = vmatprep.subr.mxu0 0.0
    %1599 = vmatpush2.msra.mxu0 0.0
    %1600 = vmatprep.subr.mxu0 0.0
    %1601 = vmatpush2.msra.mxu0 0.0
    %1602 = vmatprep.subr.mxu0 0.0
    %1603 = vmatpush2.msra.mxu0 0.0
    %1604 = vmatprep.subr.mxu0 0.0
    %1605 = vmatpush2.msra.mxu0 0.0
    %1606 = vmatprep.mubr.f32.mxu0 0.0
    %1607 = vmatmul.mubr.f32.gmra.mxu0 %v1540
    %v1608 = vpop.f32.mrf.mxu0
    %v1609 = vadd.f32 0.0, %v1608
    %v1610 = vpop.f32.mrf.mxu0
    %1611 = vdwg.mxu0
    %v1613 = vrot.slane %v1609, 3
    %v1614 = vrot.slane %v1609, 4
    %v1617 = vadd.f32 %v835, %v1613
    %v1618 = vadd.f32 %v840, %v1614
    %v1619 = vxor.u32 %v1617, 2147483648
    %v1620 = vxor.u32 %v1618, 2147483648
    %v1621 = vmul.f32 %v1619, 1.442695
    %v1622 = vpow.pop %v1621
    %v1623 = vmul.f32 %v1620, 1.442695
    %v1624 = vpow.pop %v1623
    %v1625 = vadd.f32 %v1622, 1.0
    %v1626 = vadd.f32 %v1624, 1.0
    %v1627 = vrcp.pop %v1625
    %v1628 = vmul.f32 1.0, %v1627
    %v1629 = vrcp.pop %v1626
    %v1630 = vmul.f32 1.0, %v1629
    %v1631 = vtanh.pop %v1617
    %v1632 = vtanh.pop %v1618
    %v1635 = vrot.slane %v1519, 7
    %v1636 = vrot.slane %v1520, 7
    %v1639 = vmul.f32 %v1628, %v1635
    %v1640 = vmul.f32 %v1630, %v1636
    %1643 = vrot.lane.b32.xlu0 %v1631, 64
    %v1644 = vpop.permute.xlu0 %1643
    %1645 = vrot.lane.b32.xlu0 %v1632, 64
    %v1646 = vpop.permute.xlu0 %1645
    %v1649 = vmul.f32 %v1628, %v1644
    %v1650 = vmul.f32 %v1630, %v1646
    %1653 = vrot.lane.b32.xlu0 %v1649, 32
    %v1654 = vpop.permute.xlu0 %1653
    %1655 = vrot.lane.b32.xlu0 %v1650, 32
    %v1656 = vpop.permute.xlu0 %1655
    %v1659 = vadd.f32 %v1639, %v1654
    %v1660 = vadd.f32 %v1640, %v1656
    %v1661 = vtanh.pop %v1659
    %v1662 = vtanh.pop %v1660
    %1665 = vrot.lane.b32.xlu0 %v1661, 64
    %v1666 = vpop.permute.xlu0 %1665
    %1667 = vrot.lane.b32.xlu0 %v1662, 64
    %v1668 = vpop.permute.xlu0 %1667
    %v1671 = vmul.f32 %v1628, %v1666
    %v1672 = vmul.f32 %v1630, %v1668
    %v1675 = vrot.slane %v1671, 5
    %v1676 = vrot.slane %v1672, 4
    %v1677 = vsel %vm978, %v1676, %v1675
    %1678 = vrot.lane.b32.xlu0 %v1677, 32
    %v1679 = vpop.permute.xlu0 %1678
    %v1680 = vsel %vm847, %v1679, 0
    %1682 = vmatprep.subr.mxu0 0.0
    %1683 = vmatpush1.msra.mxu0 0.0
    %1684 = vmatprep.subr.mxu0 0.0
    %1685 = vmatpush1.msra.mxu0 0.0
    %1686 = vmatprep.subr.mxu0 0.0
    %1687 = vmatpush1.msra.mxu0 0.0
    %1688 = vmatprep.subr.mxu0 0.0
    %1689 = vmatpush1.msra.mxu0 0.0
    %1690 = vmatprep.subr.mxu0 0.0
    %1691 = vmatpush1.msra.mxu0 0.0
    %1692 = vmatprep.subr.mxu0 0.0
    %1693 = vmatpush1.msra.mxu0 0.0
    %1694 = vmatprep.subr.mxu0 0.0
    %1695 = vmatpush1.msra.mxu0 0.0
    %1696 = vmatprep.subr.mxu0 0.0
    %1697 = vmatpush1.msra.mxu0 0.0
    %1698 = vmatprep.subr.mxu0 0.0
    %1699 = vmatpush1.msra.mxu0 0.0
    %1700 = vmatprep.subr.mxu0 0.0
    %1701 = vmatpush1.msra.mxu0 0.0
    %1702 = vmatprep.subr.mxu0 0.0
    %1703 = vmatpush1.msra.mxu0 0.0
    %1704 = vmatprep.subr.mxu0 0.0
    %1705 = vmatpush1.msra.mxu0 0.0
    %1706 = vmatprep.subr.mxu0 0.0
    %1707 = vmatpush1.msra.mxu0 %v846
    %1708 = vmatprep.subr.mxu0 0.0
    %1709 = vmatpush1.msra.mxu0 %v845
    %1710 = vmatprep.subr.mxu0 0.0
    %1711 = vmatpush1.msra.mxu0 %v844
    %1712 = vmatprep.subr.mxu0 0.0
    %1713 = vmatpush1.msra.mxu0 %v843
    %1714 = vmatprep.subr.mxu0 0.0
    %1715 = vmatpush2.msra.mxu0 0.0
    %1716 = vmatprep.subr.mxu0 0.0
    %1717 = vmatpush2.msra.mxu0 0.0
    %1718 = vmatprep.subr.mxu0 0.0
    %1719 = vmatpush2.msra.mxu0 0.0
    %1720 = vmatprep.subr.mxu0 0.0
    %1721 = vmatpush2.msra.mxu0 0.0
    %1722 = vmatprep.subr.mxu0 0.0
    %1723 = vmatpush2.msra.mxu0 0.0
    %1724 = vmatprep.subr.mxu0 0.0
    %1725 = vmatpush2.msra.mxu0 0.0
    %1726 = vmatprep.subr.mxu0 0.0
    %1727 = vmatpush2.msra.mxu0 0.0
    %1728 = vmatprep.subr.mxu0 0.0
    %1729 = vmatpush2.msra.mxu0 0.0
    %1730 = vmatprep.subr.mxu0 0.0
    %1731 = vmatpush2.msra.mxu0 0.0
    %1732 = vmatprep.subr.mxu0 0.0
    %1733 = vmatpush2.msra.mxu0 0.0
    %1734 = vmatprep.subr.mxu0 0.0
    %1735 = vmatpush2.msra.mxu0 0.0
    %1736 = vmatprep.subr.mxu0 0.0
    %1737 = vmatpush2.msra.mxu0 0.0
    %1738 = vmatprep.subr.mxu0 0.0
    %1739 = vmatpush2.msra.mxu0 0.0
    %1740 = vmatprep.subr.mxu0 0.0
    %1741 = vmatpush2.msra.mxu0 0.0
    %1742 = vmatprep.subr.mxu0 0.0
    %1743 = vmatpush2.msra.mxu0 0.0
    %1744 = vmatprep.subr.mxu0 0.0
    %1745 = vmatpush2.msra.mxu0 0.0
    %1746 = vmatprep.mubr.f32.mxu0 0.0
    %1747 = vmatmul.mubr.f32.gmra.mxu0 %v1680
    %v1748 = vpop.f32.mrf.mxu0
    %v1749 = vadd.f32 0.0, %v1748
    %v1750 = vpop.f32.mrf.mxu0
    %1751 = vdwg.mxu0
    %v1753 = vrot.slane %v1749, 2
    %v1754 = vrot.slane %v1749, 3
    %v1757 = vadd.f32 %v835, %v1753
    %v1758 = vadd.f32 %v840, %v1754
    %v1759 = vxor.u32 %v1757, 2147483648
    %v1760 = vxor.u32 %v1758, 2147483648
    %v1761 = vmul.f32 %v1759, 1.442695
    %v1762 = vpow.pop %v1761
    %v1763 = vmul.f32 %v1760, 1.442695
    %v1764 = vpow.pop %v1763
    %v1765 = vadd.f32 %v1762, 1.0
    %v1766 = vadd.f32 %v1764, 1.0
    %v1767 = vrcp.pop %v1765
    %v1768 = vmul.f32 1.0, %v1767
    %v1769 = vrcp.pop %v1766
    %v1770 = vmul.f32 1.0, %v1769
    %v1771 = vtanh.pop %v1757
    %v1772 = vtanh.pop %v1758
    %v1775 = vrot.slane %v1659, 7
    %v1776 = vrot.slane %v1660, 7
    %v1779 = vmul.f32 %v1768, %v1775
    %v1780 = vmul.f32 %v1770, %v1776
    %1783 = vrot.lane.b32.xlu0 %v1771, 64
    %v1784 = vpop.permute.xlu0 %1783
    %1785 = vrot.lane.b32.xlu0 %v1772, 64
    %v1786 = vpop.permute.xlu0 %1785
    %v1789 = vmul.f32 %v1768, %v1784
    %v1790 = vmul.f32 %v1770, %v1786
    %1793 = vrot.lane.b32.xlu0 %v1789, 32
    %v1794 = vpop.permute.xlu0 %1793
    %1795 = vrot.lane.b32.xlu0 %v1790, 32
    %v1796 = vpop.permute.xlu0 %1795
    %v1799 = vadd.f32 %v1779, %v1794
    %v1800 = vadd.f32 %v1780, %v1796
    %v1801 = vtanh.pop %v1799
    %v1802 = vtanh.pop %v1800
    %1805 = vrot.lane.b32.xlu0 %v1801, 64
    %v1806 = vpop.permute.xlu0 %1805
    %1807 = vrot.lane.b32.xlu0 %v1802, 64
    %v1808 = vpop.permute.xlu0 %1807
    %v1811 = vmul.f32 %v1768, %v1806
    %v1812 = vmul.f32 %v1770, %v1808
    %v1815 = vrot.slane %v1811, 6
    %v1816 = vrot.slane %v1812, 5
    %v1817 = vsel %vm978, %v1816, %v1815
    %1818 = vrot.lane.b32.xlu0 %v1817, 32
    %v1819 = vpop.permute.xlu0 %1818
    %v1820 = vsel %vm847, %v1819, 0
    %1822 = vmatprep.subr.mxu0 0.0
    %1823 = vmatpush1.msra.mxu0 0.0
    %1824 = vmatprep.subr.mxu0 0.0
    %1825 = vmatpush1.msra.mxu0 0.0
    %1826 = vmatprep.subr.mxu0 0.0
    %1827 = vmatpush1.msra.mxu0 0.0
    %1828 = vmatprep.subr.mxu0 0.0
    %1829 = vmatpush1.msra.mxu0 0.0
    %1830 = vmatprep.subr.mxu0 0.0
    %1831 = vmatpush1.msra.mxu0 0.0
    %1832 = vmatprep.subr.mxu0 0.0
    %1833 = vmatpush1.msra.mxu0 0.0
    %1834 = vmatprep.subr.mxu0 0.0
    %1835 = vmatpush1.msra.mxu0 0.0
    %1836 = vmatprep.subr.mxu0 0.0
    %1837 = vmatpush1.msra.mxu0 0.0
    %1838 = vmatprep.subr.mxu0 0.0
    %1839 = vmatpush1.msra.mxu0 0.0
    %1840 = vmatprep.subr.mxu0 0.0
    %1841 = vmatpush1.msra.mxu0 0.0
    %1842 = vmatprep.subr.mxu0 0.0
    %1843 = vmatpush1.msra.mxu0 0.0
    %1844 = vmatprep.subr.mxu0 0.0
    %1845 = vmatpush1.msra.mxu0 0.0
    %1846 = vmatprep.subr.mxu0 0.0
    %1847 = vmatpush1.msra.mxu0 %v846
    %1848 = vmatprep.subr.mxu0 0.0
    %1849 = vmatpush1.msra.mxu0 %v845
    %1850 = vmatprep.subr.mxu0 0.0
    %1851 = vmatpush1.msra.mxu0 %v844
    %1852 = vmatprep.subr.mxu0 0.0
    %1853 = vmatpush1.msra.mxu0 %v843
    %1854 = vmatprep.subr.mxu0 0.0
    %1855 = vmatpush2.msra.mxu0 0.0
    %1856 = vmatprep.subr.mxu0 0.0
    %1857 = vmatpush2.msra.mxu0 0.0
    %1858 = vmatprep.subr.mxu0 0.0
    %1859 = vmatpush2.msra.mxu0 0.0
    %1860 = vmatprep.subr.mxu0 0.0
    %1861 = vmatpush2.msra.mxu0 0.0
    %1862 = vmatprep.subr.mxu0 0.0
    %1863 = vmatpush2.msra.mxu0 0.0
    %1864 = vmatprep.subr.mxu0 0.0
    %1865 = vmatpush2.msra.mxu0 0.0
    %1866 = vmatprep.subr.mxu0 0.0
    %1867 = vmatpush2.msra.mxu0 0.0
    %1868 = vmatprep.subr.mxu0 0.0
    %1869 = vmatpush2.msra.mxu0 0.0
    %1870 = vmatprep.subr.mxu0 0.0
    %1871 = vmatpush2.msra.mxu0 0.0
    %1872 = vmatprep.subr.mxu0 0.0
    %1873 = vmatpush2.msra.mxu0 0.0
    %1874 = vmatprep.subr.mxu0 0.0
    %1875 = vmatpush2.msra.mxu0 0.0
    %1876 = vmatprep.subr.mxu0 0.0
    %1877 = vmatpush2.msra.mxu0 0.0
    %1878 = vmatprep.subr.mxu0 0.0
    %1879 = vmatpush2.msra.mxu0 0.0
    %1880 = vmatprep.subr.mxu0 0.0
    %1881 = vmatpush2.msra.mxu0 0.0
    %1882 = vmatprep.subr.mxu0 0.0
    %1883 = vmatpush2.msra.mxu0 0.0
    %1884 = vmatprep.subr.mxu0 0.0
    %1885 = vmatpush2.msra.mxu0 0.0
    %1886 = vmatprep.mubr.f32.mxu0 0.0
    %1887 = vmatmul.mubr.f32.gmra.mxu0 %v1820
    %v1888 = vpop.f32.mrf.mxu0
    %v1889 = vadd.f32 0.0, %v1888
    %v1890 = vpop.f32.mrf.mxu0
    %1891 = vdwg.mxu0
    %v1893 = vrot.slane %v1889, 1
    %v1894 = vrot.slane %v1889, 2
    %v1897 = vadd.f32 %v835, %v1893
    %v1898 = vadd.f32 %v840, %v1894
    %v1899 = vxor.u32 %v1897, 2147483648
    %v1900 = vxor.u32 %v1898, 2147483648
    %v1901 = vmul.f32 %v1899, 1.442695
    %v1902 = vpow.pop %v1901
    %v1903 = vmul.f32 %v1900, 1.442695
    %v1904 = vpow.pop %v1903
    %v1905 = vadd.f32 %v1902, 1.0
    %v1906 = vadd.f32 %v1904, 1.0
    %v1907 = vrcp.pop %v1905
    %v1908 = vmul.f32 1.0, %v1907
    %v1909 = vrcp.pop %v1906
    %v1910 = vmul.f32 1.0, %v1909
    %v1911 = vtanh.pop %v1897
    %v1912 = vtanh.pop %v1898
    %v1915 = vrot.slane %v1799, 7
    %v1916 = vrot.slane %v1800, 7
    %v1919 = vmul.f32 %v1908, %v1915
    %v1920 = vmul.f32 %v1910, %v1916
    %1923 = vrot.lane.b32.xlu0 %v1911, 64
    %v1924 = vpop.permute.xlu0 %1923
    %1925 = vrot.lane.b32.xlu0 %v1912, 64
    %v1926 = vpop.permute.xlu0 %1925
    %v1929 = vmul.f32 %v1908, %v1924
    %v1930 = vmul.f32 %v1910, %v1926
    %1933 = vrot.lane.b32.xlu0 %v1929, 32
    %v1934 = vpop.permute.xlu0 %1933
    %1935 = vrot.lane.b32.xlu0 %v1930, 32
    %v1936 = vpop.permute.xlu0 %1935
    %v1939 = vadd.f32 %v1919, %v1934
    %v1940 = vadd.f32 %v1920, %v1936
    %v1941 = vtanh.pop %v1939
    %v1942 = vtanh.pop %v1940
    %1945 = vrot.lane.b32.xlu0 %v1941, 64
    %v1946 = vpop.permute.xlu0 %1945
    %1947 = vrot.lane.b32.xlu0 %v1942, 64
    %v1948 = vpop.permute.xlu0 %1947
    %v1951 = vmul.f32 %v1908, %v1946
    %v1952 = vmul.f32 %v1910, %v1948
    %v1953 = vsel %vm111, %v973, %v1112
    %v1954 = vsel %vm111, %v974, %v1113
    %vm1955 = vcmask 1041408
    %v1956 = vsel %vm1955, %v1953, %v1251
    %v1957 = vsel %vm1955, %v1954, %v1252
    %vm1958 = vcmask 1042432
    %v1959 = vsel %vm1958, %v1956, %v1391
    %v1960 = vsel %vm1958, %v1957, %v1392
    %vm1961 = vcmask 1043456
    %v1962 = vsel %vm1961, %v1959, %v1531
    %v1963 = vsel %vm1961, %v1960, %v1532
    %vm1964 = vcmask 1044480
    %v1965 = vsel %vm1964, %v1962, %v1671
    %v1966 = vsel %vm1964, %v1963, %v1672
    %vm1967 = vcmask 1045504
    %v1968 = vsel %vm1967, %v1965, %v1811
    %v1969 = vsel %vm1967, %v1966, %v1812
    %v1970 = vsel %vm118, %v1968, %v1951
    %v1971 = vsel %vm118, %v1969, %v1952
    %v1972 = vld [vmem:[%s12] sm:$0xff]
    %v1973 = vld [vmem:[%s12 + $0x8] sm:$0xff]
    %v1974 = vld [vmem:[%s12 + $0x10] sm:$0xff]
    %v1975 = vld [vmem:[%s12 + $0x18] sm:$0xff]
    %v1976 = vld [vmem:[%s14] sm:$0x1]
    %v1978 = vlaneseq
    %v1979 = vshrl.u32 %v1978, 7
    %v1980 = vsub.s32 0, %v1979
    %v1981 = vrot.slane %v1976, %v1980
    %1985 = vrot.lane.b32.xlu0 %v1970, 32
    %v1986 = vpop.permute.xlu0 %1985
    %1987 = vrot.lane.b32.xlu0 %v1971, 32
    %v1988 = vpop.permute.xlu0 %1987
    %v1989 = vsel %vm847, %v1986, 0
    %v1991 = vsel %vm847, %v1988, 0
    %1993 = vmatprep.subr.mxu0 0.0
    %1994 = vmatpush1.msra.mxu0 0.0
    %1995 = vmatprep.subr.mxu0 0.0
    %1996 = vmatpush1.msra.mxu0 0.0
    %1997 = vmatprep.subr.mxu0 0.0
    %1998 = vmatpush1.msra.mxu0 0.0
    %1999 = vmatprep.subr.mxu0 0.0
    %2000 = vmatpush1.msra.mxu0 0.0
    %2001 = vmatprep.subr.mxu0 0.0
    %2002 = vmatpush1.msra.mxu0 0.0
    %2003 = vmatprep.subr.mxu0 0.0
    %2004 = vmatpush1.msra.mxu0 0.0
    %2005 = vmatprep.subr.mxu0 0.0
    %2006 = vmatpush1.msra.mxu0 0.0
    %2007 = vmatprep.subr.mxu0 0.0
    %2008 = vmatpush1.msra.mxu0 0.0
    %2009 = vmatprep.subr.mxu0 0.0
    %2010 = vmatpush1.msra.mxu0 0.0
    %2011 = vmatprep.subr.mxu0 0.0
    %2012 = vmatpush1.msra.mxu0 0.0
    %2013 = vmatprep.subr.mxu0 0.0
    %2014 = vmatpush1.msra.mxu0 0.0
    %2015 = vmatprep.subr.mxu0 0.0
    %2016 = vmatpush1.msra.mxu0 0.0
    %2017 = vmatprep.subr.mxu0 0.0
    %2018 = vmatpush1.msra.mxu0 %v1975
    %2019 = vmatprep.subr.mxu0 0.0
    %2020 = vmatpush1.msra.mxu0 %v1974
    %2021 = vmatprep.subr.mxu0 0.0
    %2022 = vmatpush1.msra.mxu0 %v1973
    %2023 = vmatprep.subr.mxu0 0.0
    %2024 = vmatpush1.msra.mxu0 %v1972
    %2025 = vmatprep.subr.mxu0 0.0
    %2026 = vmatpush2.msra.mxu0 0.0
    %2027 = vmatprep.subr.mxu0 0.0
    %2028 = vmatpush2.msra.mxu0 0.0
    %2029 = vmatprep.subr.mxu0 0.0
    %2030 = vmatpush2.msra.mxu0 0.0
    %2031 = vmatprep.subr.mxu0 0.0
    %2032 = vmatpush2.msra.mxu0 0.0
    %2033 = vmatprep.subr.mxu0 0.0
    %2034 = vmatpush2.msra.mxu0 0.0
    %2035 = vmatprep.subr.mxu0 0.0
    %2036 = vmatpush2.msra.mxu0 0.0
    %2037 = vmatprep.subr.mxu0 0.0
    %2038 = vmatpush2.msra.mxu0 0.0
    %2039 = vmatprep.subr.mxu0 0.0
    %2040 = vmatpush2.msra.mxu0 0.0
    %2041 = vmatprep.subr.mxu0 0.0
    %2042 = vmatpush2.msra.mxu0 0.0
    %2043 = vmatprep.subr.mxu0 0.0
    %2044 = vmatpush2.msra.mxu0 0.0
    %2045 = vmatprep.subr.mxu0 0.0
    %2046 = vmatpush2.msra.mxu0 0.0
    %2047 = vmatprep.subr.mxu0 0.0
    %2048 = vmatpush2.msra.mxu0 0.0
    %2049 = vmatprep.subr.mxu0 0.0
    %2050 = vmatpush2.msra.mxu0 0.0
    %2051 = vmatprep.subr.mxu0 0.0
    %2052 = vmatpush2.msra.mxu0 0.0
    %2053 = vmatprep.subr.mxu0 0.0
    %2054 = vmatpush2.msra.mxu0 0.0
    %2055 = vmatprep.subr.mxu0 0.0
    %2056 = vmatpush2.msra.mxu0 0.0
    %2057 = vmatprep.mubr.f32.mxu0 0.0
    %2058 = vmatmul.mubr.f32.gmra.mxu0 %v1989
    %v2059 = vpop.f32.mrf.mxu0
    %v2060 = vadd.f32 %v1981, %v2059
    %v2061 = vpop.f32.mrf.mxu0
    %2062 = vmatprep.mubr.f32.mxu0 0.0
    %2063 = vmatmul.mubr.f32.gmra.mxu0 %v1991
    %v2064 = vpop.f32.mrf.mxu0
    %v2065 = vadd.f32 %v1981, %v2064
    %v2066 = vpop.f32.mrf.mxu0
    %2067 = vdwg.mxu0
    %v2068 = vld [vmem:[%s13] sm:$0xff]
    %v2069 = vld [vmem:[%s13 + $0x8] sm:$0xff]
    %v2070 = vld [vmem:[%s13 + $0x10] sm:$0xff]
    %v2071 = vld [vmem:[%s13 + $0x18] sm:$0xff]
    %2072 = vmatprep.subr.mxu0 0.0
    %2073 = vmatpush1.msra.mxu0 0.0
    %2074 = vmatprep.subr.mxu0 0.0
    %2075 = vmatpush1.msra.mxu0 0.0
    %2076 = vmatprep.subr.mxu0 0.0
    %2077 = vmatpush1.msra.mxu0 0.0
    %2078 = vmatprep.subr.mxu0 0.0
    %2079 = vmatpush1.msra.mxu0 0.0
    %2080 = vmatprep.subr.mxu0 0.0
    %2081 = vmatpush1.msra.mxu0 0.0
    %2082 = vmatprep.subr.mxu0 0.0
    %2083 = vmatpush1.msra.mxu0 0.0
    %2084 = vmatprep.subr.mxu0 0.0
    %2085 = vmatpush1.msra.mxu0 0.0
    %2086 = vmatprep.subr.mxu0 0.0
    %2087 = vmatpush1.msra.mxu0 0.0
    %2088 = vmatprep.subr.mxu0 0.0
    %2089 = vmatpush1.msra.mxu0 0.0
    %2090 = vmatprep.subr.mxu0 0.0
    %2091 = vmatpush1.msra.mxu0 0.0
    %2092 = vmatprep.subr.mxu0 0.0
    %2093 = vmatpush1.msra.mxu0 0.0
    %2094 = vmatprep.subr.mxu0 0.0
    %2095 = vmatpush1.msra.mxu0 0.0
    %2096 = vmatprep.subr.mxu0 0.0
    %2097 = vmatpush1.msra.mxu0 %v2071
    %2098 = vmatprep.subr.mxu0 0.0
    %2099 = vmatpush1.msra.mxu0 %v2070
    %2100 = vmatprep.subr.mxu0 0.0
    %2101 = vmatpush1.msra.mxu0 %v2069
    %2102 = vmatprep.subr.mxu0 0.0
    %2103 = vmatpush1.msra.mxu0 %v2068
    %2104 = vmatprep.subr.mxu0 0.0
    %2105 = vmatpush2.msra.mxu0 0.0
    %2106 = vmatprep.subr.mxu0 0.0
    %2107 = vmatpush2.msra.mxu0 0.0
    %2108 = vmatprep.subr.mxu0 0.0
    %2109 = vmatpush2.msra.mxu0 0.0
    %2110 = vmatprep.subr.mxu0 0.0
    %2111 = vmatpush2.msra.mxu0 0.0
    %2112 = vmatprep.subr.mxu0 0.0
    %2113 = vmatpush2.msra.mxu0 0.0
    %2114 = vmatprep.subr.mxu0 0.0
    %2115 = vmatpush2.msra.mxu0 0.0
    %2116 = vmatprep.subr.mxu0 0.0
    %2117 = vmatpush2.msra.mxu0 0.0
    %2118 = vmatprep.subr.mxu0 0.0
    %2119 = vmatpush2.msra.mxu0 0.0
    %2120 = vmatprep.subr.mxu0 0.0
    %2121 = vmatpush2.msra.mxu0 0.0
    %2122 = vmatprep.subr.mxu0 0.0
    %2123 = vmatpush2.msra.mxu0 0.0
    %2124 = vmatprep.subr.mxu0 0.0
    %2125 = vmatpush2.msra.mxu0 0.0
    %2126 = vmatprep.subr.mxu0 0.0
    %2127 = vmatpush2.msra.mxu0 0.0
    %2128 = vmatprep.subr.mxu0 0.0
    %2129 = vmatpush2.msra.mxu0 0.0
    %2130 = vmatprep.subr.mxu0 0.0
    %2131 = vmatpush2.msra.mxu0 0.0
    %2132 = vmatprep.subr.mxu0 0.0
    %2133 = vmatpush2.msra.mxu0 0.0
    %2134 = vmatprep.subr.mxu0 0.0
    %2135 = vmatpush2.msra.mxu0 0.0
    %2136 = vmatprep.mubr.f32.mxu0 0.0
    %2137 = vmatmul.mubr.f32.gmra.mxu0 %v849
    %v2138 = vpop.f32.mrf.mxu0
    %v2139 = vadd.f32 0.0, %v2138
    %v2140 = vpop.f32.mrf.mxu0
    %2141 = vdwg.mxu0
    %v2143 = vrot.slane %v2139, 1
    %v2146 = vadd.f32 %v2060, %v2139
    %v2147 = vadd.f32 %v2065, %v2143
    %v2148 = vxor.u32 %v2146, 2147483648
    %v2149 = vxor.u32 %v2147, 2147483648
    %v2150 = vmul.f32 %v2148, 1.442695
    %v2151 = vpow.pop %v2150
    %v2152 = vmul.f32 %v2149, 1.442695
    %v2153 = vpow.pop %v2152
    %v2154 = vadd.f32 %v2151, 1.0
    %v2155 = vadd.f32 %v2153, 1.0
    %v2156 = vrcp.pop %v2154
    %v2157 = vmul.f32 1.0, %v2156
    %v2158 = vrcp.pop %v2155
    %v2159 = vmul.f32 1.0, %v2158
    %v2160 = vtanh.pop %v2146
    %v2161 = vtanh.pop %v2147
    %v2162 = vmul.f32 %v2157, 0.0
    %v2163 = vmul.f32 %v2159, 0.0
    %2166 = vrot.lane.b32.xlu0 %v2160, 64
    %v2167 = vpop.permute.xlu0 %2166
    %2168 = vrot.lane.b32.xlu0 %v2161, 64
    %v2169 = vpop.permute.xlu0 %2168
    %v2172 = vmul.f32 %v2157, %v2167
    %v2173 = vmul.f32 %v2159, %v2169
    %2176 = vrot.lane.b32.xlu0 %v2172, 32
    %v2177 = vpop.permute.xlu0 %2176
    %2178 = vrot.lane.b32.xlu0 %v2173, 32
    %v2179 = vpop.permute.xlu0 %2178
    %v2182 = vadd.f32 %v2162, %v2177
    %v2183 = vadd.f32 %v2163, %v2179
    %v2184 = vtanh.pop %v2182
    %v2185 = vtanh.pop %v2183
    %2188 = vrot.lane.b32.xlu0 %v2184, 64
    %v2189 = vpop.permute.xlu0 %2188
    %2190 = vrot.lane.b32.xlu0 %v2185, 64
    %v2191 = vpop.permute.xlu0 %2190
    %v2194 = vmul.f32 %v2157, %v2189
    %v2195 = vmul.f32 %v2159, %v2191
    %v2198 = vrot.slane %v2195, 7
    %v2199 = vsel %vm978, %v2198, %v2194
    %2200 = vrot.lane.b32.xlu0 %v2199, 32
    %v2201 = vpop.permute.xlu0 %2200
    %v2202 = vsel %vm847, %v2201, 0
    %2204 = vmatprep.subr.mxu0 0.0
    %2205 = vmatpush1.msra.mxu0 0.0
    %2206 = vmatprep.subr.mxu0 0.0
    %2207 = vmatpush1.msra.mxu0 0.0
    %2208 = vmatprep.subr.mxu0 0.0
    %2209 = vmatpush1.msra.mxu0 0.0
    %2210 = vmatprep.subr.mxu0 0.0
    %2211 = vmatpush1.msra.mxu0 0.0
    %2212 = vmatprep.subr.mxu0 0.0
    %2213 = vmatpush1.msra.mxu0 0.0
    %2214 = vmatprep.subr.mxu0 0.0
    %2215 = vmatpush1.msra.mxu0 0.0
    %2216 = vmatprep.subr.mxu0 0.0
    %2217 = vmatpush1.msra.mxu0 0.0
    %2218 = vmatprep.subr.mxu0 0.0
    %2219 = vmatpush1.msra.mxu0 0.0
    %2220 = vmatprep.subr.mxu0 0.0
    %2221 = vmatpush1.msra.mxu0 0.0
    %2222 = vmatprep.subr.mxu0 0.0
    %2223 = vmatpush1.msra.mxu0 0.0
    %2224 = vmatprep.subr.mxu0 0.0
    %2225 = vmatpush1.msra.mxu0 0.0
    %2226 = vmatprep.subr.mxu0 0.0
    %2227 = vmatpush1.msra.mxu0 0.0
    %2228 = vmatprep.subr.mxu0 0.0
    %2229 = vmatpush1.msra.mxu0 %v2071
    %2230 = vmatprep.subr.mxu0 0.0
    %2231 = vmatpush1.msra.mxu0 %v2070
    %2232 = vmatprep.subr.mxu0 0.0
    %2233 = vmatpush1.msra.mxu0 %v2069
    %2234 = vmatprep.subr.mxu0 0.0
    %2235 = vmatpush1.msra.mxu0 %v2068
    %2236 = vmatprep.subr.mxu0 0.0
    %2237 = vmatpush2.msra.mxu0 0.0
    %2238 = vmatprep.subr.mxu0 0.0
    %2239 = vmatpush2.msra.mxu0 0.0
    %2240 = vmatprep.subr.mxu0 0.0
    %2241 = vmatpush2.msra.mxu0 0.0
    %2242 = vmatprep.subr.mxu0 0.0
    %2243 = vmatpush2.msra.mxu0 0.0
    %2244 = vmatprep.subr.mxu0 0.0
    %2245 = vmatpush2.msra.mxu0 0.0
    %2246 = vmatprep.subr.mxu0 0.0
    %2247 = vmatpush2.msra.mxu0 0.0
    %2248 = vmatprep.subr.mxu0 0.0
    %2249 = vmatpush2.msra.mxu0 0.0
    %2250 = vmatprep.subr.mxu0 0.0
    %2251 = vmatpush2.msra.mxu0 0.0
    %2252 = vmatprep.subr.mxu0 0.0
    %2253 = vmatpush2.msra.mxu0 0.0
    %2254 = vmatprep.subr.mxu0 0.0
    %2255 = vmatpush2.msra.mxu0 0.0
    %2256 = vmatprep.subr.mxu0 0.0
    %2257 = vmatpush2.msra.mxu0 0.0
    %2258 = vmatprep.subr.mxu0 0.0
    %2259 = vmatpush2.msra.mxu0 0.0
    %2260 = vmatprep.subr.mxu0 0.0
    %2261 = vmatpush2.msra.mxu0 0.0
    %2262 = vmatprep.subr.mxu0 0.0
    %2263 = vmatpush2.msra.mxu0 0.0
    %2264 = vmatprep.subr.mxu0 0.0
    %2265 = vmatpush2.msra.mxu0 0.0
    %2266 = vmatprep.subr.mxu0 0.0
    %2267 = vmatpush2.msra.mxu0 0.0
    %2268 = vmatprep.mubr.f32.mxu0 0.0
    %2269 = vmatmul.mubr.f32.gmra.mxu0 %v2202
    %v2270 = vpop.f32.mrf.mxu0
    %v2271 = vadd.f32 0.0, %v2270
    %v2272 = vpop.f32.mrf.mxu0
    %2273 = vdwg.mxu0
    %v2275 = vrot.slane %v2271, 7
    %v2278 = vadd.f32 %v2060, %v2275
    %v2279 = vadd.f32 %v2065, %v2271
    %v2280 = vxor.u32 %v2278, 2147483648
    %v2281 = vxor.u32 %v2279, 2147483648
    %v2282 = vmul.f32 %v2280, 1.442695
    %v2283 = vpow.pop %v2282
    %v2284 = vmul.f32 %v2281, 1.442695
    %v2285 = vpow.pop %v2284
    %v2286 = vadd.f32 %v2283, 1.0
    %v2287 = vadd.f32 %v2285, 1.0
    %v2288 = vrcp.pop %v2286
    %v2289 = vmul.f32 1.0, %v2288
    %v2290 = vrcp.pop %v2287
    %v2291 = vmul.f32 1.0, %v2290
    %v2292 = vtanh.pop %v2278
    %v2293 = vtanh.pop %v2279
    %v2296 = vrot.slane %v2182, 7
    %v2297 = vrot.slane %v2183, 7
    %v2300 = vmul.f32 %v2289, %v2296
    %v2301 = vmul.f32 %v2291, %v2297
    %2304 = vrot.lane.b32.xlu0 %v2292, 64
    %v2305 = vpop.permute.xlu0 %2304
    %2306 = vrot.lane.b32.xlu0 %v2293, 64
    %v2307 = vpop.permute.xlu0 %2306
    %v2310 = vmul.f32 %v2289, %v2305
    %v2311 = vmul.f32 %v2291, %v2307
    %2314 = vrot.lane.b32.xlu0 %v2310, 32
    %v2315 = vpop.permute.xlu0 %2314
    %2316 = vrot.lane.b32.xlu0 %v2311, 32
    %v2317 = vpop.permute.xlu0 %2316
    %v2320 = vadd.f32 %v2300, %v2315
    %v2321 = vadd.f32 %v2301, %v2317
    %v2322 = vtanh.pop %v2320
    %v2323 = vtanh.pop %v2321
    %2326 = vrot.lane.b32.xlu0 %v2322, 64
    %v2327 = vpop.permute.xlu0 %2326
    %2328 = vrot.lane.b32.xlu0 %v2323, 64
    %v2329 = vpop.permute.xlu0 %2328
    %v2332 = vmul.f32 %v2289, %v2327
    %v2333 = vmul.f32 %v2291, %v2329
    %v2336 = vrot.slane %v2332, 1
    %v2337 = vsel %vm978, %v2333, %v2336
    %2338 = vrot.lane.b32.xlu0 %v2337, 32
    %v2339 = vpop.permute.xlu0 %2338
    %v2340 = vsel %vm847, %v2339, 0
    %2342 = vmatprep.subr.mxu0 0.0
    %2343 = vmatpush1.msra.mxu0 0.0
    %2344 = vmatprep.subr.mxu0 0.0
    %2345 = vmatpush1.msra.mxu0 0.0
    %2346 = vmatprep.subr.mxu0 0.0
    %2347 = vmatpush1.msra.mxu0 0.0
    %2348 = vmatprep.subr.mxu0 0.0
    %2349 = vmatpush1.msra.mxu0 0.0
    %2350 = vmatprep.subr.mxu0 0.0
    %2351 = vmatpush1.msra.mxu0 0.0
    %2352 = vmatprep.subr.mxu0 0.0
    %2353 = vmatpush1.msra.mxu0 0.0
    %2354 = vmatprep.subr.mxu0 0.0
    %2355 = vmatpush1.msra.mxu0 0.0
    %2356 = vmatprep.subr.mxu0 0.0
    %2357 = vmatpush1.msra.mxu0 0.0
    %2358 = vmatprep.subr.mxu0 0.0
    %2359 = vmatpush1.msra.mxu0 0.0
    %2360 = vmatprep.subr.mxu0 0.0
    %2361 = vmatpush1.msra.mxu0 0.0
    %2362 = vmatprep.subr.mxu0 0.0
    %2363 = vmatpush1.msra.mxu0 0.0
    %2364 = vmatprep.subr.mxu0 0.0
    %2365 = vmatpush1.msra.mxu0 0.0
    %2366 = vmatprep.subr.mxu0 0.0
    %2367 = vmatpush1.msra.mxu0 %v2071
    %2368 = vmatprep.subr.mxu0 0.0
    %2369 = vmatpush1.msra.mxu0 %v2070
    %2370 = vmatprep.subr.mxu0 0.0
    %2371 = vmatpush1.msra.mxu0 %v2069
    %2372 = vmatprep.subr.mxu0 0.0
    %2373 = vmatpush1.msra.mxu0 %v2068
    %2374 = vmatprep.subr.mxu0 0.0
    %2375 = vmatpush2.msra.mxu0 0.0
    %2376 = vmatprep.subr.mxu0 0.0
    %2377 = vmatpush2.msra.mxu0 0.0
    %2378 = vmatprep.subr.mxu0 0.0
    %2379 = vmatpush2.msra.mxu0 0.0
    %2380 = vmatprep.subr.mxu0 0.0
    %2381 = vmatpush2.msra.mxu0 0.0
    %2382 = vmatprep.subr.mxu0 0.0
    %2383 = vmatpush2.msra.mxu0 0.0
    %2384 = vmatprep.subr.mxu0 0.0
    %2385 = vmatpush2.msra.mxu0 0.0
    %2386 = vmatprep.subr.mxu0 0.0
    %2387 = vmatpush2.msra.mxu0 0.0
    %2388 = vmatprep.subr.mxu0 0.0
    %2389 = vmatpush2.msra.mxu0 0.0
    %2390 = vmatprep.subr.mxu0 0.0
    %2391 = vmatpush2.msra.mxu0 0.0
    %2392 = vmatprep.subr.mxu0 0.0
    %2393 = vmatpush2.msra.mxu0 0.0
    %2394 = vmatprep.subr.mxu0 0.0
    %2395 = vmatpush2.msra.mxu0 0.0
    %2396 = vmatprep.subr.mxu0 0.0
    %2397 = vmatpush2.msra.mxu0 0.0
    %2398 = vmatprep.subr.mxu0 0.0
    %2399 = vmatpush2.msra.mxu0 0.0
    %2400 = vmatprep.subr.mxu0 0.0
    %2401 = vmatpush2.msra.mxu0 0.0
    %2402 = vmatprep.subr.mxu0 0.0
    %2403 = vmatpush2.msra.mxu0 0.0
    %2404 = vmatprep.subr.mxu0 0.0
    %2405 = vmatpush2.msra.mxu0 0.0
    %2406 = vmatprep.mubr.f32.mxu0 0.0
    %2407 = vmatmul.mubr.f32.gmra.mxu0 %v2340
    %v2408 = vpop.f32.mrf.mxu0
    %v2409 = vadd.f32 0.0, %v2408
    %v2410 = vpop.f32.mrf.mxu0
    %2411 = vdwg.mxu0
    %v2413 = vrot.slane %v2409, 6
    %v2414 = vrot.slane %v2409, 7
    %v2417 = vadd.f32 %v2060, %v2413
    %v2418 = vadd.f32 %v2065, %v2414
    %v2419 = vxor.u32 %v2417, 2147483648
    %v2420 = vxor.u32 %v2418, 2147483648
    %v2421 = vmul.f32 %v2419, 1.442695
    %v2422 = vpow.pop %v2421
    %v2423 = vmul.f32 %v2420, 1.442695
    %v2424 = vpow.pop %v2423
    %v2425 = vadd.f32 %v2422, 1.0
    %v2426 = vadd.f32 %v2424, 1.0
    %v2427 = vrcp.pop %v2425
    %v2428 = vmul.f32 1.0, %v2427
    %v2429 = vrcp.pop %v2426
    %v2430 = vmul.f32 1.0, %v2429
    %v2431 = vtanh.pop %v2417
    %v2432 = vtanh.pop %v2418
    %v2435 = vrot.slane %v2320, 7
    %v2436 = vrot.slane %v2321, 7
    %v2439 = vmul.f32 %v2428, %v2435
    %v2440 = vmul.f32 %v2430, %v2436
    %2443 = vrot.lane.b32.xlu0 %v2431, 64
    %v2444 = vpop.permute.xlu0 %2443
    %2445 = vrot.lane.b32.xlu0 %v2432, 64
    %v2446 = vpop.permute.xlu0 %2445
    %v2449 = vmul.f32 %v2428, %v2444
    %v2450 = vmul.f32 %v2430, %v2446
    %2453 = vrot.lane.b32.xlu0 %v2449, 32
    %v2454 = vpop.permute.xlu0 %2453
    %2455 = vrot.lane.b32.xlu0 %v2450, 32
    %v2456 = vpop.permute.xlu0 %2455
    %v2459 = vadd.f32 %v2439, %v2454
    %v2460 = vadd.f32 %v2440, %v2456
    %v2461 = vtanh.pop %v2459
    %v2462 = vtanh.pop %v2460
    %2465 = vrot.lane.b32.xlu0 %v2461, 64
    %v2466 = vpop.permute.xlu0 %2465
    %2467 = vrot.lane.b32.xlu0 %v2462, 64
    %v2468 = vpop.permute.xlu0 %2467
    %v2471 = vmul.f32 %v2428, %v2466
    %v2472 = vmul.f32 %v2430, %v2468
    %v2475 = vrot.slane %v2471, 2
    %v2476 = vrot.slane %v2472, 1
    %v2477 = vsel %vm978, %v2476, %v2475
    %2478 = vrot.lane.b32.xlu0 %v2477, 32
    %v2479 = vpop.permute.xlu0 %2478
    %v2480 = vsel %vm847, %v2479, 0
    %2482 = vmatprep.subr.mxu0 0.0
    %2483 = vmatpush1.msra.mxu0 0.0
    %2484 = vmatprep.subr.mxu0 0.0
    %2485 = vmatpush1.msra.mxu0 0.0
    %2486 = vmatprep.subr.mxu0 0.0
    %2487 = vmatpush1.msra.mxu0 0.0
    %2488 = vmatprep.subr.mxu0 0.0
    %2489 = vmatpush1.msra.mxu0 0.0
    %2490 = vmatprep.subr.mxu0 0.0
    %2491 = vmatpush1.msra.mxu0 0.0
    %2492 = vmatprep.subr.mxu0 0.0
    %2493 = vmatpush1.msra.mxu0 0.0
    %2494 = vmatprep.subr.mxu0 0.0
    %2495 = vmatpush1.msra.mxu0 0.0
    %2496 = vmatprep.subr.mxu0 0.0
    %2497 = vmatpush1.msra.mxu0 0.0
    %2498 = vmatprep.subr.mxu0 0.0
    %2499 = vmatpush1.msra.mxu0 0.0
    %2500 = vmatprep.subr.mxu0 0.0
    %2501 = vmatpush1.msra.mxu0 0.0
    %2502 = vmatprep.subr.mxu0 0.0
    %2503 = vmatpush1.msra.mxu0 0.0
    %2504 = vmatprep.subr.mxu0 0.0
    %2505 = vmatpush1.msra.mxu0 0.0
    %2506 = vmatprep.subr.mxu0 0.0
    %2507 = vmatpush1.msra.mxu0 %v2071
    %2508 = vmatprep.subr.mxu0 0.0
    %2509 = vmatpush1.msra.mxu0 %v2070
    %2510 = vmatprep.subr.mxu0 0.0
    %2511 = vmatpush1.msra.mxu0 %v2069
    %2512 = vmatprep.subr.mxu0 0.0
    %2513 = vmatpush1.msra.mxu0 %v2068
    %2514 = vmatprep.subr.mxu0 0.0
    %2515 = vmatpush2.msra.mxu0 0.0
    %2516 = vmatprep.subr.mxu0 0.0
    %2517 = vmatpush2.msra.mxu0 0.0
    %2518 = vmatprep.subr.mxu0 0.0
    %2519 = vmatpush2.msra.mxu0 0.0
    %2520 = vmatprep.subr.mxu0 0.0
    %2521 = vmatpush2.msra.mxu0 0.0
    %2522 = vmatprep.subr.mxu0 0.0
    %2523 = vmatpush2.msra.mxu0 0.0
    %2524 = vmatprep.subr.mxu0 0.0
    %2525 = vmatpush2.msra.mxu0 0.0
    %2526 = vmatprep.subr.mxu0 0.0
    %2527 = vmatpush2.msra.mxu0 0.0
    %2528 = vmatprep.subr.mxu0 0.0
    %2529 = vmatpush2.msra.mxu0 0.0
    %2530 = vmatprep.subr.mxu0 0.0
    %2531 = vmatpush2.msra.mxu0 0.0
    %2532 = vmatprep.subr.mxu0 0.0
    %2533 = vmatpush2.msra.mxu0 0.0
    %2534 = vmatprep.subr.mxu0 0.0
    %2535 = vmatpush2.msra.mxu0 0.0
    %2536 = vmatprep.subr.mxu0 0.0
    %2537 = vmatpush2.msra.mxu0 0.0
    %2538 = vmatprep.subr.mxu0 0.0
    %2539 = vmatpush2.msra.mxu0 0.0
    %2540 = vmatprep.subr.mxu0 0.0
    %2541 = vmatpush2.msra.mxu0 0.0
    %2542 = vmatprep.subr.mxu0 0.0
    %2543 = vmatpush2.msra.mxu0 0.0
    %2544 = vmatprep.subr.mxu0 0.0
    %2545 = vmatpush2.msra.mxu0 0.0
    %2546 = vmatprep.mubr.f32.mxu0 0.0
    %2547 = vmatmul.mubr.f32.gmra.mxu0 %v2480
    %v2548 = vpop.f32.mrf.mxu0
    %v2549 = vadd.f32 0.0, %v2548
    %v2550 = vpop.f32.mrf.mxu0
    %2551 = vdwg.mxu0
    %v2553 = vrot.slane %v2549, 5
    %v2554 = vrot.slane %v2549, 6
    %v2557 = vadd.f32 %v2060, %v2553
    %v2558 = vadd.f32 %v2065, %v2554
    %v2559 = vxor.u32 %v2557, 2147483648
    %v2560 = vxor.u32 %v2558, 2147483648
    %v2561 = vmul.f32 %v2559, 1.442695
    %v2562 = vpow.pop %v2561
    %v2563 = vmul.f32 %v2560, 1.442695
    %v2564 = vpow.pop %v2563
    %v2565 = vadd.f32 %v2562, 1.0
    %v2566 = vadd.f32 %v2564, 1.0
    %v2567 = vrcp.pop %v2565
    %v2568 = vmul.f32 1.0, %v2567
    %v2569 = vrcp.pop %v2566
    %v2570 = vmul.f32 1.0, %v2569
    %v2571 = vtanh.pop %v2557
    %v2572 = vtanh.pop %v2558
    %v2575 = vrot.slane %v2459, 7
    %v2576 = vrot.slane %v2460, 7
    %v2579 = vmul.f32 %v2568, %v2575
    %v2580 = vmul.f32 %v2570, %v2576
    %2583 = vrot.lane.b32.xlu0 %v2571, 64
    %v2584 = vpop.permute.xlu0 %2583
    %2585 = vrot.lane.b32.xlu0 %v2572, 64
    %v2586 = vpop.permute.xlu0 %2585
    %v2589 = vmul.f32 %v2568, %v2584
    %v2590 = vmul.f32 %v2570, %v2586
    %2593 = vrot.lane.b32.xlu0 %v2589, 32
    %v2594 = vpop.permute.xlu0 %2593
    %2595 = vrot.lane.b32.xlu0 %v2590, 32
    %v2596 = vpop.permute.xlu0 %2595
    %v2599 = vadd.f32 %v2579, %v2594
    %v2600 = vadd.f32 %v2580, %v2596
    %v2601 = vtanh.pop %v2599
    %v2602 = vtanh.pop %v2600
    %2605 = vrot.lane.b32.xlu0 %v2601, 64
    %v2606 = vpop.permute.xlu0 %2605
    %2607 = vrot.lane.b32.xlu0 %v2602, 64
    %v2608 = vpop.permute.xlu0 %2607
    %v2611 = vmul.f32 %v2568, %v2606
    %v2612 = vmul.f32 %v2570, %v2608
    %v2615 = vrot.slane %v2611, 3
    %v2616 = vrot.slane %v2612, 2
    %v2617 = vsel %vm978, %v2616, %v2615
    %2618 = vrot.lane.b32.xlu0 %v2617, 32
    %v2619 = vpop.permute.xlu0 %2618
    %v2620 = vsel %vm847, %v2619, 0
    %2622 = vmatprep.subr.mxu0 0.0
    %2623 = vmatpush1.msra.mxu0 0.0
    %2624 = vmatprep.subr.mxu0 0.0
    %2625 = vmatpush1.msra.mxu0 0.0
    %2626 = vmatprep.subr.mxu0 0.0
    %2627 = vmatpush1.msra.mxu0 0.0
    %2628 = vmatprep.subr.mxu0 0.0
    %2629 = vmatpush1.msra.mxu0 0.0
    %2630 = vmatprep.subr.mxu0 0.0
    %2631 = vmatpush1.msra.mxu0 0.0
    %2632 = vmatprep.subr.mxu0 0.0
    %2633 = vmatpush1.msra.mxu0 0.0
    %2634 = vmatprep.subr.mxu0 0.0
    %2635 = vmatpush1.msra.mxu0 0.0
    %2636 = vmatprep.subr.mxu0 0.0
    %2637 = vmatpush1.msra.mxu0 0.0
    %2638 = vmatprep.subr.mxu0 0.0
    %2639 = vmatpush1.msra.mxu0 0.0
    %2640 = vmatprep.subr.mxu0 0.0
    %2641 = vmatpush1.msra.mxu0 0.0
    %2642 = vmatprep.subr.mxu0 0.0
    %2643 = vmatpush1.msra.mxu0 0.0
    %2644 = vmatprep.subr.mxu0 0.0
    %2645 = vmatpush1.msra.mxu0 0.0
    %2646 = vmatprep.subr.mxu0 0.0
    %2647 = vmatpush1.msra.mxu0 %v2071
    %2648 = vmatprep.subr.mxu0 0.0
    %2649 = vmatpush1.msra.mxu0 %v2070
    %2650 = vmatprep.subr.mxu0 0.0
    %2651 = vmatpush1.msra.mxu0 %v2069
    %2652 = vmatprep.subr.mxu0 0.0
    %2653 = vmatpush1.msra.mxu0 %v2068
    %2654 = vmatprep.subr.mxu0 0.0
    %2655 = vmatpush2.msra.mxu0 0.0
    %2656 = vmatprep.subr.mxu0 0.0
    %2657 = vmatpush2.msra.mxu0 0.0
    %2658 = vmatprep.subr.mxu0 0.0
    %2659 = vmatpush2.msra.mxu0 0.0
    %2660 = vmatprep.subr.mxu0 0.0
    %2661 = vmatpush2.msra.mxu0 0.0
    %2662 = vmatprep.subr.mxu0 0.0
    %2663 = vmatpush2.msra.mxu0 0.0
    %2664 = vmatprep.subr.mxu0 0.0
    %2665 = vmatpush2.msra.mxu0 0.0
    %2666 = vmatprep.subr.mxu0 0.0
    %2667 = vmatpush2.msra.mxu0 0.0
    %2668 = vmatprep.subr.mxu0 0.0
    %2669 = vmatpush2.msra.mxu0 0.0
    %2670 = vmatprep.subr.mxu0 0.0
    %2671 = vmatpush2.msra.mxu0 0.0
    %2672 = vmatprep.subr.mxu0 0.0
    %2673 = vmatpush2.msra.mxu0 0.0
    %2674 = vmatprep.subr.mxu0 0.0
    %2675 = vmatpush2.msra.mxu0 0.0
    %2676 = vmatprep.subr.mxu0 0.0
    %2677 = vmatpush2.msra.mxu0 0.0
    %2678 = vmatprep.subr.mxu0 0.0
    %2679 = vmatpush2.msra.mxu0 0.0
    %2680 = vmatprep.subr.mxu0 0.0
    %2681 = vmatpush2.msra.mxu0 0.0
    %2682 = vmatprep.subr.mxu0 0.0
    %2683 = vmatpush2.msra.mxu0 0.0
    %2684 = vmatprep.subr.mxu0 0.0
    %2685 = vmatpush2.msra.mxu0 0.0
    %2686 = vmatprep.mubr.f32.mxu0 0.0
    %2687 = vmatmul.mubr.f32.gmra.mxu0 %v2620
    %v2688 = vpop.f32.mrf.mxu0
    %v2689 = vadd.f32 0.0, %v2688
    %v2690 = vpop.f32.mrf.mxu0
    %2691 = vdwg.mxu0
    %v2693 = vrot.slane %v2689, 4
    %v2694 = vrot.slane %v2689, 5
    %v2697 = vadd.f32 %v2060, %v2693
    %v2698 = vadd.f32 %v2065, %v2694
    %v2699 = vxor.u32 %v2697, 2147483648
    %v2700 = vxor.u32 %v2698, 2147483648
    %v2701 = vmul.f32 %v2699, 1.442695
    %v2702 = vpow.pop %v2701
    %v2703 = vmul.f32 %v2700, 1.442695
    %v2704 = vpow.pop %v2703
    %v2705 = vadd.f32 %v2702, 1.0
    %v2706 = vadd.f32 %v2704, 1.0
    %v2707 = vrcp.pop %v2705
    %v2708 = vmul.f32 1.0, %v2707
    %v2709 = vrcp.pop %v2706
    %v2710 = vmul.f32 1.0, %v2709
    %v2711 = vtanh.pop %v2697
    %v2712 = vtanh.pop %v2698
    %v2715 = vrot.slane %v2599, 7
    %v2716 = vrot.slane %v2600, 7
    %v2719 = vmul.f32 %v2708, %v2715
    %v2720 = vmul.f32 %v2710, %v2716
    %2723 = vrot.lane.b32.xlu0 %v2711, 64
    %v2724 = vpop.permute.xlu0 %2723
    %2725 = vrot.lane.b32.xlu0 %v2712, 64
    %v2726 = vpop.permute.xlu0 %2725
    %v2729 = vmul.f32 %v2708, %v2724
    %v2730 = vmul.f32 %v2710, %v2726
    %2733 = vrot.lane.b32.xlu0 %v2729, 32
    %v2734 = vpop.permute.xlu0 %2733
    %2735 = vrot.lane.b32.xlu0 %v2730, 32
    %v2736 = vpop.permute.xlu0 %2735
    %v2739 = vadd.f32 %v2719, %v2734
    %v2740 = vadd.f32 %v2720, %v2736
    %v2741 = vtanh.pop %v2739
    %v2742 = vtanh.pop %v2740
    %2745 = vrot.lane.b32.xlu0 %v2741, 64
    %v2746 = vpop.permute.xlu0 %2745
    %2747 = vrot.lane.b32.xlu0 %v2742, 64
    %v2748 = vpop.permute.xlu0 %2747
    %v2751 = vmul.f32 %v2708, %v2746
    %v2752 = vmul.f32 %v2710, %v2748
    %v2755 = vrot.slane %v2751, 4
    %v2756 = vrot.slane %v2752, 3
    %v2757 = vsel %vm978, %v2756, %v2755
    %2758 = vrot.lane.b32.xlu0 %v2757, 32
    %v2759 = vpop.permute.xlu0 %2758
    %v2760 = vsel %vm847, %v2759, 0
    %2762 = vmatprep.subr.mxu0 0.0
    %2763 = vmatpush1.msra.mxu0 0.0
    %2764 = vmatprep.subr.mxu0 0.0
    %2765 = vmatpush1.msra.mxu0 0.0
    %2766 = vmatprep.subr.mxu0 0.0
    %2767 = vmatpush1.msra.mxu0 0.0
    %2768 = vmatprep.subr.mxu0 0.0
    %2769 = vmatpush1.msra.mxu0 0.0
    %2770 = vmatprep.subr.mxu0 0.0
    %2771 = vmatpush1.msra.mxu0 0.0
    %2772 = vmatprep.subr.mxu0 0.0
    %2773 = vmatpush1.msra.mxu0 0.0
    %2774 = vmatprep.subr.mxu0 0.0
    %2775 = vmatpush1.msra.mxu0 0.0
    %2776 = vmatprep.subr.mxu0 0.0
    %2777 = vmatpush1.msra.mxu0 0.0
    %2778 = vmatprep.subr.mxu0 0.0
    %2779 = vmatpush1.msra.mxu0 0.0
    %2780 = vmatprep.subr.mxu0 0.0
    %2781 = vmatpush1.msra.mxu0 0.0
    %2782 = vmatprep.subr.mxu0 0.0
    %2783 = vmatpush1.msra.mxu0 0.0
    %2784 = vmatprep.subr.mxu0 0.0
    %2785 = vmatpush1.msra.mxu0 0.0
    %2786 = vmatprep.subr.mxu0 0.0
    %2787 = vmatpush1.msra.mxu0 %v2071
    %2788 = vmatprep.subr.mxu0 0.0
    %2789 = vmatpush1.msra.mxu0 %v2070
    %2790 = vmatprep.subr.mxu0 0.0
    %2791 = vmatpush1.msra.mxu0 %v2069
    %2792 = vmatprep.subr.mxu0 0.0
    %2793 = vmatpush1.msra.mxu0 %v2068
    %2794 = vmatprep.subr.mxu0 0.0
    %2795 = vmatpush2.msra.mxu0 0.0
    %2796 = vmatprep.subr.mxu0 0.0
    %2797 = vmatpush2.msra.mxu0 0.0
    %2798 = vmatprep.subr.mxu0 0.0
    %2799 = vmatpush2.msra.mxu0 0.0
    %2800 = vmatprep.subr.mxu0 0.0
    %2801 = vmatpush2.msra.mxu0 0.0
    %2802 = vmatprep.subr.mxu0 0.0
    %2803 = vmatpush2.msra.mxu0 0.0
    %2804 = vmatprep.subr.mxu0 0.0
    %2805 = vmatpush2.msra.mxu0 0.0
    %2806 = vmatprep.subr.mxu0 0.0
    %2807 = vmatpush2.msra.mxu0 0.0
    %2808 = vmatprep.subr.mxu0 0.0
    %2809 = vmatpush2.msra.mxu0 0.0
    %2810 = vmatprep.subr.mxu0 0.0
    %2811 = vmatpush2.msra.mxu0 0.0
    %2812 = vmatprep.subr.mxu0 0.0
    %2813 = vmatpush2.msra.mxu0 0.0
    %2814 = vmatprep.subr.mxu0 0.0
    %2815 = vmatpush2.msra.mxu0 0.0
    %2816 = vmatprep.subr.mxu0 0.0
    %2817 = vmatpush2.msra.mxu0 0.0
    %2818 = vmatprep.subr.mxu0 0.0
    %2819 = vmatpush2.msra.mxu0 0.0
    %2820 = vmatprep.subr.mxu0 0.0
    %2821 = vmatpush2.msra.mxu0 0.0
    %2822 = vmatprep.subr.mxu0 0.0
    %2823 = vmatpush2.msra.mxu0 0.0
    %2824 = vmatprep.subr.mxu0 0.0
    %2825 = vmatpush2.msra.mxu0 0.0
    %2826 = vmatprep.mubr.f32.mxu0 0.0
    %2827 = vmatmul.mubr.f32.gmra.mxu0 %v2760
    %v2828 = vpop.f32.mrf.mxu0
    %v2829 = vadd.f32 0.0, %v2828
    %v2830 = vpop.f32.mrf.mxu0
    %2831 = vdwg.mxu0
    %v2833 = vrot.slane %v2829, 3
    %v2834 = vrot.slane %v2829, 4
    %v2837 = vadd.f32 %v2060, %v2833
    %v2838 = vadd.f32 %v2065, %v2834
    %v2839 = vxor.u32 %v2837, 2147483648
    %v2840 = vxor.u32 %v2838, 2147483648
    %v2841 = vmul.f32 %v2839, 1.442695
    %v2842 = vpow.pop %v2841
    %v2843 = vmul.f32 %v2840, 1.442695
    %v2844 = vpow.pop %v2843
    %v2845 = vadd.f32 %v2842, 1.0
    %v2846 = vadd.f32 %v2844, 1.0
    %v2847 = vrcp.pop %v2845
    %v2848 = vmul.f32 1.0, %v2847
    %v2849 = vrcp.pop %v2846
    %v2850 = vmul.f32 1.0, %v2849
    %v2851 = vtanh.pop %v2837
    %v2852 = vtanh.pop %v2838
    %v2855 = vrot.slane %v2739, 7
    %v2856 = vrot.slane %v2740, 7
    %v2859 = vmul.f32 %v2848, %v2855
    %v2860 = vmul.f32 %v2850, %v2856
    %2863 = vrot.lane.b32.xlu0 %v2851, 64
    %v2864 = vpop.permute.xlu0 %2863
    %2865 = vrot.lane.b32.xlu0 %v2852, 64
    %v2866 = vpop.permute.xlu0 %2865
    %v2869 = vmul.f32 %v2848, %v2864
    %v2870 = vmul.f32 %v2850, %v2866
    %2873 = vrot.lane.b32.xlu0 %v2869, 32
    %v2874 = vpop.permute.xlu0 %2873
    %2875 = vrot.lane.b32.xlu0 %v2870, 32
    %v2876 = vpop.permute.xlu0 %2875
    %v2879 = vadd.f32 %v2859, %v2874
    %v2880 = vadd.f32 %v2860, %v2876
    %v2881 = vtanh.pop %v2879
    %v2882 = vtanh.pop %v2880
    %2885 = vrot.lane.b32.xlu0 %v2881, 64
    %v2886 = vpop.permute.xlu0 %2885
    %2887 = vrot.lane.b32.xlu0 %v2882, 64
    %v2888 = vpop.permute.xlu0 %2887
    %v2891 = vmul.f32 %v2848, %v2886
    %v2892 = vmul.f32 %v2850, %v2888
    %v2895 = vrot.slane %v2891, 5
    %v2896 = vrot.slane %v2892, 4
    %v2897 = vsel %vm978, %v2896, %v2895
    %2898 = vrot.lane.b32.xlu0 %v2897, 32
    %v2899 = vpop.permute.xlu0 %2898
    %v2900 = vsel %vm847, %v2899, 0
    %2902 = vmatprep.subr.mxu0 0.0
    %2903 = vmatpush1.msra.mxu0 0.0
    %2904 = vmatprep.subr.mxu0 0.0
    %2905 = vmatpush1.msra.mxu0 0.0
    %2906 = vmatprep.subr.mxu0 0.0
    %2907 = vmatpush1.msra.mxu0 0.0
    %2908 = vmatprep.subr.mxu0 0.0
    %2909 = vmatpush1.msra.mxu0 0.0
    %2910 = vmatprep.subr.mxu0 0.0
    %2911 = vmatpush1.msra.mxu0 0.0
    %2912 = vmatprep.subr.mxu0 0.0
    %2913 = vmatpush1.msra.mxu0 0.0
    %2914 = vmatprep.subr.mxu0 0.0
    %2915 = vmatpush1.msra.mxu0 0.0
    %2916 = vmatprep.subr.mxu0 0.0
    %2917 = vmatpush1.msra.mxu0 0.0
    %2918 = vmatprep.subr.mxu0 0.0
    %2919 = vmatpush1.msra.mxu0 0.0
    %2920 = vmatprep.subr.mxu0 0.0
    %2921 = vmatpush1.msra.mxu0 0.0
    %2922 = vmatprep.subr.mxu0 0.0
    %2923 = vmatpush1.msra.mxu0 0.0
    %2924 = vmatprep.subr.mxu0 0.0
    %2925 = vmatpush1.msra.mxu0 0.0
    %2926 = vmatprep.subr.mxu0 0.0
    %2927 = vmatpush1.msra.mxu0 %v2071
    %2928 = vmatprep.subr.mxu0 0.0
    %2929 = vmatpush1.msra.mxu0 %v2070
    %2930 = vmatprep.subr.mxu0 0.0
    %2931 = vmatpush1.msra.mxu0 %v2069
    %2932 = vmatprep.subr.mxu0 0.0
    %2933 = vmatpush1.msra.mxu0 %v2068
    %2934 = vmatprep.subr.mxu0 0.0
    %2935 = vmatpush2.msra.mxu0 0.0
    %2936 = vmatprep.subr.mxu0 0.0
    %2937 = vmatpush2.msra.mxu0 0.0
    %2938 = vmatprep.subr.mxu0 0.0
    %2939 = vmatpush2.msra.mxu0 0.0
    %2940 = vmatprep.subr.mxu0 0.0
    %2941 = vmatpush2.msra.mxu0 0.0
    %2942 = vmatprep.subr.mxu0 0.0
    %2943 = vmatpush2.msra.mxu0 0.0
    %2944 = vmatprep.subr.mxu0 0.0
    %2945 = vmatpush2.msra.mxu0 0.0
    %2946 = vmatprep.subr.mxu0 0.0
    %2947 = vmatpush2.msra.mxu0 0.0
    %2948 = vmatprep.subr.mxu0 0.0
    %2949 = vmatpush2.msra.mxu0 0.0
    %2950 = vmatprep.subr.mxu0 0.0
    %2951 = vmatpush2.msra.mxu0 0.0
    %2952 = vmatprep.subr.mxu0 0.0
    %2953 = vmatpush2.msra.mxu0 0.0
    %2954 = vmatprep.subr.mxu0 0.0
    %2955 = vmatpush2.msra.mxu0 0.0
    %2956 = vmatprep.subr.mxu0 0.0
    %2957 = vmatpush2.msra.mxu0 0.0
    %2958 = vmatprep.subr.mxu0 0.0
    %2959 = vmatpush2.msra.mxu0 0.0
    %2960 = vmatprep.subr.mxu0 0.0
    %2961 = vmatpush2.msra.mxu0 0.0
    %2962 = vmatprep.subr.mxu0 0.0
    %2963 = vmatpush2.msra.mxu0 0.0
    %2964 = vmatprep.subr.mxu0 0.0
    %2965 = vmatpush2.msra.mxu0 0.0
    %2966 = vmatprep.mubr.f32.mxu0 0.0
    %2967 = vmatmul.mubr.f32.gmra.mxu0 %v2900
    %v2968 = vpop.f32.mrf.mxu0
    %v2969 = vadd.f32 0.0, %v2968
    %v2970 = vpop.f32.mrf.mxu0
    %2971 = vdwg.mxu0
    %v2973 = vrot.slane %v2969, 2
    %v2974 = vrot.slane %v2969, 3
    %v2977 = vadd.f32 %v2060, %v2973
    %v2978 = vadd.f32 %v2065, %v2974
    %v2979 = vxor.u32 %v2977, 2147483648
    %v2980 = vxor.u32 %v2978, 2147483648
    %v2981 = vmul.f32 %v2979, 1.442695
    %v2982 = vpow.pop %v2981
    %v2983 = vmul.f32 %v2980, 1.442695
    %v2984 = vpow.pop %v2983
    %v2985 = vadd.f32 %v2982, 1.0
    %v2986 = vadd.f32 %v2984, 1.0
    %v2987 = vrcp.pop %v2985
    %v2988 = vmul.f32 1.0, %v2987
    %v2989 = vrcp.pop %v2986
    %v2990 = vmul.f32 1.0, %v2989
    %v2991 = vtanh.pop %v2977
    %v2992 = vtanh.pop %v2978
    %v2995 = vrot.slane %v2879, 7
    %v2996 = vrot.slane %v2880, 7
    %v2999 = vmul.f32 %v2988, %v2995
    %v3000 = vmul.f32 %v2990, %v2996
    %3003 = vrot.lane.b32.xlu0 %v2991, 64
    %v3004 = vpop.permute.xlu0 %3003
    %3005 = vrot.lane.b32.xlu0 %v2992, 64
    %v3006 = vpop.permute.xlu0 %3005
    %v3009 = vmul.f32 %v2988, %v3004
    %v3010 = vmul.f32 %v2990, %v3006
    %3013 = vrot.lane.b32.xlu0 %v3009, 32
    %v3014 = vpop.permute.xlu0 %3013
    %3015 = vrot.lane.b32.xlu0 %v3010, 32
    %v3016 = vpop.permute.xlu0 %3015
    %v3019 = vadd.f32 %v2999, %v3014
    %v3020 = vadd.f32 %v3000, %v3016
    %v3021 = vtanh.pop %v3019
    %v3022 = vtanh.pop %v3020
    %3025 = vrot.lane.b32.xlu0 %v3021, 64
    %v3026 = vpop.permute.xlu0 %3025
    %3027 = vrot.lane.b32.xlu0 %v3022, 64
    %v3028 = vpop.permute.xlu0 %3027
    %v3031 = vmul.f32 %v2988, %v3026
    %v3032 = vmul.f32 %v2990, %v3028
    %v3035 = vrot.slane %v3031, 6
    %v3036 = vrot.slane %v3032, 5
    %v3037 = vsel %vm978, %v3036, %v3035
    %3038 = vrot.lane.b32.xlu0 %v3037, 32
    %v3039 = vpop.permute.xlu0 %3038
    %v3040 = vsel %vm847, %v3039, 0
    %3042 = vmatprep.subr.mxu0 0.0
    %3043 = vmatpush1.msra.mxu0 0.0
    %3044 = vmatprep.subr.mxu0 0.0
    %3045 = vmatpush1.msra.mxu0 0.0
    %3046 = vmatprep.subr.mxu0 0.0
    %3047 = vmatpush1.msra.mxu0 0.0
    %3048 = vmatprep.subr.mxu0 0.0
    %3049 = vmatpush1.msra.mxu0 0.0
    %3050 = vmatprep.subr.mxu0 0.0
    %3051 = vmatpush1.msra.mxu0 0.0
    %3052 = vmatprep.subr.mxu0 0.0
    %3053 = vmatpush1.msra.mxu0 0.0
    %3054 = vmatprep.subr.mxu0 0.0
    %3055 = vmatpush1.msra.mxu0 0.0
    %3056 = vmatprep.subr.mxu0 0.0
    %3057 = vmatpush1.msra.mxu0 0.0
    %3058 = vmatprep.subr.mxu0 0.0
    %3059 = vmatpush1.msra.mxu0 0.0
    %3060 = vmatprep.subr.mxu0 0.0
    %3061 = vmatpush1.msra.mxu0 0.0
    %3062 = vmatprep.subr.mxu0 0.0
    %3063 = vmatpush1.msra.mxu0 0.0
    %3064 = vmatprep.subr.mxu0 0.0
    %3065 = vmatpush1.msra.mxu0 0.0
    %3066 = vmatprep.subr.mxu0 0.0
    %3067 = vmatpush1.msra.mxu0 %v2071
    %3068 = vmatprep.subr.mxu0 0.0
    %3069 = vmatpush1.msra.mxu0 %v2070
    %3070 = vmatprep.subr.mxu0 0.0
    %3071 = vmatpush1.msra.mxu0 %v2069
    %3072 = vmatprep.subr.mxu0 0.0
    %3073 = vmatpush1.msra.mxu0 %v2068
    %3074 = vmatprep.subr.mxu0 0.0
    %3075 = vmatpush2.msra.mxu0 0.0
    %3076 = vmatprep.subr.mxu0 0.0
    %3077 = vmatpush2.msra.mxu0 0.0
    %3078 = vmatprep.subr.mxu0 0.0
    %3079 = vmatpush2.msra.mxu0 0.0
    %3080 = vmatprep.subr.mxu0 0.0
    %3081 = vmatpush2.msra.mxu0 0.0
    %3082 = vmatprep.subr.mxu0 0.0
    %3083 = vmatpush2.msra.mxu0 0.0
    %3084 = vmatprep.subr.mxu0 0.0
    %3085 = vmatpush2.msra.mxu0 0.0
    %3086 = vmatprep.subr.mxu0 0.0
    %3087 = vmatpush2.msra.mxu0 0.0
    %3088 = vmatprep.subr.mxu0 0.0
    %3089 = vmatpush2.msra.mxu0 0.0
    %3090 = vmatprep.subr.mxu0 0.0
    %3091 = vmatpush2.msra.mxu0 0.0
    %3092 = vmatprep.subr.mxu0 0.0
    %3093 = vmatpush2.msra.mxu0 0.0
    %3094 = vmatprep.subr.mxu0 0.0
    %3095 = vmatpush2.msra.mxu0 0.0
    %3096 = vmatprep.subr.mxu0 0.0
    %3097 = vmatpush2.msra.mxu0 0.0
    %3098 = vmatprep.subr.mxu0 0.0
    %3099 = vmatpush2.msra.mxu0 0.0
    %3100 = vmatprep.subr.mxu0 0.0
    %3101 = vmatpush2.msra.mxu0 0.0
    %3102 = vmatprep.subr.mxu0 0.0
    %3103 = vmatpush2.msra.mxu0 0.0
    %3104 = vmatprep.subr.mxu0 0.0
    %3105 = vmatpush2.msra.mxu0 0.0
    %3106 = vmatprep.mubr.f32.mxu0 0.0
    %3107 = vmatmul.mubr.f32.gmra.mxu0 %v3040
    %v3108 = vpop.f32.mrf.mxu0
    %v3109 = vadd.f32 0.0, %v3108
    %v3110 = vpop.f32.mrf.mxu0
    %3111 = vdwg.mxu0
    %v3113 = vrot.slane %v3109, 1
    %v3114 = vrot.slane %v3109, 2
    %v3117 = vadd.f32 %v2060, %v3113
    %v3118 = vadd.f32 %v2065, %v3114
    %v3119 = vxor.u32 %v3117, 2147483648
    %v3120 = vxor.u32 %v3118, 2147483648
    %v3121 = vmul.f32 %v3119, 1.442695
    %v3122 = vpow.pop %v3121
    %v3123 = vmul.f32 %v3120, 1.442695
    %v3124 = vpow.pop %v3123
    %v3125 = vadd.f32 %v3122, 1.0
    %v3126 = vadd.f32 %v3124, 1.0
    %v3127 = vrcp.pop %v3125
    %v3128 = vmul.f32 1.0, %v3127
    %v3129 = vrcp.pop %v3126
    %v3130 = vmul.f32 1.0, %v3129
    %v3131 = vtanh.pop %v3117
    %v3132 = vtanh.pop %v3118
    %v3135 = vrot.slane %v3019, 7
    %v3136 = vrot.slane %v3020, 7
    %v3139 = vmul.f32 %v3128, %v3135
    %v3140 = vmul.f32 %v3130, %v3136
    %3143 = vrot.lane.b32.xlu0 %v3131, 64
    %v3144 = vpop.permute.xlu0 %3143
    %3145 = vrot.lane.b32.xlu0 %v3132, 64
    %v3146 = vpop.permute.xlu0 %3145
    %v3149 = vmul.f32 %v3128, %v3144
    %v3150 = vmul.f32 %v3130, %v3146
    %3153 = vrot.lane.b32.xlu0 %v3149, 32
    %v3154 = vpop.permute.xlu0 %3153
    %3155 = vrot.lane.b32.xlu0 %v3150, 32
    %v3156 = vpop.permute.xlu0 %3155
    %v3159 = vadd.f32 %v3139, %v3154
    %v3160 = vadd.f32 %v3140, %v3156
    %v3161 = vtanh.pop %v3159
    %v3162 = vtanh.pop %v3160
    %3165 = vrot.lane.b32.xlu0 %v3161, 64
    %v3166 = vpop.permute.xlu0 %3165
    %3167 = vrot.lane.b32.xlu0 %v3162, 64
    %v3168 = vpop.permute.xlu0 %3167
    %v3171 = vmul.f32 %v3128, %v3166
    %v3172 = vmul.f32 %v3130, %v3168
    %v3173 = vld [vmem:[%s15] sm:$0xff]
    %v3174 = vld [vmem:[%s15 + $0x8] sm:$0xff]
    %v3175 = vld [vmem:[%s15 + $0x10] sm:$0xff]
    %v3176 = vld [vmem:[%s15 + $0x18] sm:$0xff]
    %v3177 = vld [vmem:[%s16] sm:$0x1]
    %v3179 = vlaneseq
    %v3180 = vshrl.u32 %v3179, 7
    %v3181 = vsub.s32 0, %v3180
    %v3182 = vrot.slane %v3177, %v3181
    %v3186 = vrot.slane %v3171, 7
    %v3187 = vrot.slane %v3172, 6
    %v3188 = vsel %vm978, %v3187, %v3186
    %3189 = vrot.lane.b32.xlu0 %v3188, 32
    %v3190 = vpop.permute.xlu0 %3189
    %v3191 = vsel %vm847, %v3190, 0
    %3193 = vmatprep.subr.mxu0 0.0
    %3194 = vmatpush1.msra.mxu0 0.0
    %3195 = vmatprep.subr.mxu0 0.0
    %3196 = vmatpush1.msra.mxu0 0.0
    %3197 = vmatprep.subr.mxu0 0.0
    %3198 = vmatpush1.msra.mxu0 0.0
    %3199 = vmatprep.subr.mxu0 0.0
    %3200 = vmatpush1.msra.mxu0 0.0
    %3201 = vmatprep.subr.mxu0 0.0
    %3202 = vmatpush1.msra.mxu0 0.0
    %3203 = vmatprep.subr.mxu0 0.0
    %3204 = vmatpush1.msra.mxu0 0.0
    %3205 = vmatprep.subr.mxu0 0.0
    %3206 = vmatpush1.msra.mxu0 0.0
    %3207 = vmatprep.subr.mxu0 0.0
    %3208 = vmatpush1.msra.mxu0 0.0
    %3209 = vmatprep.subr.mxu0 0.0
    %3210 = vmatpush1.msra.mxu0 0.0
    %3211 = vmatprep.subr.mxu0 0.0
    %3212 = vmatpush1.msra.mxu0 0.0
    %3213 = vmatprep.subr.mxu0 0.0
    %3214 = vmatpush1.msra.mxu0 0.0
    %3215 = vmatprep.subr.mxu0 0.0
    %3216 = vmatpush1.msra.mxu0 0.0
    %3217 = vmatprep.subr.mxu0 0.0
    %3218 = vmatpush1.msra.mxu0 %v3176
    %3219 = vmatprep.subr.mxu0 0.0
    %3220 = vmatpush1.msra.mxu0 %v3175
    %3221 = vmatprep.subr.mxu0 0.0
    %3222 = vmatpush1.msra.mxu0 %v3174
    %3223 = vmatprep.subr.mxu0 0.0
    %3224 = vmatpush1.msra.mxu0 %v3173
    %3225 = vmatprep.subr.mxu0 0.0
    %3226 = vmatpush2.msra.mxu0 0.0
    %3227 = vmatprep.subr.mxu0 0.0
    %3228 = vmatpush2.msra.mxu0 0.0
    %3229 = vmatprep.subr.mxu0 0.0
    %3230 = vmatpush2.msra.mxu0 0.0
    %3231 = vmatprep.subr.mxu0 0.0
    %3232 = vmatpush2.msra.mxu0 0.0
    %3233 = vmatprep.subr.mxu0 0.0
    %3234 = vmatpush2.msra.mxu0 0.0
    %3235 = vmatprep.subr.mxu0 0.0
    %3236 = vmatpush2.msra.mxu0 0.0
    %3237 = vmatprep.subr.mxu0 0.0
    %3238 = vmatpush2.msra.mxu0 0.0
    %3239 = vmatprep.subr.mxu0 0.0
    %3240 = vmatpush2.msra.mxu0 0.0
    %3241 = vmatprep.subr.mxu0 0.0
    %3242 = vmatpush2.msra.mxu0 0.0
    %3243 = vmatprep.subr.mxu0 0.0
    %3244 = vmatpush2.msra.mxu0 0.0
    %3245 = vmatprep.subr.mxu0 0.0
    %3246 = vmatpush2.msra.mxu0 0.0
    %3247 = vmatprep.subr.mxu0 0.0
    %3248 = vmatpush2.msra.mxu0 0.0
    %3249 = vmatprep.subr.mxu0 0.0
    %3250 = vmatpush2.msra.mxu0 0.0
    %3251 = vmatprep.subr.mxu0 0.0
    %3252 = vmatpush2.msra.mxu0 0.0
    %3253 = vmatprep.subr.mxu0 0.0
    %3254 = vmatpush2.msra.mxu0 0.0
    %3255 = vmatprep.subr.mxu0 0.0
    %3256 = vmatpush2.msra.mxu0 0.0
    %3257 = vmatprep.mubr.f32.mxu0 0.0
    %3258 = vmatmul.mubr.f32.gmra.mxu0 %v3191
    %v3259 = vpop.f32.mrf.mxu0
    %v3260 = vadd.f32 %v3182, %v3259
    %v3261 = vpop.f32.mrf.mxu0
    %3262 = vdwg.mxu0
    %3264 = vrot.lane.b32.xlu0 %v3260, 96
    %v3265 = vpop.permute.xlu0 %3264
    %vm3266 = vcmask 64512
    %v3267 = vsel %vm3266, %v3260, 0
    %v3269 = vsel %vm3266, %v3265, 0
    %3271 = vmatprep.subr.mxu0 0.0
    %3272 = vmatpush1.xpose.msra.mxu0 0.0
    %3273 = vmatprep.subr.mxu0 0.0
    %3274 = vmatpush1.xpose.msra.mxu0 0.0
    %3275 = vmatprep.subr.mxu0 0.0
    %3276 = vmatpush1.xpose.msra.mxu0 0.0
    %3277 = vmatprep.subr.mxu0 0.0
    %3278 = vmatpush1.xpose.msra.mxu0 0.0
    %3279 = vmatprep.subr.mxu0 0.0
    %3280 = vmatpush1.xpose.msra.mxu0 0.0
    %3281 = vmatprep.subr.mxu0 0.0
    %3282 = vmatpush1.xpose.msra.mxu0 0.0
    %3283 = vmatprep.subr.mxu0 0.0
    %3284 = vmatpush1.xpose.msra.mxu0 0.0
    %3285 = vmatprep.subr.mxu0 0.0
    %3286 = vmatpush1.xpose.msra.mxu0 0.0
    %3287 = vmatprep.subr.mxu0 0.0
    %3288 = vmatpush1.xpose.msra.mxu0 0.0
    %3289 = vmatprep.subr.mxu0 0.0
    %3290 = vmatpush1.xpose.msra.mxu0 0.0
    %3291 = vmatprep.subr.mxu0 0.0
    %3292 = vmatpush1.xpose.msra.mxu0 0.0
    %3293 = vmatprep.subr.mxu0 0.0
    %3294 = vmatpush1.xpose.msra.mxu0 0.0
    %3295 = vmatprep.subr.mxu0 0.0
    %3296 = vmatpush1.xpose.msra.mxu0 0.0
    %3297 = vmatprep.subr.mxu0 0.0
    %3298 = vmatpush1.xpose.msra.mxu0 0.0
    %3299 = vmatprep.subr.mxu0 0.0
    %3300 = vmatpush1.xpose.msra.mxu0 0.0
    %3301 = vmatprep.subr.mxu0 0.0
    %3302 = vmatpush1.xpose.msra.mxu0 %v3269
    %3303 = vmatprep.subr.mxu0 0.0
    %3304 = vmatpush2.xpose.msra.mxu0 0.0
    %3305 = vmatprep.subr.mxu0 0.0
    %3306 = vmatpush2.xpose.msra.mxu0 0.0
    %3307 = vmatprep.subr.mxu0 0.0
    %3308 = vmatpush2.xpose.msra.mxu0 0.0
    %3309 = vmatprep.subr.mxu0 0.0
    %3310 = vmatpush2.xpose.msra.mxu0 0.0
    %3311 = vmatprep.subr.mxu0 0.0
    %3312 = vmatpush2.xpose.msra.mxu0 0.0
    %3313 = vmatprep.subr.mxu0 0.0
    %3314 = vmatpush2.xpose.msra.mxu0 0.0
    %3315 = vmatprep.subr.mxu0 0.0
    %3316 = vmatpush2.xpose.msra.mxu0 0.0
    %3317 = vmatprep.subr.mxu0 0.0
    %3318 = vmatpush2.xpose.msra.mxu0 0.0
    %3319 = vmatprep.subr.mxu0 0.0
    %3320 = vmatpush2.xpose.msra.mxu0 0.0
    %3321 = vmatprep.subr.mxu0 0.0
    %3322 = vmatpush2.xpose.msra.mxu0 0.0
    %3323 = vmatprep.subr.mxu0 0.0
    %3324 = vmatpush2.xpose.msra.mxu0 0.0
    %3325 = vmatprep.subr.mxu0 0.0
    %3326 = vmatpush2.xpose.msra.mxu0 0.0
    %3327 = vmatprep.subr.mxu0 0.0
    %3328 = vmatpush2.xpose.msra.mxu0 0.0
    %3329 = vmatprep.subr.mxu0 0.0
    %3330 = vmatpush2.xpose.msra.mxu0 0.0
    %3331 = vmatprep.subr.mxu0 0.0
    %3332 = vmatpush2.xpose.msra.mxu0 0.0
    %3333 = vmatprep.subr.mxu0 0.0
    %3334 = vmatpush2.xpose.msra.mxu0 0.0
    %3335 = vmatprep.mubr.f32.mxu0 0.0
    %3336 = vmatmul.mubr.f32.gmra.mxu0 %v3267
    %v3337 = vpop.f32.mrf.mxu0
    %v3338 = vadd.f32 0.0, %v3337
    %v3339 = vpop.f32.mrf.mxu0
    %3340 = vdwg.mxu0
    %v3341 = vmul.f32 %v3338, 0.35355338
    %vm3342 = vcmask 9216
    %v3343 = vsel %vm3342, %v3341, -inf
    %3344 = vmax.xlane.f32.xlu0 %v3343
    %v3345 = vpop.xlane.xlu0 %3344
    %v3346 = vsub.f32 %v3341, %v3345
    %v3347 = vmul.f32 %v3346, 1.442695
    %v3348 = vpow.pop %v3347
    %v3349 = vsel %vm3342, %v3348, 0.0
    %3350 = vadd.xlane.f32.xlu0 %v3349
    %v3351 = vpop.xlane.xlu0 %3350
    %v3352 = vrcp.pop %v3351
    %v3353 = vmul.f32 %v3348, %v3352
    %3354 = vrot.lane.b32.xlu0 %v3260, 64
    %v3355 = vpop.permute.xlu0 %3354
    %vm3356 = vcmask 15360
    %v3358 = vsel %vm3356, %v3353, 0
    %v3360 = vsel %vm1955, %v3355, 0
    %3362 = vmatprep.subr.mxu0 0.0
    %3363 = vmatpush1.msra.mxu0 0.0
    %3364 = vmatprep.subr.mxu0 0.0
    %3365 = vmatpush1.msra.mxu0 0.0
    %3366 = vmatprep.subr.mxu0 0.0
    %3367 = vmatpush1.msra.mxu0 0.0
    %3368 = vmatprep.subr.mxu0 0.0
    %3369 = vmatpush1.msra.mxu0 0.0
    %3370 = vmatprep.subr.mxu0 0.0
    %3371 = vmatpush1.msra.mxu0 0.0
    %3372 = vmatprep.subr.mxu0 0.0
    %3373 = vmatpush1.msra.mxu0 0.0
    %3374 = vmatprep.subr.mxu0 0.0
    %3375 = vmatpush1.msra.mxu0 0.0
    %3376 = vmatprep.subr.mxu0 0.0
    %3377 = vmatpush1.msra.mxu0 0.0
    %3378 = vmatprep.subr.mxu0 0.0
    %3379 = vmatpush1.msra.mxu0 0.0
    %3380 = vmatprep.subr.mxu0 0.0
    %3381 = vmatpush1.msra.mxu0 0.0
    %3382 = vmatprep.subr.mxu0 0.0
    %3383 = vmatpush1.msra.mxu0 0.0
    %3384 = vmatprep.subr.mxu0 0.0
    %3385 = vmatpush1.msra.mxu0 0.0
    %3386 = vmatprep.subr.mxu0 0.0
    %3387 = vmatpush1.msra.mxu0 0.0
    %3388 = vmatprep.subr.mxu0 0.0
    %3389 = vmatpush1.msra.mxu0 0.0
    %3390 = vmatprep.subr.mxu0 0.0
    %3391 = vmatpush1.msra.mxu0 0.0
    %3392 = vmatprep.subr.mxu0 0.0
    %3393 = vmatpush1.msra.mxu0 %v3360
    %3394 = vmatprep.subr.mxu0 0.0
    %3395 = vmatpush2.msra.mxu0 0.0
    %3396 = vmatprep.subr.mxu0 0.0
    %3397 = vmatpush2.msra.mxu0 0.0
    %3398 = vmatprep.subr.mxu0 0.0
    %3399 = vmatpush2.msra.mxu0 0.0
    %3400 = vmatprep.subr.mxu0 0.0
    %3401 = vmatpush2.msra.mxu0 0.0
    %3402 = vmatprep.subr.mxu0 0.0
    %3403 = vmatpush2.msra.mxu0 0.0
    %3404 = vmatprep.subr.mxu0 0.0
    %3405 = vmatpush2.msra.mxu0 0.0
    %3406 = vmatprep.subr.mxu0 0.0
    %3407 = vmatpush2.msra.mxu0 0.0
    %3408 = vmatprep.subr.mxu0 0.0
    %3409 = vmatpush2.msra.mxu0 0.0
    %3410 = vmatprep.subr.mxu0 0.0
    %3411 = vmatpush2.msra.mxu0 0.0
    %3412 = vmatprep.subr.mxu0 0.0
    %3413 = vmatpush2.msra.mxu0 0.0
    %3414 = vmatprep.subr.mxu0 0.0
    %3415 = vmatpush2.msra.mxu0 0.0
    %3416 = vmatprep.subr.mxu0 0.0
    %3417 = vmatpush2.msra.mxu0 0.0
    %3418 = vmatprep.subr.mxu0 0.0
    %3419 = vmatpush2.msra.mxu0 0.0
    %3420 = vmatprep.subr.mxu0 0.0
    %3421 = vmatpush2.msra.mxu0 0.0
    %3422 = vmatprep.subr.mxu0 0.0
    %3423 = vmatpush2.msra.mxu0 0.0
    %3424 = vmatprep.subr.mxu0 0.0
    %3425 = vmatpush2.msra.mxu0 0.0
    %3426 = vmatprep.mubr.f32.mxu0 0.0
    %3427 = vmatmul.mubr.f32.gmra.mxu0 %v3358
    %v3428 = vpop.f32.mrf.mxu0
    %v3429 = vadd.f32 0.0, %v3428
    %v3430 = vpop.f32.mrf.mxu0
    %3431 = vdwg.mxu0
    %3432 = vrot.lane.b32.xlu0 %v3260, 120
    %v3433 = vpop.permute.xlu0 %3432
    %3434 = vrot.lane.b32.xlu0 %v3260, 88
    %v3435 = vpop.permute.xlu0 %3434
    %v3436 = vsel %vm3266, %v3433, 0
    %v3438 = vsel %vm3266, %v3435, 0
    %3440 = vmatprep.subr.mxu0 0.0
    %3441 = vmatpush1.xpose.msra.mxu0 0.0
    %3442 = vmatprep.subr.mxu0 0.0
    %3443 = vmatpush1.xpose.msra.mxu0 0.0
    %3444 = vmatprep.subr.mxu0 0.0
    %3445 = vmatpush1.xpose.msra.mxu0 0.0
    %3446 = vmatprep.subr.mxu0 0.0
    %3447 = vmatpush1.xpose.msra.mxu0 0.0
    %3448 = vmatprep.subr.mxu0 0.0
    %3449 = vmatpush1.xpose.msra.mxu0 0.0
    %3450 = vmatprep.subr.mxu0 0.0
    %3451 = vmatpush1.xpose.msra.mxu0 0.0
    %3452 = vmatprep.subr.mxu0 0.0
    %3453 = vmatpush1.xpose.msra.mxu0 0.0
    %3454 = vmatprep.subr.mxu0 0.0
    %3455 = vmatpush1.xpose.msra.mxu0 0.0
    %3456 = vmatprep.subr.mxu0 0.0
    %3457 = vmatpush1.xpose.msra.mxu0 0.0
    %3458 = vmatprep.subr.mxu0 0.0
    %3459 = vmatpush1.xpose.msra.mxu0 0.0
    %3460 = vmatprep.subr.mxu0 0.0
    %3461 = vmatpush1.xpose.msra.mxu0 0.0
    %3462 = vmatprep.subr.mxu0 0.0
    %3463 = vmatpush1.xpose.msra.mxu0 0.0
    %3464 = vmatprep.subr.mxu0 0.0
    %3465 = vmatpush1.xpose.msra.mxu0 0.0
    %3466 = vmatprep.subr.mxu0 0.0
    %3467 = vmatpush1.xpose.msra.mxu0 0.0
    %3468 = vmatprep.subr.mxu0 0.0
    %3469 = vmatpush1.xpose.msra.mxu0 0.0
    %3470 = vmatprep.subr.mxu0 0.0
    %3471 = vmatpush1.xpose.msra.mxu0 %v3438
    %3472 = vmatprep.subr.mxu0 0.0
    %3473 = vmatpush2.xpose.msra.mxu0 0.0
    %3474 = vmatprep.subr.mxu0 0.0
    %3475 = vmatpush2.xpose.msra.mxu0 0.0
    %3476 = vmatprep.subr.mxu0 0.0
    %3477 = vmatpush2.xpose.msra.mxu0 0.0
    %3478 = vmatprep.subr.mxu0 0.0
    %3479 = vmatpush2.xpose.msra.mxu0 0.0
    %3480 = vmatprep.subr.mxu0 0.0
    %3481 = vmatpush2.xpose.msra.mxu0 0.0
    %3482 = vmatprep.subr.mxu0 0.0
    %3483 = vmatpush2.xpose.msra.mxu0 0.0
    %3484 = vmatprep.subr.mxu0 0.0
    %3485 = vmatpush2.xpose.msra.mxu0 0.0
    %3486 = vmatprep.subr.mxu0 0.0
    %3487 = vmatpush2.xpose.msra.mxu0 0.0
    %3488 = vmatprep.subr.mxu0 0.0
    %3489 = vmatpush2.xpose.msra.mxu0 0.0
    %3490 = vmatprep.subr.mxu0 0.0
    %3491 = vmatpush2.xpose.msra.mxu0 0.0
    %3492 = vmatprep.subr.mxu0 0.0
    %3493 = vmatpush2.xpose.msra.mxu0 0.0
    %3494 = vmatprep.subr.mxu0 0.0
    %3495 = vmatpush2.xpose.msra.mxu0 0.0
    %3496 = vmatprep.subr.mxu0 0.0
    %3497 = vmatpush2.xpose.msra.mxu0 0.0
    %3498 = vmatprep.subr.mxu0 0.0
    %3499 = vmatpush2.xpose.msra.mxu0 0.0
    %3500 = vmatprep.subr.mxu0 0.0
    %3501 = vmatpush2.xpose.msra.mxu0 0.0
    %3502 = vmatprep.subr.mxu0 0.0
    %3503 = vmatpush2.xpose.msra.mxu0 0.0
    %3504 = vmatprep.mubr.f32.mxu0 0.0
    %3505 = vmatmul.mubr.f32.gmra.mxu0 %v3436
    %v3506 = vpop.f32.mrf.mxu0
    %v3507 = vadd.f32 0.0, %v3506
    %v3508 = vpop.f32.mrf.mxu0
    %3509 = vdwg.mxu0
    %v3510 = vmul.f32 %v3507, 0.35355338
    %v3511 = vsel %vm3342, %v3510, -inf
    %3512 = vmax.xlane.f32.xlu0 %v3511
    %v3513 = vpop.xlane.xlu0 %3512
    %v3514 = vsub.f32 %v3510, %v3513
    %v3515 = vmul.f32 %v3514, 1.442695
    %v3516 = vpow.pop %v3515
    %v3517 = vsel %vm3342, %v3516, 0.0
    %3518 = vadd.xlane.f32.xlu0 %v3517
    %v3519 = vpop.xlane.xlu0 %3518
    %v3520 = vrcp.pop %v3519
    %v3521 = vmul.f32 %v3516, %v3520
    %3522 = vrot.lane.b32.xlu0 %v3260, 56
    %v3523 = vpop.permute.xlu0 %3522
    %v3525 = vsel %vm3356, %v3521, 0
    %v3527 = vsel %vm1955, %v3523, 0
    %3529 = vmatprep.subr.mxu0 0.0
    %3530 = vmatpush1.msra.mxu0 0.0
    %3531 = vmatprep.subr.mxu0 0.0
    %3532 = vmatpush1.msra.mxu0 0.0
    %3533 = vmatprep.subr.mxu0 0.0
    %3534 = vmatpush1.msra.mxu0 0.0
    %3535 = vmatprep.subr.mxu0 0.0
    %3536 = vmatpush1.msra.mxu0 0.0
    %3537 = vmatprep.subr.mxu0 0.0
    %3538 = vmatpush1.msra.mxu0 0.0
    %3539 = vmatprep.subr.mxu0 0.0
    %3540 = vmatpush1.msra.mxu0 0.0
    %3541 = vmatprep.subr.mxu0 0.0
    %3542 = vmatpush1.msra.mxu0 0.0
    %3543 = vmatprep.subr.mxu0 0.0
    %3544 = vmatpush1.msra.mxu0 0.0
    %3545 = vmatprep.subr.mxu0 0.0
    %3546 = vmatpush1.msra.mxu0 0.0
    %3547 = vmatprep.subr.mxu0 0.0
    %3548 = vmatpush1.msra.mxu0 0.0
    %3549 = vmatprep.subr.mxu0 0.0
    %3550 = vmatpush1.msra.mxu0 0.0
    %3551 = vmatprep.subr.mxu0 0.0
    %3552 = vmatpush1.msra.mxu0 0.0
    %3553 = vmatprep.subr.mxu0 0.0
    %3554 = vmatpush1.msra.mxu0 0.0
    %3555 = vmatprep.subr.mxu0 0.0
    %3556 = vmatpush1.msra.mxu0 0.0
    %3557 = vmatprep.subr.mxu0 0.0
    %3558 = vmatpush1.msra.mxu0 0.0
    %3559 = vmatprep.subr.mxu0 0.0
    %3560 = vmatpush1.msra.mxu0 %v3527
    %3561 = vmatprep.subr.mxu0 0.0
    %3562 = vmatpush2.msra.mxu0 0.0
    %3563 = vmatprep.subr.mxu0 0.0
    %3564 = vmatpush2.msra.mxu0 0.0
    %3565 = vmatprep.subr.mxu0 0.0
    %3566 = vmatpush2.msra.mxu0 0.0
    %3567 = vmatprep.subr.mxu0 0.0
    %3568 = vmatpush2.msra.mxu0 0.0
    %3569 = vmatprep.subr.mxu0 0.0
    %3570 = vmatpush2.msra.mxu0 0.0
    %3571 = vmatprep.subr.mxu0 0.0
    %3572 = vmatpush2.msra.mxu0 0.0
    %3573 = vmatprep.subr.mxu0 0.0
    %3574 = vmatpush2.msra.mxu0 0.0
    %3575 = vmatprep.subr.mxu0 0.0
    %3576 = vmatpush2.msra.mxu0 0.0
    %3577 = vmatprep.subr.mxu0 0.0
    %3578 = vmatpush2.msra.mxu0 0.0
    %3579 = vmatprep.subr.mxu0 0.0
    %3580 = vmatpush2.msra.mxu0 0.0
    %3581 = vmatprep.subr.mxu0 0.0
    %3582 = vmatpush2.msra.mxu0 0.0
    %3583 = vmatprep.subr.mxu0 0.0
    %3584 = vmatpush2.msra.mxu0 0.0
    %3585 = vmatprep.subr.mxu0 0.0
    %3586 = vmatpush2.msra.mxu0 0.0
    %3587 = vmatprep.subr.mxu0 0.0
    %3588 = vmatpush2.msra.mxu0 0.0
    %3589 = vmatprep.subr.mxu0 0.0
    %3590 = vmatpush2.msra.mxu0 0.0
    %3591 = vmatprep.subr.mxu0 0.0
    %3592 = vmatpush2.msra.mxu0 0.0
    %3593 = vmatprep.mubr.f32.mxu0 0.0
    %3594 = vmatmul.mubr.f32.gmra.mxu0 %v3525
    %v3595 = vpop.f32.mrf.mxu0
    %v3596 = vadd.f32 0.0, %v3595
    %v3597 = vpop.f32.mrf.mxu0
    %3598 = vdwg.mxu0
    %3599 = vrot.lane.b32.xlu0 %v3260, 112
    %v3600 = vpop.permute.xlu0 %3599
    %3601 = vrot.lane.b32.xlu0 %v3260, 80
    %v3602 = vpop.permute.xlu0 %3601
    %v3603 = vsel %vm3266, %v3600, 0
    %v3605 = vsel %vm3266, %v3602, 0
    %3607 = vmatprep.subr.mxu0 0.0
    %3608 = vmatpush1.xpose.msra.mxu0 0.0
    %3609 = vmatprep.subr.mxu0 0.0
    %3610 = vmatpush1.xpose.msra.mxu0 0.0
    %3611 = vmatprep.subr.mxu0 0.0
    %3612 = vmatpush1.xpose.msra.mxu0 0.0
    %3613 = vmatprep.subr.mxu0 0.0
    %3614 = vmatpush1.xpose.msra.mxu0 0.0
    %3615 = vmatprep.subr.mxu0 0.0
    %3616 = vmatpush1.xpose.msra.mxu0 0.0
    %3617 = vmatprep.subr.mxu0 0.0
    %3618 = vmatpush1.xpose.msra.mxu0 0.0
    %3619 = vmatprep.subr.mxu0 0.0
    %3620 = vmatpush1.xpose.msra.mxu0 0.0
    %3621 = vmatprep.subr.mxu0 0.0
    %3622 = vmatpush1.xpose.msra.mxu0 0.0
    %3623 = vmatprep.subr.mxu0 0.0
    %3624 = vmatpush1.xpose.msra.mxu0 0.0
    %3625 = vmatprep.subr.mxu0 0.0
    %3626 = vmatpush1.xpose.msra.mxu0 0.0
    %3627 = vmatprep.subr.mxu0 0.0
    %3628 = vmatpush1.xpose.msra.mxu0 0.0
    %3629 = vmatprep.subr.mxu0 0.0
    %3630 = vmatpush1.xpose.msra.mxu0 0.0
    %3631 = vmatprep.subr.mxu0 0.0
    %3632 = vmatpush1.xpose.msra.mxu0 0.0
    %3633 = vmatprep.subr.mxu0 0.0
    %3634 = vmatpush1.xpose.msra.mxu0 0.0
    %3635 = vmatprep.subr.mxu0 0.0
    %3636 = vmatpush1.xpose.msra.mxu0 0.0
    %3637 = vmatprep.subr.mxu0 0.0
    %3638 = vmatpush1.xpose.msra.mxu0 %v3605
    %3639 = vmatprep.subr.mxu0 0.0
    %3640 = vmatpush2.xpose.msra.mxu0 0.0
    %3641 = vmatprep.subr.mxu0 0.0
    %3642 = vmatpush2.xpose.msra.mxu0 0.0
    %3643 = vmatprep.subr.mxu0 0.0
    %3644 = vmatpush2.xpose.msra.mxu0 0.0
    %3645 = vmatprep.subr.mxu0 0.0
    %3646 = vmatpush2.xpose.msra.mxu0 0.0
    %3647 = vmatprep.subr.mxu0 0.0
    %3648 = vmatpush2.xpose.msra.mxu0 0.0
    %3649 = vmatprep.subr.mxu0 0.0
    %3650 = vmatpush2.xpose.msra.mxu0 0.0
    %3651 = vmatprep.subr.mxu0 0.0
    %3652 = vmatpush2.xpose.msra.mxu0 0.0
    %3653 = vmatprep.subr.mxu0 0.0
    %3654 = vmatpush2.xpose.msra.mxu0 0.0
    %3655 = vmatprep.subr.mxu0 0.0
    %3656 = vmatpush2.xpose.msra.mxu0 0.0
    %3657 = vmatprep.subr.mxu0 0.0
    %3658 = vmatpush2.xpose.msra.mxu0 0.0
    %3659 = vmatprep.subr.mxu0 0.0
    %3660 = vmatpush2.xpose.msra.mxu0 0.0
    %3661 = vmatprep.subr.mxu0 0.0
    %3662 = vmatpush2.xpose.msra.mxu0 0.0
    %3663 = vmatprep.subr.mxu0 0.0
    %3664 = vmatpush2.xpose.msra.mxu0 0.0
    %3665 = vmatprep.subr.mxu0 0.0
    %3666 = vmatpush2.xpose.msra.mxu0 0.0
    %3667 = vmatprep.subr.mxu0 0.0
    %3668 = vmatpush2.xpose.msra.mxu0 0.0
    %3669 = vmatprep.subr.mxu0 0.0
    %3670 = vmatpush2.xpose.msra.mxu0 0.0
    %3671 = vmatprep.mubr.f32.mxu0 0.0
    %3672 = vmatmul.mubr.f32.gmra.mxu0 %v3603
    %v3673 = vpop.f32.mrf.mxu0
    %v3674 = vadd.f32 0.0, %v3673
    %v3675 = vpop.f32.mrf.mxu0
    %3676 = vdwg.mxu0
    %v3677 = vmul.f32 %v3674, 0.35355338
    %v3678 = vsel %vm3342, %v3677, -inf
    %3679 = vmax.xlane.f32.xlu0 %v3678
    %v3680 = vpop.xlane.xlu0 %3679
    %v3681 = vsub.f32 %v3677, %v3680
    %v3682 = vmul.f32 %v3681, 1.442695
    %v3683 = vpow.pop %v3682
    %v3684 = vsel %vm3342, %v3683, 0.0
    %3685 = vadd.xlane.f32.xlu0 %v3684
    %v3686 = vpop.xlane.xlu0 %3685
    %v3687 = vrcp.pop %v3686
    %v3688 = vmul.f32 %v3683, %v3687
    %3689 = vrot.lane.b32.xlu0 %v3260, 48
    %v3690 = vpop.permute.xlu0 %3689
    %v3692 = vsel %vm3356, %v3688, 0
    %v3694 = vsel %vm1955, %v3690, 0
    %3696 = vmatprep.subr.mxu0 0.0
    %3697 = vmatpush1.msra.mxu0 0.0
    %3698 = vmatprep.subr.mxu0 0.0
    %3699 = vmatpush1.msra.mxu0 0.0
    %3700 = vmatprep.subr.mxu0 0.0
    %3701 = vmatpush1.msra.mxu0 0.0
    %3702 = vmatprep.subr.mxu0 0.0
    %3703 = vmatpush1.msra.mxu0 0.0
    %3704 = vmatprep.subr.mxu0 0.0
    %3705 = vmatpush1.msra.mxu0 0.0
    %3706 = vmatprep.subr.mxu0 0.0
    %3707 = vmatpush1.msra.mxu0 0.0
    %3708 = vmatprep.subr.mxu0 0.0
    %3709 = vmatpush1.msra.mxu0 0.0
    %3710 = vmatprep.subr.mxu0 0.0
    %3711 = vmatpush1.msra.mxu0 0.0
    %3712 = vmatprep.subr.mxu0 0.0
    %3713 = vmatpush1.msra.mxu0 0.0
    %3714 = vmatprep.subr.mxu0 0.0
    %3715 = vmatpush1.msra.mxu0 0.0
    %3716 = vmatprep.subr.mxu0 0.0
    %3717 = vmatpush1.msra.mxu0 0.0
    %3718 = vmatprep.subr.mxu0 0.0
    %3719 = vmatpush1.msra.mxu0 0.0
    %3720 = vmatprep.subr.mxu0 0.0
    %3721 = vmatpush1.msra.mxu0 0.0
    %3722 = vmatprep.subr.mxu0 0.0
    %3723 = vmatpush1.msra.mxu0 0.0
    %3724 = vmatprep.subr.mxu0 0.0
    %3725 = vmatpush1.msra.mxu0 0.0
    %3726 = vmatprep.subr.mxu0 0.0
    %3727 = vmatpush1.msra.mxu0 %v3694
    %3728 = vmatprep.subr.mxu0 0.0
    %3729 = vmatpush2.msra.mxu0 0.0
    %3730 = vmatprep.subr.mxu0 0.0
    %3731 = vmatpush2.msra.mxu0 0.0
    %3732 = vmatprep.subr.mxu0 0.0
    %3733 = vmatpush2.msra.mxu0 0.0
    %3734 = vmatprep.subr.mxu0 0.0
    %3735 = vmatpush2.msra.mxu0 0.0
    %3736 = vmatprep.subr.mxu0 0.0
    %3737 = vmatpush2.msra.mxu0 0.0
    %3738 = vmatprep.subr.mxu0 0.0
    %3739 = vmatpush2.msra.mxu0 0.0
    %3740 = vmatprep.subr.mxu0 0.0
    %3741 = vmatpush2.msra.mxu0 0.0
    %3742 = vmatprep.subr.mxu0 0.0
    %3743 = vmatpush2.msra.mxu0 0.0
    %3744 = vmatprep.subr.mxu0 0.0
    %3745 = vmatpush2.msra.mxu0 0.0
    %3746 = vmatprep.subr.mxu0 0.0
    %3747 = vmatpush2.msra.mxu0 0.0
    %3748 = vmatprep.subr.mxu0 0.0
    %3749 = vmatpush2.msra.mxu0 0.0
    %3750 = vmatprep.subr.mxu0 0.0
    %3751 = vmatpush2.msra.mxu0 0.0
    %3752 = vmatprep.subr.mxu0 0.0
    %3753 = vmatpush2.msra.mxu0 0.0
    %3754 = vmatprep.subr.mxu0 0.0
    %3755 = vmatpush2.msra.mxu0 0.0
    %3756 = vmatprep.subr.mxu0 0.0
    %3757 = vmatpush2.msra.mxu0 0.0
    %3758 = vmatprep.subr.mxu0 0.0
    %3759 = vmatpush2.msra.mxu0 0.0
    %3760 = vmatprep.mubr.f32.mxu0 0.0
    %3761 = vmatmul.mubr.f32.gmra.mxu0 %v3692
    %v3762 = vpop.f32.mrf.mxu0
    %v3763 = vadd.f32 0.0, %v3762
    %v3764 = vpop.f32.mrf.mxu0
    %3765 = vdwg.mxu0
    %3766 = vrot.lane.b32.xlu0 %v3260, 104
    %v3767 = vpop.permute.xlu0 %3766
    %3768 = vrot.lane.b32.xlu0 %v3260, 72
    %v3769 = vpop.permute.xlu0 %3768
    %v3770 = vsel %vm3266, %v3767, 0
    %v3772 = vsel %vm3266, %v3769, 0
    %3774 = vmatprep.subr.mxu0 0.0
    %3775 = vmatpush1.xpose.msra.mxu0 0.0
    %3776 = vmatprep.subr.mxu0 0.0
    %3777 = vmatpush1.xpose.msra.mxu0 0.0
    %3778 = vmatprep.subr.mxu0 0.0
    %3779 = vmatpush1.xpose.msra.mxu0 0.0
    %3780 = vmatprep.subr.mxu0 0.0
    %3781 = vmatpush1.xpose.msra.mxu0 0.0
    %3782 = vmatprep.subr.mxu0 0.0
    %3783 = vmatpush1.xpose.msra.mxu0 0.0
    %3784 = vmatprep.subr.mxu0 0.0
    %3785 = vmatpush1.xpose.msra.mxu0 0.0
    %3786 = vmatprep.subr.mxu0 0.0
    %3787 = vmatpush1.xpose.msra.mxu0 0.0
    %3788 = vmatprep.subr.mxu0 0.0
    %3789 = vmatpush1.xpose.msra.mxu0 0.0
    %3790 = vmatprep.subr.mxu0 0.0
    %3791 = vmatpush1.xpose.msra.mxu0 0.0
    %3792 = vmatprep.subr.mxu0 0.0
    %3793 = vmatpush1.xpose.msra.mxu0 0.0
    %3794 = vmatprep.subr.mxu0 0.0
    %3795 = vmatpush1.xpose.msra.mxu0 0.0
    %3796 = vmatprep.subr.mxu0 0.0
    %3797 = vmatpush1.xpose.msra.mxu0 0.0
    %3798 = vmatprep.subr.mxu0 0.0
    %3799 = vmatpush1.xpose.msra.mxu0 0.0
    %3800 = vmatprep.subr.mxu0 0.0
    %3801 = vmatpush1.xpose.msra.mxu0 0.0
    %3802 = vmatprep.subr.mxu0 0.0
    %3803 = vmatpush1.xpose.msra.mxu0 0.0
    %3804 = vmatprep.subr.mxu0 0.0
    %3805 = vmatpush1.xpose.msra.mxu0 %v3772
    %3806 = vmatprep.subr.mxu0 0.0
    %3807 = vmatpush2.xpose.msra.mxu0 0.0
    %3808 = vmatprep.subr.mxu0 0.0
    %3809 = vmatpush2.xpose.msra.mxu0 0.0
    %3810 = vmatprep.subr.mxu0 0.0
    %3811 = vmatpush2.xpose.msra.mxu0 0.0
    %3812 = vmatprep.subr.mxu0 0.0
    %3813 = vmatpush2.xpose.msra.mxu0 0.0
    %3814 = vmatprep.subr.mxu0 0.0
    %3815 = vmatpush2.xpose.msra.mxu0 0.0
    %3816 = vmatprep.subr.mxu0 0.0
    %3817 = vmatpush2.xpose.msra.mxu0 0.0
    %3818 = vmatprep.subr.mxu0 0.0
    %3819 = vmatpush2.xpose.msra.mxu0 0.0
    %3820 = vmatprep.subr.mxu0 0.0
    %3821 = vmatpush2.xpose.msra.mxu0 0.0
    %3822 = vmatprep.subr.mxu0 0.0
    %3823 = vmatpush2.xpose.msra.mxu0 0.0
    %3824 = vmatprep.subr.mxu0 0.0
    %3825 = vmatpush2.xpose.msra.mxu0 0.0
    %3826 = vmatprep.subr.mxu0 0.0
    %3827 = vmatpush2.xpose.msra.mxu0 0.0
    %3828 = vmatprep.subr.mxu0 0.0
    %3829 = vmatpush2.xpose.msra.mxu0 0.0
    %3830 = vmatprep.subr.mxu0 0.0
    %3831 = vmatpush2.xpose.msra.mxu0 0.0
    %3832 = vmatprep.subr.mxu0 0.0
    %3833 = vmatpush2.xpose.msra.mxu0 0.0
    %3834 = vmatprep.subr.mxu0 0.0
    %3835 = vmatpush2.xpose.msra.mxu0 0.0
    %3836 = vmatprep.subr.mxu0 0.0
    %3837 = vmatpush2.xpose.msra.mxu0 0.0
    %3838 = vmatprep.mubr.f32.mxu0 0.0
    %3839 = vmatmul.mubr.f32.gmra.mxu0 %v3770
    %v3840 = vpop.f32.mrf.mxu0
    %v3841 = vadd.f32 0.0, %v3840
    %v3842 = vpop.f32.mrf.mxu0
    %3843 = vdwg.mxu0
    %v3844 = vmul.f32 %v3841, 0.35355338
    %v3845 = vsel %vm3342, %v3844, -inf
    %3846 = vmax.xlane.f32.xlu0 %v3845
    %v3847 = vpop.xlane.xlu0 %3846
    %v3848 = vsub.f32 %v3844, %v3847
    %v3849 = vmul.f32 %v3848, 1.442695
    %v3850 = vpow.pop %v3849
    %v3851 = vsel %vm3342, %v3850, 0.0
    %3852 = vadd.xlane.f32.xlu0 %v3851
    %v3853 = vpop.xlane.xlu0 %3852
    %v3854 = vrcp.pop %v3853
    %v3855 = vmul.f32 %v3850, %v3854
    %3856 = vrot.lane.b32.xlu0 %v3260, 40
    %v3857 = vpop.permute.xlu0 %3856
    %v3859 = vsel %vm3356, %v3855, 0
    %v3861 = vsel %vm1955, %v3857, 0
    %3863 = vmatprep.subr.mxu0 0.0
    %3864 = vmatpush1.msra.mxu0 0.0
    %3865 = vmatprep.subr.mxu0 0.0
    %3866 = vmatpush1.msra.mxu0 0.0
    %3867 = vmatprep.subr.mxu0 0.0
    %3868 = vmatpush1.msra.mxu0 0.0
    %3869 = vmatprep.subr.mxu0 0.0
    %3870 = vmatpush1.msra.mxu0 0.0
    %3871 = vmatprep.subr.mxu0 0.0
    %3872 = vmatpush1.msra.mxu0 0.0
    %3873 = vmatprep.subr.mxu0 0.0
    %3874 = vmatpush1.msra.mxu0 0.0
    %3875 = vmatprep.subr.mxu0 0.0
    %3876 = vmatpush1.msra.mxu0 0.0
    %3877 = vmatprep.subr.mxu0 0.0
    %3878 = vmatpush1.msra.mxu0 0.0
    %3879 = vmatprep.subr.mxu0 0.0
    %3880 = vmatpush1.msra.mxu0 0.0
    %3881 = vmatprep.subr.mxu0 0.0
    %3882 = vmatpush1.msra.mxu0 0.0
    %3883 = vmatprep.subr.mxu0 0.0
    %3884 = vmatpush1.msra.mxu0 0.0
    %3885 = vmatprep.subr.mxu0 0.0
    %3886 = vmatpush1.msra.mxu0 0.0
    %3887 = vmatprep.subr.mxu0 0.0
    %3888 = vmatpush1.msra.mxu0 0.0
    %3889 = vmatprep.subr.mxu0 0.0
    %3890 = vmatpush1.msra.mxu0 0.0
    %3891 = vmatprep.subr.mxu0 0.0
    %3892 = vmatpush1.msra.mxu0 0.0
    %3893 = vmatprep.subr.mxu0 0.0
    %3894 = vmatpush1.msra.mxu0 %v3861
    %3895 = vmatprep.subr.mxu0 0.0
    %3896 = vmatpush2.msra.mxu0 0.0
    %3897 = vmatprep.subr.mxu0 0.0
    %3898 = vmatpush2.msra.mxu0 0.0
    %3899 = vmatprep.subr.mxu0 0.0
    %3900 = vmatpush2.msra.mxu0 0.0
    %3901 = vmatprep.subr.mxu0 0.0
    %3902 = vmatpush2.msra.mxu0 0.0
    %3903 = vmatprep.subr.mxu0 0.0
    %3904 = vmatpush2.msra.mxu0 0.0
    %3905 = vmatprep.subr.mxu0 0.0
    %3906 = vmatpush2.msra.mxu0 0.0
    %3907 = vmatprep.subr.mxu0 0.0
    %3908 = vmatpush2.msra.mxu0 0.0
    %3909 = vmatprep.subr.mxu0 0.0
    %3910 = vmatpush2.msra.mxu0 0.0
    %3911 = vmatprep.subr.mxu0 0.0
    %3912 = vmatpush2.msra.mxu0 0.0
    %3913 = vmatprep.subr.mxu0 0.0
    %3914 = vmatpush2.msra.mxu0 0.0
    %3915 = vmatprep.subr.mxu0 0.0
    %3916 = vmatpush2.msra.mxu0 0.0
    %3917 = vmatprep.subr.mxu0 0.0
    %3918 = vmatpush2.msra.mxu0 0.0
    %3919 = vmatprep.subr.mxu0 0.0
    %3920 = vmatpush2.msra.mxu0 0.0
    %3921 = vmatprep.subr.mxu0 0.0
    %3922 = vmatpush2.msra.mxu0 0.0
    %3923 = vmatprep.subr.mxu0 0.0
    %3924 = vmatpush2.msra.mxu0 0.0
    %3925 = vmatprep.subr.mxu0 0.0
    %3926 = vmatpush2.msra.mxu0 0.0
    %3927 = vmatprep.mubr.f32.mxu0 0.0
    %3928 = vmatmul.mubr.f32.gmra.mxu0 %v3859
    %v3929 = vpop.f32.mrf.mxu0
    %v3930 = vadd.f32 0.0, %v3929
    %v3931 = vpop.f32.mrf.mxu0
    %3932 = vdwg.mxu0
    %3934 = vrot.lane.b32.xlu0 %v3596, 8
    %v3935 = vpop.permute.xlu0 %3934
    %3938 = vrot.lane.b32.xlu0 %v3763, 16
    %v3939 = vpop.permute.xlu0 %3938
    %3942 = vrot.lane.b32.xlu0 %v3930, 24
    %v3943 = vpop.permute.xlu0 %3942
    %v3945 = vsel %vm3266, %v3429, %v3935
    %v3946 = vsel %vm126, %v3945, %v3939
    %vm3947 = vcmask 195584
    %v3948 = vsel %vm3947, %v3946, %v3943
    %v3949 = vld [vmem:[#allocation2] sm:$0xff]
    %v3950 = vld [vmem:[#allocation2 + $0x8] sm:$0xff]
    %v3951 = vld [vmem:[#allocation2 + $0x10] sm:$0xff]
    %v3952 = vld [vmem:[#allocation2 + $0x18] sm:$0xff]
    %v3953 = vld [vmem:[%s18] sm:$0x1]
    %v3955 = vlaneseq
    %v3956 = vshrl.u32 %v3955, 7
    %v3957 = vsub.s32 0, %v3956
    %v3958 = vrot.slane %v3953, %v3957
    %v3961 = vsel %vm847, %v3948, 0
    %3963 = vmatprep.subr.mxu0 0.0
    %3964 = vmatpush1.msra.mxu0 0.0
    %3965 = vmatprep.subr.mxu0 0.0
    %3966 = vmatpush1.msra.mxu0 0.0
    %3967 = vmatprep.subr.mxu0 0.0
    %3968 = vmatpush1.msra.mxu0 0.0
    %3969 = vmatprep.subr.mxu0 0.0
    %3970 = vmatpush1.msra.mxu0 0.0
    %3971 = vmatprep.subr.mxu0 0.0
    %3972 = vmatpush1.msra.mxu0 0.0
    %3973 = vmatprep.subr.mxu0 0.0
    %3974 = vmatpush1.msra.mxu0 0.0
    %3975 = vmatprep.subr.mxu0 0.0
    %3976 = vmatpush1.msra.mxu0 0.0
    %3977 = vmatprep.subr.mxu0 0.0
    %3978 = vmatpush1.msra.mxu0 0.0
    %3979 = vmatprep.subr.mxu0 0.0
    %3980 = vmatpush1.msra.mxu0 0.0
    %3981 = vmatprep.subr.mxu0 0.0
    %3982 = vmatpush1.msra.mxu0 0.0
    %3983 = vmatprep.subr.mxu0 0.0
    %3984 = vmatpush1.msra.mxu0 0.0
    %3985 = vmatprep.subr.mxu0 0.0
    %3986 = vmatpush1.msra.mxu0 0.0
    %3987 = vmatprep.subr.mxu0 0.0
    %3988 = vmatpush1.msra.mxu0 %v3952
    %3989 = vmatprep.subr.mxu0 0.0
    %3990 = vmatpush1.msra.mxu0 %v3951
    %3991 = vmatprep.subr.mxu0 0.0
    %3992 = vmatpush1.msra.mxu0 %v3950
    %3993 = vmatprep.subr.mxu0 0.0
    %3994 = vmatpush1.msra.mxu0 %v3949
    %3995 = vmatprep.subr.mxu0 0.0
    %3996 = vmatpush2.msra.mxu0 0.0
    %3997 = vmatprep.subr.mxu0 0.0
    %3998 = vmatpush2.msra.mxu0 0.0
    %3999 = vmatprep.subr.mxu0 0.0
    %4000 = vmatpush2.msra.mxu0 0.0
    %4001 = vmatprep.subr.mxu0 0.0
    %4002 = vmatpush2.msra.mxu0 0.0
    %4003 = vmatprep.subr.mxu0 0.0
    %4004 = vmatpush2.msra.mxu0 0.0
    %4005 = vmatprep.subr.mxu0 0.0
    %4006 = vmatpush2.msra.mxu0 0.0
    %4007 = vmatprep.subr.mxu0 0.0
    %4008 = vmatpush2.msra.mxu0 0.0
    %4009 = vmatprep.subr.mxu0 0.0
    %4010 = vmatpush2.msra.mxu0 0.0
    %4011 = vmatprep.subr.mxu0 0.0
    %4012 = vmatpush2.msra.mxu0 0.0
    %4013 = vmatprep.subr.mxu0 0.0
    %4014 = vmatpush2.msra.mxu0 0.0
    %4015 = vmatprep.subr.mxu0 0.0
    %4016 = vmatpush2.msra.mxu0 0.0
    %4017 = vmatprep.subr.mxu0 0.0
    %4018 = vmatpush2.msra.mxu0 0.0
    %4019 = vmatprep.subr.mxu0 0.0
    %4020 = vmatpush2.msra.mxu0 0.0
    %4021 = vmatprep.subr.mxu0 0.0
    %4022 = vmatpush2.msra.mxu0 0.0
    %4023 = vmatprep.subr.mxu0 0.0
    %4024 = vmatpush2.msra.mxu0 0.0
    %4025 = vmatprep.subr.mxu0 0.0
    %4026 = vmatpush2.msra.mxu0 0.0
    %4027 = vmatprep.mubr.f32.mxu0 0.0
    %4028 = vmatmul.mubr.f32.gmra.mxu0 %v3961
    %v4029 = vpop.f32.mrf.mxu0
    %v4030 = vadd.f32 %v3958, %v4029
    %v4031 = vpop.f32.mrf.mxu0
    %4032 = vdwg.mxu0
    %v4033 = vld [vmem:[%s19] sm:$0x1]
    %v4034 = vld [vmem:[%s20] sm:$0x1]
    %vm4035 = vcmask 254976
    %v4036 = vsel %vm4035, %v4030, 0.0
    %4037 = vadd.xlane.f32.xlu0 %v4036
    %v4038 = vpop.xlane.xlu0 %4037
    %v4039 = vrcp.pop 32.0
    %v4040 = vmul.f32 %v4038, %v4039
    %v4041 = vsub.f32 %v4030, %v4040
    %v4042 = vmul.f32 %v4041, %v4041
    %v4043 = vsel %vm4035, %v4042, 0.0
    %4044 = vadd.xlane.f32.xlu0 %v4043
    %v4045 = vpop.xlane.xlu0 %4044
    %v4046 = vmul.f32 %v4045, %v4039
    %v4047 = vadd.f32 %v4046, 1e-05
    %v4048 = vrsqrt.pop %v4047
    %v4049 = vmul.f32 %v4041, %v4048
    %v4051 = vlaneseq
    %v4052 = vshrl.u32 %v4051, 7
    %v4053 = vsub.s32 0, %v4052
    %v4054 = vrot.slane %v4033, %v4053
    %v4056 = vmul.f32 %v4049, %v4054
    %v4058 = vlaneseq
    %v4059 = vshrl.u32 %v4058, 7
    %v4060 = vsub.s32 0, %v4059
    %v4061 = vrot.slane %v4034, %v4060
    %v4063 = vadd.f32 %v4056, %v4061
    %v4064 = vld [vmem:[#allocation5] sm:$0xff]
    %v4065 = vld [vmem:[#allocation5 + $0x8] sm:$0xff]
    %v4066 = vld [vmem:[#allocation5 + $0x10] sm:$0xff]
    %v4067 = vld [vmem:[#allocation5 + $0x18] sm:$0xff]
    %v4068 = vld [vmem:[%s22] sm:$0x1]
    %v4070 = vlaneseq
    %v4071 = vshrl.u32 %v4070, 7
    %v4072 = vsub.s32 0, %v4071
    %v4073 = vrot.slane %v4068, %v4072
    %v4076 = vsel %vm847, %v4063, 0
    %4078 = vmatprep.subr.mxu0 0.0
    %4079 = vmatpush1.msra.mxu0 0.0
    %4080 = vmatprep.subr.mxu0 0.0
    %4081 = vmatpush1.msra.mxu0 0.0
    %4082 = vmatprep.subr.mxu0 0.0
    %4083 = vmatpush1.msra.mxu0 0.0
    %4084 = vmatprep.subr.mxu0 0.0
    %4085 = vmatpush1.msra.mxu0 0.0
    %4086 = vmatprep.subr.mxu0 0.0
    %4087 = vmatpush1.msra.mxu0 0.0
    %4088 = vmatprep.subr.mxu0 0.0
    %4089 = vmatpush1.msra.mxu0 0.0
    %4090 = vmatprep.subr.mxu0 0.0
    %4091 = vmatpush1.msra.mxu0 0.0
    %4092 = vmatprep.subr.mxu0 0.0
    %4093 = vmatpush1.msra.mxu0 0.0
    %4094 = vmatprep.subr.mxu0 0.0
    %4095 = vmatpush1.msra.mxu0 0.0
    %4096 = vmatprep.subr.mxu0 0.0
    %4097 = vmatpush1.msra.mxu0 0.0
    %4098 = vmatprep.subr.mxu0 0.0
    %4099 = vmatpush1.msra.mxu0 0.0
    %4100 = vmatprep.subr.mxu0 0.0
    %4101 = vmatpush1.msra.mxu0 0.0
    %4102 = vmatprep.subr.mxu0 0.0
    %4103 = vmatpush1.msra.mxu0 %v4067
    %4104 = vmatprep.subr.mxu0 0.0
    %4105 = vmatpush1.msra.mxu0 %v4066
    %4106 = vmatprep.subr.mxu0 0.0
    %4107 = vmatpush1.msra.mxu0 %v4065
    %4108 = vmatprep.subr.mxu0 0.0
    %4109 = vmatpush1.msra.mxu0 %v4064
    %4110 = vmatprep.subr.mxu0 0.0
    %4111 = vmatpush2.msra.mxu0 0.0
    %4112 = vmatprep.subr.mxu0 0.0
    %4113 = vmatpush2.msra.mxu0 0.0
    %4114 = vmatprep.subr.mxu0 0.0
    %4115 = vmatpush2.msra.mxu0 0.0
    %4116 = vmatprep.subr.mxu0 0.0
    %4117 = vmatpush2.msra.mxu0 0.0
    %4118 = vmatprep.subr.mxu0 0.0
    %4119 = vmatpush2.msra.mxu0 0.0
    %4120 = vmatprep.subr.mxu0 0.0
    %4121 = vmatpush2.msra.mxu0 0.0
    %4122 = vmatprep.subr.mxu0 0.0
    %4123 = vmatpush2.msra.mxu0 0.0
    %4124 = vmatprep.subr.mxu0 0.0
    %4125 = vmatpush2.msra.mxu0 0.0
    %4126 = vmatprep.subr.mxu0 0.0
    %4127 = vmatpush2.msra.mxu0 0.0
    %4128 = vmatprep.subr.mxu0 0.0
    %4129 = vmatpush2.msra.mxu0 0.0
    %4130 = vmatprep.subr.mxu0 0.0
    %4131 = vmatpush2.msra.mxu0 0.0
    %4132 = vmatprep.subr.mxu0 0.0
    %4133 = vmatpush2.msra.mxu0 0.0
    %4134 = vmatprep.subr.mxu0 0.0
    %4135 = vmatpush2.msra.mxu0 0.0
    %4136 = vmatprep.subr.mxu0 0.0
    %4137 = vmatpush2.msra.mxu0 0.0
    %4138 = vmatprep.subr.mxu0 0.0
    %4139 = vmatpush2.msra.mxu0 0.0
    %4140 = vmatprep.subr.mxu0 0.0
    %4141 = vmatpush2.msra.mxu0 0.0
    %4142 = vmatprep.mubr.f32.mxu0 0.0
    %4143 = vmatmul.mubr.f32.gmra.mxu0 %v4076
    %v4144 = vpop.f32.mrf.mxu0
    %v4145 = vadd.f32 %v4073, %v4144
    %v4146 = vpop.f32.mrf.mxu0
    %4147 = vdwg.mxu0
    %4148 = vst.msk [vmem:[#allocation7] sm:$0x3] %vm4035, %v4145
    // Predicated region
    $region102: #{forward.1} parent=1 // pred_check
      _
    $region103: #{forward.1} parent=1 // pred_check_branch
      %4150 = sbr.rel (0) target = $region105
    $region104: #{forward.1} parent=1 // pred_region
      %s4152 = ssub.s32 32, 32
      %4153 = vsyncadd [#allocation4], %s4152
      %s4155 = sshll.u32 [#allocation7], 4
      %s4156 = int_to_ptr.vmem [resolvable:$true] %s4155
      %4158 = dma.vmem_to_hbm [thread:$0]  %s4156, 32, %s23, [#allocation4]
    $region105: #{forward.1} parent=1 // pred_fallthru
      _
    // Predicated region
    $region106: #{forward.1} parent=1 // pred_check
      _
    $region107: #{forward.1} parent=1 // pred_check_branch
      %4160 = sbr.rel (0) target = $region109
    $region108: #{forward.1} parent=1 // pred_region
      %4161 = dma.done [#allocation4], 32
    $region109: #{forward.1} parent=1 // pred_fallthru
      _
    %4162 = vsyncpa [#allocation3], 1
    %4163 = vsyncpa [#allocation6], 1
    %4164 = vsyncpa [#allocation4], 1

</llo_original>
